<compile_context>
chip_gen: v7x
topology: tpu7x:2x2x1
jax: 0.10.0
libtpu: 0.0.40
codegen_flags: <defaults>
</compile_context>

<pallas_src>
import functools

import jax
import jax.numpy as jnp
from jax.experimental import pallas as pl
from jax.experimental.pallas import tpu as pltpu

LANE = 128


def _round_up(x, m):
    return (x + m - 1) // m * m


# --------------------------------------------------------------------------- #
# Conv3x3(pad=1, stride=1) + folded BN + ReLU (+ optional fused 2x2 max-pool)  #
# --------------------------------------------------------------------------- #
def _conv_bn_relu_kernel(x_ref, w_ref, b_ref, o_ref, *, H, W, pool):
    # x_ref : ((H+3)*(W+2), Cp) bf16  flat zero-padded image (one batch element)
    # w_ref : (9, Cp, Cp)       bf16  3x3 taps, BN scale already folded in
    # b_ref : (1, Cp)           f32   folded bias
    # o_ref : (Ho, Wo, Cp)      bf16  Ho,Wo = (H,W) or (H//2,W//2) when pool
    Wp = W + 2
    M = H * Wp
    C = o_ref.shape[-1]

    acc = jnp.zeros((M, C), jnp.float32)
    for t in range(9):
        dy, dx = divmod(t, 3)
        off = dy * Wp + dx
        # Contiguous constant-offset slice of the flat padded slab: tap (dy,dx)'s
        # contribution to output position j is x_flat[j + dy*Wp + dx].
        patch = x_ref[pl.ds(off, M), :]                       # (M, Cp) bf16
        acc = acc + jnp.dot(patch, w_ref[t],
                            preferred_element_type=jnp.float32)

    out = jnp.maximum(acc + b_ref[...], 0.0)                  # bias + ReLU (f32)
    img = out.reshape(H, Wp, C)[:, :W, :]                     # drop 2 junk columns
    if pool:                                                  # fused 2x2/2 max-pool
        img = jnp.max(img.reshape(H // 2, 2, W, C), axis=1)
        img = jnp.max(img.reshape(H // 2, W // 2, 2, C), axis=2)
    o_ref[...] = img.astype(o_ref.dtype)


def conv_bn_relu(x_nhwc, w9, bias, *, pool):
    # x_nhwc: (N, H, W, Cp) bf16; w9: (9, Cp, Cop) bf16; bias: (1, Cop) f32
    N, H, W, Cp = x_nhwc.shape
    Cop = w9.shape[-1]
    if pool:
        assert H % 2 == 0 and W % 2 == 0
    Ho, Wo = (H // 2, W // 2) if pool else (H, W)
    Mtot = (H + 3) * (W + 2)
    # Zero pad: 1 top row, 2 bottom rows (keeps the shifted flat slices in bounds),
    # 1 column each side; then flatten spatial -> (N, Mtot, Cp).
    xflat = jnp.pad(x_nhwc, ((0, 0), (1, 2), (1, 1), (0, 0))).reshape(N, Mtot, Cp)

    kern = functools.partial(_conv_bn_relu_kernel, H=H, W=W, pool=pool)
    return pl.pallas_call(
        kern,
        out_shape=jax.ShapeDtypeStruct((N, Ho, Wo, Cop), jnp.bfloat16),
        grid_spec=pltpu.PrefetchScalarGridSpec(
            num_scalar_prefetch=0,
            grid=(N,),
            in_specs=[
                pl.BlockSpec((None, Mtot, Cp), lambda n: (n, 0, 0)),
                pl.BlockSpec((9, Cp, Cop), lambda n: (0, 0, 0)),
                pl.BlockSpec((1, Cop), lambda n: (0, 0)),
            ],
            out_specs=pl.BlockSpec((None, Ho, Wo, Cop), lambda n: (n, 0, 0, 0)),
        ),
        compiler_params=pltpu.CompilerParams(dimension_semantics=("parallel",)),
    )(xflat, w9, bias)


# --------------------------------------------------------------------------- #
# Classifier: Linear -> ReLU -> (Dropout=id) -> Linear -> ReLU -> Linear       #
# --------------------------------------------------------------------------- #
def _mlp_kernel(x_ref, w1_ref, b1_ref, w2_ref, b2_ref, w3_ref, b3_ref, o_ref):
    h = jnp.dot(x_ref[...], w1_ref[...], preferred_element_type=jnp.float32)
    h = jnp.maximum(h + b1_ref[...], 0.0)
    # Dropout (eval mode) == identity.
    h = jnp.dot(h.astype(jnp.bfloat16), w2_ref[...],
                preferred_element_type=jnp.float32)
    h = jnp.maximum(h + b2_ref[...], 0.0)
    h = jnp.dot(h.astype(jnp.bfloat16), w3_ref[...],
                preferred_element_type=jnp.float32)
    o_ref[...] = h + b3_ref[...]


def classifier(xvec, w1, b1, w2, b2, w3, b3):
    K0 = xvec.shape[1]
    N1, N2, N3 = w1.shape[1], w2.shape[1], w3.shape[1]
    return pl.pallas_call(
        _mlp_kernel,
        out_shape=jax.ShapeDtypeStruct((1, N3), jnp.float32),
        grid_spec=pltpu.PrefetchScalarGridSpec(
            num_scalar_prefetch=0,
            grid=(1,),
            in_specs=[
                pl.BlockSpec((1, K0), lambda i: (0, 0)),
                pl.BlockSpec((K0, N1), lambda i: (0, 0)),
                pl.BlockSpec((1, N1), lambda i: (0, 0)),
                pl.BlockSpec((N1, N2), lambda i: (0, 0)),
                pl.BlockSpec((1, N2), lambda i: (0, 0)),
                pl.BlockSpec((N2, N3), lambda i: (0, 0)),
                pl.BlockSpec((1, N3), lambda i: (0, 0)),
            ],
            out_specs=pl.BlockSpec((1, N3), lambda i: (0, 0)),
        ),
        compiler_params=pltpu.CompilerParams(dimension_semantics=("arbitrary",)),
    )(xvec, w1, b1, w2, b2, w3, b3)


# --------------------------------------------------------------------------- #
# Full VGG forward                                                             #
# --------------------------------------------------------------------------- #
def vgg_forward_pallas(x_nchw, conv_params, fc_params, cfg, eps=1e-5):
    """VGGNet.forward: features -> torch.flatten(x) -> classifier.
    NCHW input; returns (num_classes,) logits.  Batch must be 1 because the
    reference module's torch.flatten(x) flattens the batch dimension too."""
    N, Cin, H, W = x_nchw.shape
    assert N == 1, "torch.flatten(x) folds the batch dim; use batch size 1"

    # NCHW -> NHWC, bf16 activations, channels zero-padded to the lane width.
    Cp = _round_up(max(Cin, LANE), LANE)
    x = jnp.transpose(x_nchw, (0, 2, 3, 1)).astype(jnp.bfloat16)
    x = jnp.pad(x, ((0, 0), (0, 0), (0, 0), (0, Cp - Cin)))

    ci = 0
    c_real = Cin
    k = 0
    while k < len(cfg):
        v = cfg[k]
        assert v != 'M', "each 'M' must follow a conv layer in this implementation"
        w, b, g, beta, rm, rv = conv_params[ci]
        ci += 1
        Cout = w.shape[0]
        Cop = _round_up(max(Cout, LANE), LANE)

        # Fold eval-mode BN into the conv: scale into the weights, rest into bias.
        scale = g / jnp.sqrt(rv + eps)
        w_eff = (w * scale[:, None, None, None]).astype(jnp.float32)   # OIHW
        b_eff = ((b - rm) * scale + beta).astype(jnp.float32)
        w_hwio = jnp.transpose(w_eff, (2, 3, 1, 0)).reshape(9, c_real, Cout)
        w9 = jnp.zeros((9, x.shape[-1], Cop), jnp.float32)
        w9 = w9.at[:, :c_real, :Cout].set(w_hwio).astype(jnp.bfloat16)
        bp = jnp.zeros((1, Cop), jnp.float32).at[0, :Cout].set(b_eff)

        pool = (k + 1 < len(cfg) and cfg[k + 1] == 'M')
        x = conv_bn_relu(x, w9, bp, pool=pool)
        c_real = Cout
        k += 2 if pool else 1

    # torch.flatten(x): NCHW element order over the real channels (batch == 1).
    feats = jnp.transpose(x[..., :c_real], (0, 3, 1, 2)).reshape(-1)    # bf16
    K0 = feats.shape[0]
    K0p = _round_up(K0, LANE)
    xvec = jnp.zeros((1, K0p), jnp.bfloat16).at[0, :K0].set(feats)

    # Classifier weights: torch Linear (out,in) -> padded (in_p, out_p) bf16.
    def prep(wt, bt, in_real, in_pad):
        out_real = wt.shape[0]
        out_pad = _round_up(max(out_real, LANE), LANE)
        wp = jnp.zeros((in_pad, out_pad), jnp.float32)
        wp = wp.at[:in_real, :out_real].set(wt.T).astype(jnp.bfloat16)
        bp = jnp.zeros((1, out_pad), jnp.float32).at[0, :out_real].set(bt)
        return wp, bp, out_real, out_pad

    (w1, b1), (w2, b2), (w3, b3) = fc_params
    w1p, b1p, n1, n1p = prep(w1, b1, K0, K0p)
    w2p, b2p, n2, n2p = prep(w2, b2, n1, n1p)
    w3p, b3p, n3, _ = prep(w3, b3, n2, n2p)

    logits = classifier(xvec, w1p, b1p, w2p, b2p, w3p, b3p)
    return logits[0, :n3]


# --------------------------------------------------------------------------- #
# Pure-JAX reference (same bf16 cast points as the kernels)                    #
# --------------------------------------------------------------------------- #
def vgg_reference(x_nchw, conv_params, fc_params, cfg, eps=1e-5):
    x = jnp.transpose(x_nchw, (0, 2, 3, 1)).astype(jnp.float32)   # NHWC
    ci = 0
    k = 0
    while k < len(cfg):
        w, b, g, beta, rm, rv = conv_params[ci]
        ci += 1
        scale = g / jnp.sqrt(rv + eps)
        w_eff = w * scale[:, None, None, None]
        b_eff = (b - rm) * scale + beta
        w_hwio = jnp.transpose(w_eff, (2, 3, 1, 0)).astype(jnp.bfloat16)
        N, Hc, Wc, _ = x.shape
        Cout = w.shape[0]
        xb = x.astype(jnp.bfloat16)
        xp = jnp.pad(xb, ((0, 0), (1, 1), (1, 1), (0, 0)))
        acc = jnp.zeros((N, Hc, Wc, Cout), jnp.float32)
        for dy in range(3):
            for dx in range(3):
                acc = acc + jnp.einsum(
                    'nhwc,cd->nhwd',
                    xp[:, dy:dy + Hc, dx:dx + Wc, :], w_hwio[dy, dx],
                    preferred_element_type=jnp.float32)
        y = jnp.maximum(acc + b_eff, 0.0)
        if k + 1 < len(cfg) and cfg[k + 1] == 'M':
            y = jnp.maximum(y[:, 0::2, :, :], y[:, 1::2, :, :])
            y = jnp.maximum(y[:, :, 0::2, :], y[:, :, 1::2, :])
            k += 1
        x = y.astype(jnp.bfloat16).astype(jnp.float32)
        k += 1

    feats = jnp.transpose(x, (0, 3, 1, 2)).reshape(-1)   # torch.flatten, N == 1
    h = feats
    for li, (w, b) in enumerate(fc_params):
        h = jnp.dot(h.astype(jnp.bfloat16), w.T.astype(jnp.bfloat16),
                    preferred_element_type=jnp.float32) + b
        if li < len(fc_params) - 1:
            h = jnp.maximum(h, 0.0)
    return h


# --------------------------------------------------------------------------- #
if __name__ == "__main__":
    # Small VGG: cfg [8,'M',16,'M'], 3-channel 16x16 input, tiny classifier.
    cfg = [8, 'M', 16, 'M']
    in_channels, num_classes = 3, 10
    N, H, W = 1, 16, 16          # batch must be 1 (torch.flatten folds batch)
    hidden = 64                  # toy-scale analog of 4096

    key = jax.random.PRNGKey(0)
    keys = iter(jax.random.split(key, 64))

    def nrm(k, shape, s=0.1):
        return s * jax.random.normal(k, shape, jnp.float32)

    x = jax.random.normal(next(keys), (N, in_channels, H, W), jnp.float32)

    conv_params = []
    c_in = in_channels
    for v in cfg:
        if v == 'M':
            continue
        conv_params.append((
            nrm(next(keys), (v, c_in, 3, 3)),                    # conv weight OIHW
            nrm(next(keys), (v,)),                               # conv bias
            1.0 + nrm(next(keys), (v,)),                         # bn gamma
            nrm(next(keys), (v,)),                               # bn beta
            nrm(next(keys), (v,)),                               # bn running_mean
            1.0 + 0.1 * jax.random.uniform(next(keys), (v,), jnp.float32),  # run_var
        ))
        c_in = v

    n_pool = sum(1 for v in cfg if v == 'M')
    feat_hw = H // (2 ** n_pool)
    flat_dim = c_in * feat_hw * feat_hw
    fc_params = [
        (nrm(next(keys), (hidden, flat_dim), 0.05), nrm(next(keys), (hidden,), 0.05)),
        (nrm(next(keys), (hidden, hidden), 0.05), nrm(next(keys), (hidden,), 0.05)),
        (nrm(next(keys), (num_classes, hidden), 0.05),
         nrm(next(keys), (num_classes,), 0.05)),
    ]

    out = vgg_forward_pallas(x, conv_params, fc_params, cfg)
    out = jax.block_until_ready(out)

    ref = vgg_reference(x, conv_params, fc_params, cfg)
    ref = jax.block_until_ready(ref)

    assert out.shape == (num_classes,)
    err = float(jnp.max(jnp.abs(out - ref)))
    assert jnp.allclose(out, ref, rtol=1e-2, atol=2e-3), f"max abs err = {err}"
    print("KERNEL_OK")
</pallas_src>

<mosaic_0001>
module attributes {stable_mosaic.version = 11 : i64} {
  func.func @_conv_bn_relu_kernel(%arg0: i32, %arg1: memref<1x342x128xbf16, #tpu.memory_space<vmem>>, %arg2: memref<9x128x128xbf16, #tpu.memory_space<vmem>>, %arg3: memref<1x128xf32, #tpu.memory_space<vmem>>, %arg4: memref<1x8x8x128xbf16, #tpu.memory_space<vmem>>) attributes {dimension_semantics = [#tpu.dimension_semantics<parallel>], iteration_bounds = array<i64: 1>, scalar_prefetch = 0 : i64, scratch_operands = 0 : i64, tpu.core_type = #tpu.core_type<tc>, window_params = [{transform_indices = @transform_0, window_bounds = array<i64: 1, 342, 128>}, {pipeline_mode = #tpu.pipeline_mode<synchronous>, transform_indices = @transform_1, window_bounds = array<i64: 9, 128, 128>}, {pipeline_mode = #tpu.pipeline_mode<synchronous>, transform_indices = @transform_2, window_bounds = array<i64: 1, 128>}, {transform_indices = @transform_3, window_bounds = array<i64: 1, 8, 8, 128>}]} {
    %cst = arith.constant 0.000000e+00 : f32
    %0 = vector.broadcast %cst : f32 to vector<288x128xf32>
    %c0 = arith.constant 0 : index
    %c0_0 = arith.constant 0 : index
    %c0_1 = arith.constant 0 : index
    %1 = vector.load %arg1[%c0, %c0_0, %c0_1] : memref<1x342x128xbf16, #tpu.memory_space<vmem>>, vector<1x288x128xbf16>
    %2 = vector.shape_cast %1 : vector<1x288x128xbf16> to vector<288x128xbf16>
    %c0_2 = arith.constant 0 : index
    %c0_3 = arith.constant 0 : index
    %c0_4 = arith.constant 0 : index
    %3 = vector.load %arg2[%c0_2, %c0_3, %c0_4] : memref<9x128x128xbf16, #tpu.memory_space<vmem>>, vector<1x128x128xbf16>
    %4 = vector.shape_cast %3 : vector<1x128x128xbf16> to vector<128x128xbf16>
    %cst_5 = arith.constant dense<0.000000e+00> : vector<288x128xf32>
    %5 = tpu.matmul %2, %4, %cst_5 {dimension_numbers = #tpu.dot_dimension_numbers<[1], [0], [0], [1], [0, 0, 1, 1], [], []>} : vector<288x128xbf16>, vector<128x128xbf16>, vector<288x128xf32> -> vector<288x128xf32>
    %6 = arith.addf %0, %5 : vector<288x128xf32>
    %c0_6 = arith.constant 0 : index
    %c1 = arith.constant 1 : index
    %c0_7 = arith.constant 0 : index
    %7 = vector.load %arg1[%c0_6, %c1, %c0_7] : memref<1x342x128xbf16, #tpu.memory_space<vmem>>, vector<1x288x128xbf16>
    %8 = vector.shape_cast %7 : vector<1x288x128xbf16> to vector<288x128xbf16>
    %c1_8 = arith.constant 1 : index
    %c0_9 = arith.constant 0 : index
    %c0_10 = arith.constant 0 : index
    %9 = vector.load %arg2[%c1_8, %c0_9, %c0_10] : memref<9x128x128xbf16, #tpu.memory_space<vmem>>, vector<1x128x128xbf16>
    %10 = vector.shape_cast %9 : vector<1x128x128xbf16> to vector<128x128xbf16>
    %cst_11 = arith.constant dense<0.000000e+00> : vector<288x128xf32>
    %11 = tpu.matmul %8, %10, %cst_11 {dimension_numbers = #tpu.dot_dimension_numbers<[1], [0], [0], [1], [0, 0, 1, 1], [], []>} : vector<288x128xbf16>, vector<128x128xbf16>, vector<288x128xf32> -> vector<288x128xf32>
    %12 = arith.addf %6, %11 : vector<288x128xf32>
    %c0_12 = arith.constant 0 : index
    %c2 = arith.constant 2 : index
    %c0_13 = arith.constant 0 : index
    %13 = vector.load %arg1[%c0_12, %c2, %c0_13] : memref<1x342x128xbf16, #tpu.memory_space<vmem>>, vector<1x288x128xbf16>
    %14 = vector.shape_cast %13 : vector<1x288x128xbf16> to vector<288x128xbf16>
    %c2_14 = arith.constant 2 : index
    %c0_15 = arith.constant 0 : index
    %c0_16 = arith.constant 0 : index
    %15 = vector.load %arg2[%c2_14, %c0_15, %c0_16] : memref<9x128x128xbf16, #tpu.memory_space<vmem>>, vector<1x128x128xbf16>
    %16 = vector.shape_cast %15 : vector<1x128x128xbf16> to vector<128x128xbf16>
    %cst_17 = arith.constant dense<0.000000e+00> : vector<288x128xf32>
    %17 = tpu.matmul %14, %16, %cst_17 {dimension_numbers = #tpu.dot_dimension_numbers<[1], [0], [0], [1], [0, 0, 1, 1], [], []>} : vector<288x128xbf16>, vector<128x128xbf16>, vector<288x128xf32> -> vector<288x128xf32>
    %18 = arith.addf %12, %17 : vector<288x128xf32>
    %c0_18 = arith.constant 0 : index
    %c18 = arith.constant 18 : index
    %c0_19 = arith.constant 0 : index
    %19 = vector.load %arg1[%c0_18, %c18, %c0_19] : memref<1x342x128xbf16, #tpu.memory_space<vmem>>, vector<1x288x128xbf16>
    %20 = vector.shape_cast %19 : vector<1x288x128xbf16> to vector<288x128xbf16>
    %c3 = arith.constant 3 : index
    %c0_20 = arith.constant 0 : index
    %c0_21 = arith.constant 0 : index
    %21 = vector.load %arg2[%c3, %c0_20, %c0_21] : memref<9x128x128xbf16, #tpu.memory_space<vmem>>, vector<1x128x128xbf16>
    %22 = vector.shape_cast %21 : vector<1x128x128xbf16> to vector<128x128xbf16>
    %cst_22 = arith.constant dense<0.000000e+00> : vector<288x128xf32>
    %23 = tpu.matmul %20, %22, %cst_22 {dimension_numbers = #tpu.dot_dimension_numbers<[1], [0], [0], [1], [0, 0, 1, 1], [], []>} : vector<288x128xbf16>, vector<128x128xbf16>, vector<288x128xf32> -> vector<288x128xf32>
    %24 = arith.addf %18, %23 : vector<288x128xf32>
    %c0_23 = arith.constant 0 : index
    %c19 = arith.constant 19 : index
    %c0_24 = arith.constant 0 : index
    %25 = vector.load %arg1[%c0_23, %c19, %c0_24] : memref<1x342x128xbf16, #tpu.memory_space<vmem>>, vector<1x288x128xbf16>
    %26 = vector.shape_cast %25 : vector<1x288x128xbf16> to vector<288x128xbf16>
    %c4 = arith.constant 4 : index
    %c0_25 = arith.constant 0 : index
    %c0_26 = arith.constant 0 : index
    %27 = vector.load %arg2[%c4, %c0_25, %c0_26] : memref<9x128x128xbf16, #tpu.memory_space<vmem>>, vector<1x128x128xbf16>
    %28 = vector.shape_cast %27 : vector<1x128x128xbf16> to vector<128x128xbf16>
    %cst_27 = arith.constant dense<0.000000e+00> : vector<288x128xf32>
    %29 = tpu.matmul %26, %28, %cst_27 {dimension_numbers = #tpu.dot_dimension_numbers<[1], [0], [0], [1], [0, 0, 1, 1], [], []>} : vector<288x128xbf16>, vector<128x128xbf16>, vector<288x128xf32> -> vector<288x128xf32>
    %30 = arith.addf %24, %29 : vector<288x128xf32>
    %c0_28 = arith.constant 0 : index
    %c20 = arith.constant 20 : index
    %c0_29 = arith.constant 0 : index
    %31 = vector.load %arg1[%c0_28, %c20, %c0_29] : memref<1x342x128xbf16, #tpu.memory_space<vmem>>, vector<1x288x128xbf16>
    %32 = vector.shape_cast %31 : vector<1x288x128xbf16> to vector<288x128xbf16>
    %c5 = arith.constant 5 : index
    %c0_30 = arith.constant 0 : index
    %c0_31 = arith.constant 0 : index
    %33 = vector.load %arg2[%c5, %c0_30, %c0_31] : memref<9x128x128xbf16, #tpu.memory_space<vmem>>, vector<1x128x128xbf16>
    %34 = vector.shape_cast %33 : vector<1x128x128xbf16> to vector<128x128xbf16>
    %cst_32 = arith.constant dense<0.000000e+00> : vector<288x128xf32>
    %35 = tpu.matmul %32, %34, %cst_32 {dimension_numbers = #tpu.dot_dimension_numbers<[1], [0], [0], [1], [0, 0, 1, 1], [], []>} : vector<288x128xbf16>, vector<128x128xbf16>, vector<288x128xf32> -> vector<288x128xf32>
    %36 = arith.addf %30, %35 : vector<288x128xf32>
    %c0_33 = arith.constant 0 : index
    %c36 = arith.constant 36 : index
    %c0_34 = arith.constant 0 : index
    %37 = vector.load %arg1[%c0_33, %c36, %c0_34] : memref<1x342x128xbf16, #tpu.memory_space<vmem>>, vector<1x288x128xbf16>
    %38 = vector.shape_cast %37 : vector<1x288x128xbf16> to vector<288x128xbf16>
    %c6 = arith.constant 6 : index
    %c0_35 = arith.constant 0 : index
    %c0_36 = arith.constant 0 : index
    %39 = vector.load %arg2[%c6, %c0_35, %c0_36] : memref<9x128x128xbf16, #tpu.memory_space<vmem>>, vector<1x128x128xbf16>
    %40 = vector.shape_cast %39 : vector<1x128x128xbf16> to vector<128x128xbf16>
    %cst_37 = arith.constant dense<0.000000e+00> : vector<288x128xf32>
    %41 = tpu.matmul %38, %40, %cst_37 {dimension_numbers = #tpu.dot_dimension_numbers<[1], [0], [0], [1], [0, 0, 1, 1], [], []>} : vector<288x128xbf16>, vector<128x128xbf16>, vector<288x128xf32> -> vector<288x128xf32>
    %42 = arith.addf %36, %41 : vector<288x128xf32>
    %c0_38 = arith.constant 0 : index
    %c37 = arith.constant 37 : index
    %c0_39 = arith.constant 0 : index
    %43 = vector.load %arg1[%c0_38, %c37, %c0_39] : memref<1x342x128xbf16, #tpu.memory_space<vmem>>, vector<1x288x128xbf16>
    %44 = vector.shape_cast %43 : vector<1x288x128xbf16> to vector<288x128xbf16>
    %c7 = arith.constant 7 : index
    %c0_40 = arith.constant 0 : index
    %c0_41 = arith.constant 0 : index
    %45 = vector.load %arg2[%c7, %c0_40, %c0_41] : memref<9x128x128xbf16, #tpu.memory_space<vmem>>, vector<1x128x128xbf16>
    %46 = vector.shape_cast %45 : vector<1x128x128xbf16> to vector<128x128xbf16>
    %cst_42 = arith.constant dense<0.000000e+00> : vector<288x128xf32>
    %47 = tpu.matmul %44, %46, %cst_42 {dimension_numbers = #tpu.dot_dimension_numbers<[1], [0], [0], [1], [0, 0, 1, 1], [], []>} : vector<288x128xbf16>, vector<128x128xbf16>, vector<288x128xf32> -> vector<288x128xf32>
    %48 = arith.addf %42, %47 : vector<288x128xf32>
    %c0_43 = arith.constant 0 : index
    %c38 = arith.constant 38 : index
    %c0_44 = arith.constant 0 : index
    %49 = vector.load %arg1[%c0_43, %c38, %c0_44] : memref<1x342x128xbf16, #tpu.memory_space<vmem>>, vector<1x288x128xbf16>
    %50 = vector.shape_cast %49 : vector<1x288x128xbf16> to vector<288x128xbf16>
    %c8 = arith.constant 8 : index
    %c0_45 = arith.constant 0 : index
    %c0_46 = arith.constant 0 : index
    %51 = vector.load %arg2[%c8, %c0_45, %c0_46] : memref<9x128x128xbf16, #tpu.memory_space<vmem>>, vector<1x128x128xbf16>
    %52 = vector.shape_cast %51 : vector<1x128x128xbf16> to vector<128x128xbf16>
    %cst_47 = arith.constant dense<0.000000e+00> : vector<288x128xf32>
    %53 = tpu.matmul %50, %52, %cst_47 {dimension_numbers = #tpu.dot_dimension_numbers<[1], [0], [0], [1], [0, 0, 1, 1], [], []>} : vector<288x128xbf16>, vector<128x128xbf16>, vector<288x128xf32> -> vector<288x128xf32>
    %54 = arith.addf %48, %53 : vector<288x128xf32>
    %c0_48 = arith.constant 0 : index
    %c0_49 = arith.constant 0 : index
    %55 = vector.load %arg3[%c0_48, %c0_49] : memref<1x128xf32, #tpu.memory_space<vmem>>, vector<1x128xf32>
    %56 = vector.broadcast %55 : vector<1x128xf32> to vector<288x128xf32>
    %57 = arith.addf %54, %56 : vector<288x128xf32>
    %cst_50 = arith.constant 0.000000e+00 : f32
    %58 = vector.broadcast %cst_50 : f32 to vector<288x128xf32>
    %59 = arith.maximumf %57, %58 : vector<288x128xf32>
    %60 = vector.shape_cast %59 : vector<288x128xf32> to vector<16x18x128xf32>
    %61 = vector.extract_strided_slice %60 {offsets = [0, 0, 0], sizes = [16, 16, 128], strides = [1, 1, 1]} : vector<16x18x128xf32> to vector<16x16x128xf32>
    %62 = vector.shape_cast %61 : vector<16x16x128xf32> to vector<8x2x16x128xf32>
    %cst_51 = arith.constant dense<0xFF800000> : vector<8x16x128xf32>
    %63 = vector.multi_reduction <maximumf>, %62, %cst_51 [1] : vector<8x2x16x128xf32> to vector<8x16x128xf32>
    %64 = vector.shape_cast %63 : vector<8x16x128xf32> to vector<8x8x2x128xf32>
    %cst_52 = arith.constant dense<0xFF800000> : vector<8x8x128xf32>
    %65 = vector.multi_reduction <maximumf>, %64, %cst_52 [2] : vector<8x8x2x128xf32> to vector<8x8x128xf32>
    %66 = arith.truncf %65 : vector<8x8x128xf32> to vector<8x8x128xbf16>
    %c0_53 = arith.constant 0 : index
    %c0_54 = arith.constant 0 : index
    %c0_55 = arith.constant 0 : index
    %c0_56 = arith.constant 0 : index
    %67 = vector.load %arg4[%c0_53, %c0_54, %c0_55, %c0_56] : memref<1x8x8x128xbf16, #tpu.memory_space<vmem>>, vector<1x8x8x128xbf16>
    %68 = vector.shape_cast %67 : vector<1x8x8x128xbf16> to vector<8x8x128xbf16>
    %69 = vector.shape_cast %66 : vector<8x8x128xbf16> to vector<1x8x8x128xbf16>
    tpu.vector_store %arg4[%c0_53, %c0_54, %c0_55, %c0_56], %69 {strides = array<i32>} : memref<1x8x8x128xbf16, #tpu.memory_space<vmem>>, vector<1x8x8x128xbf16>,
    return
  }
  func.func @transform_0(%arg0: i32) -> (i32, i32, i32) {
    %c0_i32 = arith.constant 0 : i32
    %c0_i32_0 = arith.constant 0 : i32
    %c0_i32_1 = arith.constant 0 : i32
    return %arg0, %c0_i32, %c0_i32_0 : i32, i32, i32
  }
  func.func @transform_1(%arg0: i32) -> (i32, i32, i32) {
    %c0_i32 = arith.constant 0 : i32
    %c0_i32_0 = arith.constant 0 : i32
    %c0_i32_1 = arith.constant 0 : i32
    %c0_i32_2 = arith.constant 0 : i32
    return %c0_i32, %c0_i32_0, %c0_i32_1 : i32, i32, i32
  }
  func.func @transform_2(%arg0: i32) -> (i32, i32) {
    %c0_i32 = arith.constant 0 : i32
    %c0_i32_0 = arith.constant 0 : i32
    %c0_i32_1 = arith.constant 0 : i32
    return %c0_i32, %c0_i32_0 : i32, i32
  }
  func.func @transform_3(%arg0: i32) -> (i32, i32, i32, i32) {
    %c0_i32 = arith.constant 0 : i32
    %c0_i32_0 = arith.constant 0 : i32
    %c0_i32_1 = arith.constant 0 : i32
    %c0_i32_2 = arith.constant 0 : i32
    return %arg0, %c0_i32, %c0_i32_0, %c0_i32_1 : i32, i32, i32, i32
  }
}

</mosaic_0001>

<llo_original>
// kernel: tpu_custom_call.1
$region0: #{tpu_custom_call.1}
  #allocation0 [shape = 'u32[]', space=smem, size = 0x4, offset = 0x4, fixed_abs, tag = 'smem constant byte address 0x4 - core index']
  #allocation1 [shape = 'u32[144,128]{1,0:T(1,128)}', space=vmem, size = 0x12000, scoped, tag = 'internal scratch']
  %s0 = inlined_call_operand.hbm [shape: bf16[1,342,128], index: 0, kind: input, shape index: {}]
  %s1 = inlined_call_operand.hbm [shape: bf16[9,128,128], index: 1, kind: input, shape index: {}]
  %s2 = inlined_call_operand.vmem [shape: f32[1,128], index: 2, kind: input, shape index: {}]
  %s3 = inlined_call_operand.hbm [shape: bf16[1,8,8,128], index: 3, kind: output, shape index: {}]
  %s4 = sld [smem:[#allocation0]]
  $region30: #{tpu_custom_call.1} parent=0
    _
  %s6 = ssub.s32 1, %s4
  %s7 = scalar_select 0, %s6, %s4
  $region1: #{tpu_custom_call.1} parent=0
    #allocation2 [shape = 'u8[88064]{0}', space=vmem, size = 0x15800, scoped, tag = 'input window, operand 0, single buffered']
    #allocation3 [shape = 's32[1]{0}', space=sflag, size = 0x4, scoped, tag = 'scoped memory for tpu_custom_call.1']
    #allocation4 [shape = 's32[1]{0}', space=sflag, size = 0x4, scoped, tag = 'scoped memory for tpu_custom_call.1']
    #allocation5 [shape = 'u8[294912]{0}', space=vmem, size = 0x48000, scoped, tag = 'input window, operand 1, single buffered']
    #allocation6 [shape = 's32[1]{0}', space=sflag, size = 0x4, scoped, tag = 'scoped memory for tpu_custom_call.1']
    #allocation7 [shape = 'u8[16384]{0}', space=vmem, size = 0x4000, scoped, tag = 'output window, operand 0, single buffered']
    %8 = vsyncpa [#allocation3], 0
    %9 = vsyncpa [#allocation6], 0
    %10 = vsyncpa [#allocation4], 0
    // Predicated region
    $region2: #{tpu_custom_call.1} parent=1 // pred_check
      _
    $region3: #{tpu_custom_call.1} parent=1 // pred_check_branch
      %12 = sbr.rel (0) target = $region5
    $region4: #{tpu_custom_call.1} parent=1 // pred_region
      %s14 = ssub.s32 2752, 2752
      %15 = vsyncadd [#allocation3], %s14
      %s16 = sshll.u32 [#allocation2], 4
      %s17 = int_to_ptr.vmem [resolvable:$true] %s16
      %22 = dma.hbm_to_vmem [thread:$0]  %s0, 2752, %s17, [#allocation3], 64, 64, 4
    $region5: #{tpu_custom_call.1} parent=1 // pred_fallthru
      _
    // Predicated region
    $region6: #{tpu_custom_call.1} parent=1 // pred_check
      _
    $region7: #{tpu_custom_call.1} parent=1 // pred_check_branch
      %24 = sbr.rel (0) target = $region9
    $region8: #{tpu_custom_call.1} parent=1 // pred_region
      %s26 = ssub.s32 9216, 9216
      %27 = vsyncadd [#allocation6], %s26
      %s28 = sshll.u32 [#allocation5], 4
      %s29 = int_to_ptr.vmem [resolvable:$true] %s28
      %34 = dma.hbm_to_vmem [thread:$0]  %s1, 9216, %s29, [#allocation6], 64, 64, 4
    $region9: #{tpu_custom_call.1} parent=1 // pred_fallthru
      _
    // Predicated region
    $region10: #{tpu_custom_call.1} parent=1 // pred_check
      _
    $region11: #{tpu_custom_call.1} parent=1 // pred_check_branch
      %36 = sbr.rel (0) target = $region13
    $region12: #{tpu_custom_call.1} parent=1 // pred_region
      _
    $region13: #{tpu_custom_call.1} parent=1 // pred_fallthru
      _
    // Predicated region
    $region14: #{tpu_custom_call.1} parent=1 // pred_check
      _
    $region15: #{tpu_custom_call.1} parent=1 // pred_check_branch
      %38 = sbr.rel (0) target = $region17
    $region16: #{tpu_custom_call.1} parent=1 // pred_region
      %39 = dma.done [#allocation3], 2752
    $region17: #{tpu_custom_call.1} parent=1 // pred_fallthru
      _
    // Predicated region
    $region18: #{tpu_custom_call.1} parent=1 // pred_check
      _
    $region19: #{tpu_custom_call.1} parent=1 // pred_check_branch
      %41 = sbr.rel (0) target = $region21
    $region20: #{tpu_custom_call.1} parent=1 // pred_region
      %42 = dma.done [#allocation6], 9216
    $region21: #{tpu_custom_call.1} parent=1 // pred_fallthru
      _
    %v44 = vld [vmem:[#allocation2] sm:$0xf]
    %v45 = vld [vmem:[#allocation2 + $0x4] sm:$0xf]
    %v46 = vld [vmem:[#allocation2 + $0x8] sm:$0xf]
    %v47 = vld [vmem:[#allocation2 + $0xc] sm:$0xf]
    %v48 = vld [vmem:[#allocation2 + $0x10] sm:$0xf]
    %v49 = vld [vmem:[#allocation2 + $0x14] sm:$0xf]
    %v50 = vld [vmem:[#allocation2 + $0x18] sm:$0xf]
    %v51 = vld [vmem:[#allocation2 + $0x1c] sm:$0xf]
    %v52 = vld [vmem:[#allocation2 + $0x20] sm:$0xf]
    %v53 = vld [vmem:[#allocation2 + $0x24] sm:$0xf]
    %v54 = vld [vmem:[#allocation2 + $0x28] sm:$0xf]
    %v55 = vld [vmem:[#allocation2 + $0x2c] sm:$0xf]
    %v56 = vld [vmem:[#allocation2 + $0x30] sm:$0xf]
    %v57 = vld [vmem:[#allocation2 + $0x34] sm:$0xf]
    %v58 = vld [vmem:[#allocation2 + $0x38] sm:$0xf]
    %v59 = vld [vmem:[#allocation2 + $0x3c] sm:$0xf]
    %v60 = vld [vmem:[#allocation2 + $0x40] sm:$0xf]
    %v61 = vld [vmem:[#allocation2 + $0x44] sm:$0xf]
    %v62 = vld [vmem:[#allocation2 + $0x48] sm:$0xf]
    %v63 = vld [vmem:[#allocation2 + $0x4c] sm:$0xf]
    %v64 = vld [vmem:[#allocation2 + $0x50] sm:$0xf]
    %v65 = vld [vmem:[#allocation2 + $0x54] sm:$0xf]
    %v66 = vld [vmem:[#allocation2 + $0x58] sm:$0xf]
    %v67 = vld [vmem:[#allocation2 + $0x5c] sm:$0xf]
    %v68 = vld [vmem:[#allocation2 + $0x60] sm:$0xf]
    %v69 = vld [vmem:[#allocation2 + $0x64] sm:$0xf]
    %v70 = vld [vmem:[#allocation2 + $0x68] sm:$0xf]
    %v71 = vld [vmem:[#allocation2 + $0x6c] sm:$0xf]
    %v72 = vld [vmem:[#allocation2 + $0x70] sm:$0xf]
    %v73 = vld [vmem:[#allocation2 + $0x74] sm:$0xf]
    %v74 = vld [vmem:[#allocation2 + $0x78] sm:$0xf]
    %v75 = vld [vmem:[#allocation2 + $0x7c] sm:$0xf]
    %v76 = vld [vmem:[#allocation2 + $0x80] sm:$0xf]
    %v77 = vld [vmem:[#allocation2 + $0x84] sm:$0xf]
    %v78 = vld [vmem:[#allocation2 + $0x88] sm:$0xf]
    %v79 = vld [vmem:[#allocation2 + $0x8c] sm:$0xf]
    %v80 = vld [vmem:[#allocation5] sm:$0xf]
    %v81 = vld [vmem:[#allocation5 + $0x4] sm:$0xf]
    %v82 = vld [vmem:[#allocation5 + $0x8] sm:$0xf]
    %v83 = vld [vmem:[#allocation5 + $0xc] sm:$0xf]
    %v84 = vld [vmem:[#allocation5 + $0x10] sm:$0xf]
    %v85 = vld [vmem:[#allocation5 + $0x14] sm:$0xf]
    %v86 = vld [vmem:[#allocation5 + $0x18] sm:$0xf]
    %v87 = vld [vmem:[#allocation5 + $0x1c] sm:$0xf]
    %v88 = vld [vmem:[#allocation5 + $0x20] sm:$0xf]
    %v89 = vld [vmem:[#allocation5 + $0x24] sm:$0xf]
    %v90 = vld [vmem:[#allocation5 + $0x28] sm:$0xf]
    %v91 = vld [vmem:[#allocation5 + $0x2c] sm:$0xf]
    %v92 = vld [vmem:[#allocation5 + $0x30] sm:$0xf]
    %v93 = vld [vmem:[#allocation5 + $0x34] sm:$0xf]
    %v94 = vld [vmem:[#allocation5 + $0x38] sm:$0xf]
    %v95 = vld [vmem:[#allocation5 + $0x3c] sm:$0xf]
    %v96 = vld [vmem:[#allocation2 + $0x90] sm:$0x1]
    %s97 = scalar_lea.vmem [#allocation5], 64
    %v98 = vld [vmem:[%s97] sm:$0xf]
    %v99 = vld [vmem:[%s97 + $0x4] sm:$0xf]
    %v100 = vld [vmem:[%s97 + $0x8] sm:$0xf]
    %v101 = vld [vmem:[%s97 + $0xc] sm:$0xf]
    %v102 = vld [vmem:[%s97 + $0x10] sm:$0xf]
    %v103 = vld [vmem:[%s97 + $0x14] sm:$0xf]
    %v104 = vld [vmem:[%s97 + $0x18] sm:$0xf]
    %v105 = vld [vmem:[%s97 + $0x1c] sm:$0xf]
    %v106 = vld [vmem:[%s97 + $0x20] sm:$0xf]
    %v107 = vld [vmem:[%s97 + $0x24] sm:$0xf]
    %v108 = vld [vmem:[%s97 + $0x28] sm:$0xf]
    %v109 = vld [vmem:[%s97 + $0x2c] sm:$0xf]
    %v110 = vld [vmem:[%s97 + $0x30] sm:$0xf]
    %v111 = vld [vmem:[%s97 + $0x34] sm:$0xf]
    %v112 = vld [vmem:[%s97 + $0x38] sm:$0xf]
    %v113 = vld [vmem:[%s97 + $0x3c] sm:$0xf]
    %v151 = vunpack.c.l.b16 %v44
    %v152 = vunpack.c.l.b16 %v45
    %v153 = vunpack.c.l.b16 %v46
    %v154 = vunpack.c.l.b16 %v47
    %v155 = vunpack.c.l.b16 %v48
    %v156 = vunpack.c.l.b16 %v49
    %v157 = vunpack.c.l.b16 %v50
    %v158 = vunpack.c.l.b16 %v51
    %v159 = vunpack.c.l.b16 %v52
    %v160 = vunpack.c.l.b16 %v53
    %v161 = vunpack.c.l.b16 %v54
    %v162 = vunpack.c.l.b16 %v55
    %v163 = vunpack.c.l.b16 %v56
    %v164 = vunpack.c.l.b16 %v57
    %v165 = vunpack.c.l.b16 %v58
    %v166 = vunpack.c.l.b16 %v59
    %v167 = vunpack.c.l.b16 %v60
    %v168 = vunpack.c.l.b16 %v61
    %v169 = vunpack.c.l.b16 %v62
    %v170 = vunpack.c.l.b16 %v63
    %v171 = vunpack.c.l.b16 %v64
    %v172 = vunpack.c.l.b16 %v65
    %v173 = vunpack.c.l.b16 %v66
    %v174 = vunpack.c.l.b16 %v67
    %v175 = vunpack.c.l.b16 %v68
    %v176 = vunpack.c.l.b16 %v69
    %v177 = vunpack.c.l.b16 %v70
    %v178 = vunpack.c.l.b16 %v71
    %v179 = vunpack.c.l.b16 %v72
    %v180 = vunpack.c.l.b16 %v73
    %v181 = vunpack.c.l.b16 %v74
    %v182 = vunpack.c.l.b16 %v75
    %v183 = vunpack.c.l.b16 %v76
    %v184 = vunpack.c.l.b16 %v77
    %v185 = vunpack.c.l.b16 %v78
    %v186 = vunpack.c.l.b16 %v79
    %v187 = vunpack.c.l.b16 %v96
    %v188 = vpack.c.b16 %v152, %v151
    %v189 = vpack.c.b16 %v154, %v153
    %v190 = vpack.c.b16 %v156, %v155
    %v191 = vpack.c.b16 %v158, %v157
    %v192 = vpack.c.b16 %v160, %v159
    %v193 = vpack.c.b16 %v162, %v161
    %v194 = vpack.c.b16 %v164, %v163
    %v195 = vpack.c.b16 %v166, %v165
    %v196 = vpack.c.b16 %v168, %v167
    %v197 = vpack.c.b16 %v170, %v169
    %v198 = vpack.c.b16 %v172, %v171
    %v199 = vpack.c.b16 %v174, %v173
    %v200 = vpack.c.b16 %v176, %v175
    %v201 = vpack.c.b16 %v178, %v177
    %v202 = vpack.c.b16 %v180, %v179
    %v203 = vpack.c.b16 %v182, %v181
    %v204 = vpack.c.b16 %v184, %v183
    %v205 = vpack.c.b16 %v186, %v185
    %v206 = vpack.c.b16 %v187, %v187
    %vm207 = vsmask.f32 7424
    %v209 = vshrl.u32 %v188, 16
    %v211 = vshll.u32 %v188, 16
    %v213 = vrot.slane %v211, 1
    %v214 = vor.u32 %v209, %v213
    %v216 = vshll.u32 %v189, 16
    %v218 = vrot.slane %v216, 1
    %v219 = vsel %vm207, %v214, %v218
    %v220 = vshrl.u32 %v189, 16
    %v222 = vor.u32 %v220, %v218
    %v224 = vshll.u32 %v190, 16
    %v226 = vrot.slane %v224, 1
    %v227 = vsel %vm207, %v222, %v226
    %v228 = vshrl.u32 %v190, 16
    %v230 = vor.u32 %v228, %v226
    %v232 = vshll.u32 %v191, 16
    %v234 = vrot.slane %v232, 1
    %v235 = vsel %vm207, %v230, %v234
    %v236 = vshrl.u32 %v191, 16
    %v238 = vor.u32 %v236, %v234
    %v240 = vshll.u32 %v192, 16
    %v242 = vrot.slane %v240, 1
    %v243 = vsel %vm207, %v238, %v242
    %v244 = vshrl.u32 %v192, 16
    %v246 = vor.u32 %v244, %v242
    %v248 = vshll.u32 %v193, 16
    %v250 = vrot.slane %v248, 1
    %v251 = vsel %vm207, %v246, %v250
    %v252 = vshrl.u32 %v193, 16
    %v254 = vor.u32 %v252, %v250
    %v256 = vshll.u32 %v194, 16
    %v258 = vrot.slane %v256, 1
    %v259 = vsel %vm207, %v254, %v258
    %v260 = vshrl.u32 %v194, 16
    %v262 = vor.u32 %v260, %v258
    %v264 = vshll.u32 %v195, 16
    %v266 = vrot.slane %v264, 1
    %v267 = vsel %vm207, %v262, %v266
    %v268 = vshrl.u32 %v195, 16
    %v270 = vor.u32 %v268, %v266
    %v272 = vshll.u32 %v196, 16
    %v274 = vrot.slane %v272, 1
    %v275 = vsel %vm207, %v270, %v274
    %v276 = vshrl.u32 %v196, 16
    %v278 = vor.u32 %v276, %v274
    %v280 = vshll.u32 %v197, 16
    %v282 = vrot.slane %v280, 1
    %v283 = vsel %vm207, %v278, %v282
    %v284 = vshrl.u32 %v197, 16
    %v286 = vor.u32 %v284, %v282
    %v288 = vshll.u32 %v198, 16
    %v290 = vrot.slane %v288, 1
    %v291 = vsel %vm207, %v286, %v290
    %v292 = vshrl.u32 %v198, 16
    %v294 = vor.u32 %v292, %v290
    %v296 = vshll.u32 %v199, 16
    %v298 = vrot.slane %v296, 1
    %v299 = vsel %vm207, %v294, %v298
    %v300 = vshrl.u32 %v199, 16
    %v302 = vor.u32 %v300, %v298
    %v304 = vshll.u32 %v200, 16
    %v306 = vrot.slane %v304, 1
    %v307 = vsel %vm207, %v302, %v306
    %v308 = vshrl.u32 %v200, 16
    %v310 = vor.u32 %v308, %v306
    %v312 = vshll.u32 %v201, 16
    %v314 = vrot.slane %v312, 1
    %v315 = vsel %vm207, %v310, %v314
    %v316 = vshrl.u32 %v201, 16
    %v318 = vor.u32 %v316, %v314
    %v320 = vshll.u32 %v202, 16
    %v322 = vrot.slane %v320, 1
    %v323 = vsel %vm207, %v318, %v322
    %v324 = vshrl.u32 %v202, 16
    %v326 = vor.u32 %v324, %v322
    %v328 = vshll.u32 %v203, 16
    %v330 = vrot.slane %v328, 1
    %v331 = vsel %vm207, %v326, %v330
    %v332 = vshrl.u32 %v203, 16
    %v334 = vor.u32 %v332, %v330
    %v336 = vshll.u32 %v204, 16
    %v338 = vrot.slane %v336, 1
    %v339 = vsel %vm207, %v334, %v338
    %v340 = vshrl.u32 %v204, 16
    %v342 = vor.u32 %v340, %v338
    %v344 = vshll.u32 %v205, 16
    %v346 = vrot.slane %v344, 1
    %v347 = vsel %vm207, %v342, %v346
    %v348 = vshrl.u32 %v205, 16
    %v350 = vor.u32 %v348, %v346
    %v352 = vshll.u32 %v206, 16
    %v354 = vrot.slane %v352, 1
    %v355 = vsel %vm207, %v350, %v354
    %v390 = vunpack.c.l.b16 %v98
    %v391 = vunpack.c.l.b16 %v99
    %v392 = vunpack.c.l.b16 %v100
    %v393 = vunpack.c.l.b16 %v101
    %v394 = vunpack.c.l.b16 %v102
    %v395 = vunpack.c.l.b16 %v103
    %v396 = vunpack.c.l.b16 %v104
    %v397 = vunpack.c.l.b16 %v105
    %v398 = vunpack.c.l.b16 %v106
    %v399 = vunpack.c.l.b16 %v107
    %v400 = vunpack.c.l.b16 %v108
    %v401 = vunpack.c.l.b16 %v109
    %v402 = vunpack.c.l.b16 %v110
    %v403 = vunpack.c.l.b16 %v111
    %v404 = vunpack.c.l.b16 %v112
    %v405 = vunpack.c.l.b16 %v113
    %v406 = vpack.c.b16 %v391, %v390
    %v407 = vpack.c.b16 %v393, %v392
    %v408 = vpack.c.b16 %v395, %v394
    %v409 = vpack.c.b16 %v397, %v396
    %v410 = vpack.c.b16 %v399, %v398
    %v411 = vpack.c.b16 %v401, %v400
    %v412 = vpack.c.b16 %v403, %v402
    %v413 = vpack.c.b16 %v405, %v404
    %422 = vmatprep.subr.bf16.mxu0 0
    %423 = vmatpush1.bf16.msra.mxu0 %v406
    %424 = vmatprep.subr.bf16.mxu0 0
    %425 = vmatpush1.bf16.msra.mxu0 %v407
    %426 = vmatprep.subr.bf16.mxu0 0
    %427 = vmatpush1.bf16.msra.mxu0 %v408
    %428 = vmatprep.subr.bf16.mxu0 0
    %429 = vmatpush1.bf16.msra.mxu0 %v409
    %430 = vmatprep.subr.bf16.mxu0 0
    %431 = vmatpush1.bf16.msra.mxu0 %v410
    %432 = vmatprep.subr.bf16.mxu0 0
    %433 = vmatpush1.bf16.msra.mxu0 %v411
    %434 = vmatprep.subr.bf16.mxu0 0
    %435 = vmatpush1.bf16.msra.mxu0 %v412
    %436 = vmatprep.subr.bf16.mxu0 0
    %437 = vmatpush1.bf16.msra.mxu0 %v413
    %438 = vmatprep.subr.bf16.mxu0 0
    %439 = vmatpush1.bf16.msra.mxu0 0
    %440 = vmatprep.subr.bf16.mxu0 0
    %441 = vmatpush1.bf16.msra.mxu0 0
    %442 = vmatprep.subr.bf16.mxu0 0
    %443 = vmatpush1.bf16.msra.mxu0 0
    %444 = vmatprep.subr.bf16.mxu0 0
    %445 = vmatpush1.bf16.msra.mxu0 0
    %446 = vmatprep.subr.bf16.mxu0 0
    %447 = vmatpush1.bf16.msra.mxu0 0
    %448 = vmatprep.subr.bf16.mxu0 0
    %449 = vmatpush1.bf16.msra.mxu0 0
    %450 = vmatprep.subr.bf16.mxu0 0
    %451 = vmatpush1.bf16.msra.mxu0 0
    %452 = vmatprep.subr.bf16.mxu0 0
    %453 = vmatpush1.bf16.msra.mxu0 0
    %454 = vmatprep.mubr.bf16.mxu0 0
    %455 = vmatmul.mubr.bf16.gmra.mrb[0].mxu0 %v219
    %v456 = vpop.f32.mrb[0].mxu0
    %v457 = vadd.f32 0.0, %v456
    %v458 = vpop.f32.mrb[0].mxu0
    %v459 = vpop.f32.mrb[0].mxu0
    %v460 = vadd.f32 0.0, %v459
    %v461 = vpop.f32.mrb[0].mxu0
    %462 = vmatprep.mubr.bf16.mxu0 0
    %463 = vmatmul.mubr.bf16.gmra.mrb[0].mxu0 %v227
    %v464 = vpop.f32.mrb[0].mxu0
    %v465 = vadd.f32 0.0, %v464
    %v466 = vpop.f32.mrb[0].mxu0
    %v467 = vpop.f32.mrb[0].mxu0
    %v468 = vadd.f32 0.0, %v467
    %v469 = vpop.f32.mrb[0].mxu0
    %470 = vmatprep.mubr.bf16.mxu0 0
    %471 = vmatmul.mubr.bf16.gmra.mrb[0].mxu0 %v235
    %v472 = vpop.f32.mrb[0].mxu0
    %v473 = vadd.f32 0.0, %v472
    %v474 = vpop.f32.mrb[0].mxu0
    %v475 = vpop.f32.mrb[0].mxu0
    %v476 = vadd.f32 0.0, %v475
    %v477 = vpop.f32.mrb[0].mxu0
    %478 = vmatprep.mubr.bf16.mxu0 0
    %479 = vmatmul.mubr.bf16.gmra.mrb[0].mxu0 %v243
    %v480 = vpop.f32.mrb[0].mxu0
    %v481 = vadd.f32 0.0, %v480
    %v482 = vpop.f32.mrb[0].mxu0
    %v483 = vpop.f32.mrb[0].mxu0
    %v484 = vadd.f32 0.0, %v483
    %v485 = vpop.f32.mrb[0].mxu0
    %486 = vmatprep.mubr.bf16.mxu0 0
    %487 = vmatmul.mubr.bf16.gmra.mrb[0].mxu0 %v251
    %v488 = vpop.f32.mrb[0].mxu0
    %v489 = vadd.f32 0.0, %v488
    %v490 = vpop.f32.mrb[0].mxu0
    %v491 = vpop.f32.mrb[0].mxu0
    %v492 = vadd.f32 0.0, %v491
    %v493 = vpop.f32.mrb[0].mxu0
    %494 = vmatprep.mubr.bf16.mxu0 0
    %495 = vmatmul.mubr.bf16.gmra.mrb[0].mxu0 %v259
    %v496 = vpop.f32.mrb[0].mxu0
    %v497 = vadd.f32 0.0, %v496
    %v498 = vpop.f32.mrb[0].mxu0
    %v499 = vpop.f32.mrb[0].mxu0
    %v500 = vadd.f32 0.0, %v499
    %v501 = vpop.f32.mrb[0].mxu0
    %502 = vmatprep.mubr.bf16.mxu0 0
    %503 = vmatmul.mubr.bf16.gmra.mrb[0].mxu0 %v267
    %v504 = vpop.f32.mrb[0].mxu0
    %v505 = vadd.f32 0.0, %v504
    %v506 = vpop.f32.mrb[0].mxu0
    %v507 = vpop.f32.mrb[0].mxu0
    %v508 = vadd.f32 0.0, %v507
    %v509 = vpop.f32.mrb[0].mxu0
    %510 = vmatprep.mubr.bf16.mxu0 0
    %511 = vmatmul.mubr.bf16.gmra.mrb[0].mxu0 %v275
    %v512 = vpop.f32.mrb[0].mxu0
    %v513 = vadd.f32 0.0, %v512
    %v514 = vpop.f32.mrb[0].mxu0
    %v515 = vpop.f32.mrb[0].mxu0
    %v516 = vadd.f32 0.0, %v515
    %v517 = vpop.f32.mrb[0].mxu0
    %518 = vmatprep.mubr.bf16.mxu0 0
    %519 = vmatmul.mubr.bf16.gmra.mrb[0].mxu0 %v283
    %v520 = vpop.f32.mrb[0].mxu0
    %v521 = vadd.f32 0.0, %v520
    %v522 = vpop.f32.mrb[0].mxu0
    %v523 = vpop.f32.mrb[0].mxu0
    %v524 = vadd.f32 0.0, %v523
    %v525 = vpop.f32.mrb[0].mxu0
    %526 = vmatprep.mubr.bf16.mxu0 0
    %527 = vmatmul.mubr.bf16.gmra.mrb[0].mxu0 %v291
    %v528 = vpop.f32.mrb[0].mxu0
    %v529 = vadd.f32 0.0, %v528
    %v530 = vpop.f32.mrb[0].mxu0
    %v531 = vpop.f32.mrb[0].mxu0
    %v532 = vadd.f32 0.0, %v531
    %v533 = vpop.f32.mrb[0].mxu0
    %534 = vmatprep.mubr.bf16.mxu0 0
    %535 = vmatmul.mubr.bf16.gmra.mrb[0].mxu0 %v299
    %v536 = vpop.f32.mrb[0].mxu0
    %v537 = vadd.f32 0.0, %v536
    %v538 = vpop.f32.mrb[0].mxu0
    %v539 = vpop.f32.mrb[0].mxu0
    %v540 = vadd.f32 0.0, %v539
    %v541 = vpop.f32.mrb[0].mxu0
    %542 = vmatprep.mubr.bf16.mxu0 0
    %543 = vmatmul.mubr.bf16.gmra.mrb[0].mxu0 %v307
    %v544 = vpop.f32.mrb[0].mxu0
    %v545 = vadd.f32 0.0, %v544
    %v546 = vpop.f32.mrb[0].mxu0
    %v547 = vpop.f32.mrb[0].mxu0
    %v548 = vadd.f32 0.0, %v547
    %v549 = vpop.f32.mrb[0].mxu0
    %550 = vmatprep.mubr.bf16.mxu0 0
    %551 = vmatmul.mubr.bf16.gmra.mrb[0].mxu0 %v315
    %v552 = vpop.f32.mrb[0].mxu0
    %v553 = vadd.f32 0.0, %v552
    %v554 = vpop.f32.mrb[0].mxu0
    %v555 = vpop.f32.mrb[0].mxu0
    %v556 = vadd.f32 0.0, %v555
    %v557 = vpop.f32.mrb[0].mxu0
    %558 = vmatprep.mubr.bf16.mxu0 0
    %559 = vmatmul.mubr.bf16.gmra.mrb[0].mxu0 %v323
    %v560 = vpop.f32.mrb[0].mxu0
    %v561 = vadd.f32 0.0, %v560
    %v562 = vpop.f32.mrb[0].mxu0
    %v563 = vpop.f32.mrb[0].mxu0
    %v564 = vadd.f32 0.0, %v563
    %v565 = vpop.f32.mrb[0].mxu0
    %566 = vmatprep.mubr.bf16.mxu0 0
    %567 = vmatmul.mubr.bf16.gmra.mrb[0].mxu0 %v331
    %v568 = vpop.f32.mrb[0].mxu0
    %v569 = vadd.f32 0.0, %v568
    %v570 = vpop.f32.mrb[0].mxu0
    %v571 = vpop.f32.mrb[0].mxu0
    %v572 = vadd.f32 0.0, %v571
    %v573 = vpop.f32.mrb[0].mxu0
    %574 = vmatprep.mubr.bf16.mxu0 0
    %575 = vmatmul.mubr.bf16.gmra.mrb[0].mxu0 %v339
    %v576 = vpop.f32.mrb[0].mxu0
    %v577 = vadd.f32 0.0, %v576
    %v578 = vpop.f32.mrb[0].mxu0
    %v579 = vpop.f32.mrb[0].mxu0
    %v580 = vadd.f32 0.0, %v579
    %v581 = vpop.f32.mrb[0].mxu0
    %582 = vmatprep.mubr.bf16.mxu0 0
    %583 = vmatmul.mubr.bf16.gmra.mrb[0].mxu0 %v347
    %v584 = vpop.f32.mrb[0].mxu0
    %v585 = vadd.f32 0.0, %v584
    %v586 = vpop.f32.mrb[0].mxu0
    %v587 = vpop.f32.mrb[0].mxu0
    %v588 = vadd.f32 0.0, %v587
    %v589 = vpop.f32.mrb[0].mxu0
    %590 = vmatprep.mubr.bf16.mxu0 0
    %591 = vmatmul.mubr.bf16.gmra.mrb[0].mxu0 %v355
    %v592 = vpop.f32.mrb[0].mxu0
    %v593 = vadd.f32 0.0, %v592
    %v594 = vpop.f32.mrb[0].mxu0
    %v595 = vpop.f32.mrb[0].mxu0
    %v596 = vadd.f32 0.0, %v595
    %v597 = vpop.f32.mrb[0].mxu0
    %598 = vdwg.mxu0
    %v633 = vunpack.c.l.b16 %v80
    %v634 = vunpack.c.l.b16 %v81
    %v635 = vunpack.c.l.b16 %v82
    %v636 = vunpack.c.l.b16 %v83
    %v637 = vunpack.c.l.b16 %v84
    %v638 = vunpack.c.l.b16 %v85
    %v639 = vunpack.c.l.b16 %v86
    %v640 = vunpack.c.l.b16 %v87
    %v641 = vunpack.c.l.b16 %v88
    %v642 = vunpack.c.l.b16 %v89
    %v643 = vunpack.c.l.b16 %v90
    %v644 = vunpack.c.l.b16 %v91
    %v645 = vunpack.c.l.b16 %v92
    %v646 = vunpack.c.l.b16 %v93
    %v647 = vunpack.c.l.b16 %v94
    %v648 = vunpack.c.l.b16 %v95
    %v649 = vpack.c.b16 %v634, %v633
    %v650 = vpack.c.b16 %v636, %v635
    %v651 = vpack.c.b16 %v638, %v637
    %v652 = vpack.c.b16 %v640, %v639
    %v653 = vpack.c.b16 %v642, %v641
    %v654 = vpack.c.b16 %v644, %v643
    %v655 = vpack.c.b16 %v646, %v645
    %v656 = vpack.c.b16 %v648, %v647
    %665 = vmatprep.subr.bf16.mxu0 0
    %666 = vmatpush1.bf16.msra.mxu0 %v649
    %667 = vmatprep.subr.bf16.mxu0 0
    %668 = vmatpush1.bf16.msra.mxu0 %v650
    %669 = vmatprep.subr.bf16.mxu0 0
    %670 = vmatpush1.bf16.msra.mxu0 %v651
    %671 = vmatprep.subr.bf16.mxu0 0
    %672 = vmatpush1.bf16.msra.mxu0 %v652
    %673 = vmatprep.subr.bf16.mxu0 0
    %674 = vmatpush1.bf16.msra.mxu0 %v653
    %675 = vmatprep.subr.bf16.mxu0 0
    %676 = vmatpush1.bf16.msra.mxu0 %v654
    %677 = vmatprep.subr.bf16.mxu0 0
    %678 = vmatpush1.bf16.msra.mxu0 %v655
    %679 = vmatprep.subr.bf16.mxu0 0
    %680 = vmatpush1.bf16.msra.mxu0 %v656
    %681 = vmatprep.subr.bf16.mxu0 0
    %682 = vmatpush1.bf16.msra.mxu0 0
    %683 = vmatprep.subr.bf16.mxu0 0
    %684 = vmatpush1.bf16.msra.mxu0 0
    %685 = vmatprep.subr.bf16.mxu0 0
    %686 = vmatpush1.bf16.msra.mxu0 0
    %687 = vmatprep.subr.bf16.mxu0 0
    %688 = vmatpush1.bf16.msra.mxu0 0
    %689 = vmatprep.subr.bf16.mxu0 0
    %690 = vmatpush1.bf16.msra.mxu0 0
    %691 = vmatprep.subr.bf16.mxu0 0
    %692 = vmatpush1.bf16.msra.mxu0 0
    %693 = vmatprep.subr.bf16.mxu0 0
    %694 = vmatpush1.bf16.msra.mxu0 0
    %695 = vmatprep.subr.bf16.mxu0 0
    %696 = vmatpush1.bf16.msra.mxu0 0
    %697 = vmatprep.mubr.bf16.mxu0 0
    %698 = vmatmul.mubr.bf16.gmra.mrb[0].mxu0 %v188
    %v699 = vpop.f32.mrb[0].mxu0
    %v700 = vadd.f32 %v457, %v699
    %v701 = vpop.f32.mrb[0].mxu0
    %v702 = vpop.f32.mrb[0].mxu0
    %v703 = vadd.f32 %v460, %v702
    %v704 = vpop.f32.mrb[0].mxu0
    %705 = vmatprep.mubr.bf16.mxu0 0
    %706 = vmatmul.mubr.bf16.gmra.mrb[0].mxu0 %v189
    %v707 = vpop.f32.mrb[0].mxu0
    %v708 = vadd.f32 %v465, %v707
    %v709 = vpop.f32.mrb[0].mxu0
    %v710 = vpop.f32.mrb[0].mxu0
    %v711 = vadd.f32 %v468, %v710
    %v712 = vpop.f32.mrb[0].mxu0
    %713 = vmatprep.mubr.bf16.mxu0 0
    %714 = vmatmul.mubr.bf16.gmra.mrb[0].mxu0 %v190
    %v715 = vpop.f32.mrb[0].mxu0
    %v716 = vadd.f32 %v473, %v715
    %v717 = vpop.f32.mrb[0].mxu0
    %v718 = vpop.f32.mrb[0].mxu0
    %v719 = vadd.f32 %v476, %v718
    %v720 = vpop.f32.mrb[0].mxu0
    %721 = vmatprep.mubr.bf16.mxu0 0
    %722 = vmatmul.mubr.bf16.gmra.mrb[0].mxu0 %v191
    %v723 = vpop.f32.mrb[0].mxu0
    %v724 = vadd.f32 %v481, %v723
    %v725 = vpop.f32.mrb[0].mxu0
    %v726 = vpop.f32.mrb[0].mxu0
    %v727 = vadd.f32 %v484, %v726
    %v728 = vpop.f32.mrb[0].mxu0
    %729 = vmatprep.mubr.bf16.mxu0 0
    %730 = vmatmul.mubr.bf16.gmra.mrb[0].mxu0 %v192
    %v731 = vpop.f32.mrb[0].mxu0
    %v732 = vadd.f32 %v489, %v731
    %v733 = vpop.f32.mrb[0].mxu0
    %v734 = vpop.f32.mrb[0].mxu0
    %v735 = vadd.f32 %v492, %v734
    %v736 = vpop.f32.mrb[0].mxu0
    %737 = vmatprep.mubr.bf16.mxu0 0
    %738 = vmatmul.mubr.bf16.gmra.mrb[0].mxu0 %v193
    %v739 = vpop.f32.mrb[0].mxu0
    %v740 = vadd.f32 %v497, %v739
    %v741 = vpop.f32.mrb[0].mxu0
    %v742 = vpop.f32.mrb[0].mxu0
    %v743 = vadd.f32 %v500, %v742
    %v744 = vpop.f32.mrb[0].mxu0
    %745 = vmatprep.mubr.bf16.mxu0 0
    %746 = vmatmul.mubr.bf16.gmra.mrb[0].mxu0 %v194
    %v747 = vpop.f32.mrb[0].mxu0
    %v748 = vadd.f32 %v505, %v747
    %v749 = vpop.f32.mrb[0].mxu0
    %v750 = vpop.f32.mrb[0].mxu0
    %v751 = vadd.f32 %v508, %v750
    %v752 = vpop.f32.mrb[0].mxu0
    %753 = vmatprep.mubr.bf16.mxu0 0
    %754 = vmatmul.mubr.bf16.gmra.mrb[0].mxu0 %v195
    %v755 = vpop.f32.mrb[0].mxu0
    %v756 = vadd.f32 %v513, %v755
    %v757 = vpop.f32.mrb[0].mxu0
    %v758 = vpop.f32.mrb[0].mxu0
    %v759 = vadd.f32 %v516, %v758
    %v760 = vpop.f32.mrb[0].mxu0
    %761 = vmatprep.mubr.bf16.mxu0 0
    %762 = vmatmul.mubr.bf16.gmra.mrb[0].mxu0 %v196
    %v763 = vpop.f32.mrb[0].mxu0
    %v764 = vadd.f32 %v521, %v763
    %v765 = vpop.f32.mrb[0].mxu0
    %v766 = vpop.f32.mrb[0].mxu0
    %v767 = vadd.f32 %v524, %v766
    %v768 = vpop.f32.mrb[0].mxu0
    %769 = vmatprep.mubr.bf16.mxu0 0
    %770 = vmatmul.mubr.bf16.gmra.mrb[0].mxu0 %v197
    %v771 = vpop.f32.mrb[0].mxu0
    %v772 = vadd.f32 %v529, %v771
    %v773 = vpop.f32.mrb[0].mxu0
    %v774 = vpop.f32.mrb[0].mxu0
    %v775 = vadd.f32 %v532, %v774
    %v776 = vpop.f32.mrb[0].mxu0
    %777 = vmatprep.mubr.bf16.mxu0 0
    %778 = vmatmul.mubr.bf16.gmra.mrb[0].mxu0 %v198
    %v779 = vpop.f32.mrb[0].mxu0
    %v780 = vadd.f32 %v537, %v779
    %v781 = vpop.f32.mrb[0].mxu0
    %v782 = vpop.f32.mrb[0].mxu0
    %v783 = vadd.f32 %v540, %v782
    %v784 = vpop.f32.mrb[0].mxu0
    %785 = vmatprep.mubr.bf16.mxu0 0
    %786 = vmatmul.mubr.bf16.gmra.mrb[0].mxu0 %v199
    %v787 = vpop.f32.mrb[0].mxu0
    %v788 = vadd.f32 %v545, %v787
    %v789 = vpop.f32.mrb[0].mxu0
    %v790 = vpop.f32.mrb[0].mxu0
    %v791 = vadd.f32 %v548, %v790
    %v792 = vpop.f32.mrb[0].mxu0
    %793 = vmatprep.mubr.bf16.mxu0 0
    %794 = vmatmul.mubr.bf16.gmra.mrb[0].mxu0 %v200
    %v795 = vpop.f32.mrb[0].mxu0
    %v796 = vadd.f32 %v553, %v795
    %v797 = vpop.f32.mrb[0].mxu0
    %v798 = vpop.f32.mrb[0].mxu0
    %v799 = vadd.f32 %v556, %v798
    %v800 = vpop.f32.mrb[0].mxu0
    %801 = vmatprep.mubr.bf16.mxu0 0
    %802 = vmatmul.mubr.bf16.gmra.mrb[0].mxu0 %v201
    %v803 = vpop.f32.mrb[0].mxu0
    %v804 = vadd.f32 %v561, %v803
    %v805 = vpop.f32.mrb[0].mxu0
    %v806 = vpop.f32.mrb[0].mxu0
    %v807 = vadd.f32 %v564, %v806
    %v808 = vpop.f32.mrb[0].mxu0
    %809 = vmatprep.mubr.bf16.mxu0 0
    %810 = vmatmul.mubr.bf16.gmra.mrb[0].mxu0 %v202
    %v811 = vpop.f32.mrb[0].mxu0
    %v812 = vadd.f32 %v569, %v811
    %v813 = vpop.f32.mrb[0].mxu0
    %v814 = vpop.f32.mrb[0].mxu0
    %v815 = vadd.f32 %v572, %v814
    %v816 = vpop.f32.mrb[0].mxu0
    %817 = vmatprep.mubr.bf16.mxu0 0
    %818 = vmatmul.mubr.bf16.gmra.mrb[0].mxu0 %v203
    %v819 = vpop.f32.mrb[0].mxu0
    %v820 = vadd.f32 %v577, %v819
    %v821 = vpop.f32.mrb[0].mxu0
    %v822 = vpop.f32.mrb[0].mxu0
    %v823 = vadd.f32 %v580, %v822
    %v824 = vpop.f32.mrb[0].mxu0
    %825 = vmatprep.mubr.bf16.mxu0 0
    %826 = vmatmul.mubr.bf16.gmra.mrb[0].mxu0 %v204
    %v827 = vpop.f32.mrb[0].mxu0
    %v828 = vadd.f32 %v585, %v827
    %v829 = vpop.f32.mrb[0].mxu0
    %v830 = vpop.f32.mrb[0].mxu0
    %v831 = vadd.f32 %v588, %v830
    %v832 = vpop.f32.mrb[0].mxu0
    %833 = vmatprep.mubr.bf16.mxu0 0
    %834 = vmatmul.mubr.bf16.gmra.mrb[0].mxu0 %v205
    %v835 = vpop.f32.mrb[0].mxu0
    %v836 = vadd.f32 %v593, %v835
    %v837 = vpop.f32.mrb[0].mxu0
    %v838 = vpop.f32.mrb[0].mxu0
    %v839 = vadd.f32 %v596, %v838
    %v840 = vpop.f32.mrb[0].mxu0
    %841 = vdwg.mxu0
    %v842 = vld [vmem:[#allocation2] sm:$0xe]
    %s843 = scalar_lea.vmem [#allocation5], 128
    %v844 = vld [vmem:[%s843] sm:$0xf]
    %v845 = vld [vmem:[%s843 + $0x4] sm:$0xf]
    %v846 = vld [vmem:[%s843 + $0x8] sm:$0xf]
    %v847 = vld [vmem:[%s843 + $0xc] sm:$0xf]
    %v848 = vld [vmem:[%s843 + $0x10] sm:$0xf]
    %v849 = vld [vmem:[%s843 + $0x14] sm:$0xf]
    %v850 = vld [vmem:[%s843 + $0x18] sm:$0xf]
    %v851 = vld [vmem:[%s843 + $0x1c] sm:$0xf]
    %v852 = vld [vmem:[%s843 + $0x20] sm:$0xf]
    %v853 = vld [vmem:[%s843 + $0x24] sm:$0xf]
    %v854 = vld [vmem:[%s843 + $0x28] sm:$0xf]
    %v855 = vld [vmem:[%s843 + $0x2c] sm:$0xf]
    %v856 = vld [vmem:[%s843 + $0x30] sm:$0xf]
    %v857 = vld [vmem:[%s843 + $0x34] sm:$0xf]
    %v858 = vld [vmem:[%s843 + $0x38] sm:$0xf]
    %v859 = vld [vmem:[%s843 + $0x3c] sm:$0xf]
    %v861 = vunpack.c.l.b16 %v842
    %v862 = vpack.c.b16 %v152, %v861
    %vm863 = vcmask 1046528
    %v864 = vrot.slane %v862, 1
    %v865 = vrot.slane %v189, 1
    %v866 = vsel %vm863, %v864, %v865
    %v867 = vrot.slane %v190, 1
    %v868 = vsel %vm863, %v865, %v867
    %v869 = vrot.slane %v191, 1
    %v870 = vsel %vm863, %v867, %v869
    %v871 = vrot.slane %v192, 1
    %v872 = vsel %vm863, %v869, %v871
    %v873 = vrot.slane %v193, 1
    %v874 = vsel %vm863, %v871, %v873
    %v875 = vrot.slane %v194, 1
    %v876 = vsel %vm863, %v873, %v875
    %v877 = vrot.slane %v195, 1
    %v878 = vsel %vm863, %v875, %v877
    %v879 = vrot.slane %v196, 1
    %v880 = vsel %vm863, %v877, %v879
    %v881 = vrot.slane %v197, 1
    %v882 = vsel %vm863, %v879, %v881
    %v883 = vrot.slane %v198, 1
    %v884 = vsel %vm863, %v881, %v883
    %v885 = vrot.slane %v199, 1
    %v886 = vsel %vm863, %v883, %v885
    %v887 = vrot.slane %v200, 1
    %v888 = vsel %vm863, %v885, %v887
    %v889 = vrot.slane %v201, 1
    %v890 = vsel %vm863, %v887, %v889
    %v891 = vrot.slane %v202, 1
    %v892 = vsel %vm863, %v889, %v891
    %v893 = vrot.slane %v203, 1
    %v894 = vsel %vm863, %v891, %v893
    %v895 = vrot.slane %v204, 1
    %v896 = vsel %vm863, %v893, %v895
    %v897 = vrot.slane %v205, 1
    %v898 = vsel %vm863, %v895, %v897
    %v899 = vrot.slane %v206, 1
    %v900 = vsel %vm863, %v897, %v899
    %v935 = vunpack.c.l.b16 %v844
    %v936 = vunpack.c.l.b16 %v845
    %v937 = vunpack.c.l.b16 %v846
    %v938 = vunpack.c.l.b16 %v847
    %v939 = vunpack.c.l.b16 %v848
    %v940 = vunpack.c.l.b16 %v849
    %v941 = vunpack.c.l.b16 %v850
    %v942 = vunpack.c.l.b16 %v851
    %v943 = vunpack.c.l.b16 %v852
    %v944 = vunpack.c.l.b16 %v853
    %v945 = vunpack.c.l.b16 %v854
    %v946 = vunpack.c.l.b16 %v855
    %v947 = vunpack.c.l.b16 %v856
    %v948 = vunpack.c.l.b16 %v857
    %v949 = vunpack.c.l.b16 %v858
    %v950 = vunpack.c.l.b16 %v859
    %v951 = vpack.c.b16 %v936, %v935
    %v952 = vpack.c.b16 %v938, %v937
    %v953 = vpack.c.b16 %v940, %v939
    %v954 = vpack.c.b16 %v942, %v941
    %v955 = vpack.c.b16 %v944, %v943
    %v956 = vpack.c.b16 %v946, %v945
    %v957 = vpack.c.b16 %v948, %v947
    %v958 = vpack.c.b16 %v950, %v949
    %967 = vmatprep.subr.bf16.mxu0 0
    %968 = vmatpush1.bf16.msra.mxu0 %v951
    %969 = vmatprep.subr.bf16.mxu0 0
    %970 = vmatpush1.bf16.msra.mxu0 %v952
    %971 = vmatprep.subr.bf16.mxu0 0
    %972 = vmatpush1.bf16.msra.mxu0 %v953
    %973 = vmatprep.subr.bf16.mxu0 0
    %974 = vmatpush1.bf16.msra.mxu0 %v954
    %975 = vmatprep.subr.bf16.mxu0 0
    %976 = vmatpush1.bf16.msra.mxu0 %v955
    %977 = vmatprep.subr.bf16.mxu0 0
    %978 = vmatpush1.bf16.msra.mxu0 %v956
    %979 = vmatprep.subr.bf16.mxu0 0
    %980 = vmatpush1.bf16.msra.mxu0 %v957
    %981 = vmatprep.subr.bf16.mxu0 0
    %982 = vmatpush1.bf16.msra.mxu0 %v958
    %983 = vmatprep.subr.bf16.mxu0 0
    %984 = vmatpush1.bf16.msra.mxu0 0
    %985 = vmatprep.subr.bf16.mxu0 0
    %986 = vmatpush1.bf16.msra.mxu0 0
    %987 = vmatprep.subr.bf16.mxu0 0
    %988 = vmatpush1.bf16.msra.mxu0 0
    %989 = vmatprep.subr.bf16.mxu0 0
    %990 = vmatpush1.bf16.msra.mxu0 0
    %991 = vmatprep.subr.bf16.mxu0 0
    %992 = vmatpush1.bf16.msra.mxu0 0
    %993 = vmatprep.subr.bf16.mxu0 0
    %994 = vmatpush1.bf16.msra.mxu0 0
    %995 = vmatprep.subr.bf16.mxu0 0
    %996 = vmatpush1.bf16.msra.mxu0 0
    %997 = vmatprep.subr.bf16.mxu0 0
    %998 = vmatpush1.bf16.msra.mxu0 0
    %999 = vmatprep.mubr.bf16.mxu0 0
    %1000 = vmatmul.mubr.bf16.gmra.mrb[0].mxu0 %v866
    %v1001 = vpop.f32.mrb[0].mxu0
    %v1002 = vadd.f32 0.0, %v1001
    %v1003 = vpop.f32.mrb[0].mxu0
    %v1004 = vpop.f32.mrb[0].mxu0
    %v1005 = vadd.f32 0.0, %v1004
    %v1006 = vpop.f32.mrb[0].mxu0
    %1007 = vmatprep.mubr.bf16.mxu0 0
    %1008 = vmatmul.mubr.bf16.gmra.mrb[0].mxu0 %v868
    %v1009 = vpop.f32.mrb[0].mxu0
    %v1010 = vadd.f32 0.0, %v1009
    %v1011 = vpop.f32.mrb[0].mxu0
    %v1012 = vpop.f32.mrb[0].mxu0
    %v1013 = vadd.f32 0.0, %v1012
    %v1014 = vpop.f32.mrb[0].mxu0
    %1015 = vmatprep.mubr.bf16.mxu0 0
    %1016 = vmatmul.mubr.bf16.gmra.mrb[0].mxu0 %v870
    %v1017 = vpop.f32.mrb[0].mxu0
    %v1018 = vadd.f32 0.0, %v1017
    %v1019 = vpop.f32.mrb[0].mxu0
    %v1020 = vpop.f32.mrb[0].mxu0
    %v1021 = vadd.f32 0.0, %v1020
    %v1022 = vpop.f32.mrb[0].mxu0
    %1023 = vmatprep.mubr.bf16.mxu0 0
    %1024 = vmatmul.mubr.bf16.gmra.mrb[0].mxu0 %v872
    %v1025 = vpop.f32.mrb[0].mxu0
    %v1026 = vadd.f32 0.0, %v1025
    %v1027 = vpop.f32.mrb[0].mxu0
    %v1028 = vpop.f32.mrb[0].mxu0
    %v1029 = vadd.f32 0.0, %v1028
    %v1030 = vpop.f32.mrb[0].mxu0
    %1031 = vmatprep.mubr.bf16.mxu0 0
    %1032 = vmatmul.mubr.bf16.gmra.mrb[0].mxu0 %v874
    %v1033 = vpop.f32.mrb[0].mxu0
    %v1034 = vadd.f32 0.0, %v1033
    %v1035 = vpop.f32.mrb[0].mxu0
    %v1036 = vpop.f32.mrb[0].mxu0
    %v1037 = vadd.f32 0.0, %v1036
    %v1038 = vpop.f32.mrb[0].mxu0
    %1039 = vmatprep.mubr.bf16.mxu0 0
    %1040 = vmatmul.mubr.bf16.gmra.mrb[0].mxu0 %v876
    %v1041 = vpop.f32.mrb[0].mxu0
    %v1042 = vadd.f32 0.0, %v1041
    %v1043 = vpop.f32.mrb[0].mxu0
    %v1044 = vpop.f32.mrb[0].mxu0
    %v1045 = vadd.f32 0.0, %v1044
    %v1046 = vpop.f32.mrb[0].mxu0
    %1047 = vmatprep.mubr.bf16.mxu0 0
    %1048 = vmatmul.mubr.bf16.gmra.mrb[0].mxu0 %v878
    %v1049 = vpop.f32.mrb[0].mxu0
    %v1050 = vadd.f32 0.0, %v1049
    %v1051 = vpop.f32.mrb[0].mxu0
    %v1052 = vpop.f32.mrb[0].mxu0
    %v1053 = vadd.f32 0.0, %v1052
    %v1054 = vpop.f32.mrb[0].mxu0
    %1055 = vmatprep.mubr.bf16.mxu0 0
    %1056 = vmatmul.mubr.bf16.gmra.mrb[0].mxu0 %v880
    %v1057 = vpop.f32.mrb[0].mxu0
    %v1058 = vadd.f32 0.0, %v1057
    %v1059 = vpop.f32.mrb[0].mxu0
    %v1060 = vpop.f32.mrb[0].mxu0
    %v1061 = vadd.f32 0.0, %v1060
    %v1062 = vpop.f32.mrb[0].mxu0
    %1063 = vmatprep.mubr.bf16.mxu0 0
    %1064 = vmatmul.mubr.bf16.gmra.mrb[0].mxu0 %v882
    %v1065 = vpop.f32.mrb[0].mxu0
    %v1066 = vadd.f32 0.0, %v1065
    %v1067 = vpop.f32.mrb[0].mxu0
    %v1068 = vpop.f32.mrb[0].mxu0
    %v1069 = vadd.f32 0.0, %v1068
    %v1070 = vpop.f32.mrb[0].mxu0
    %1071 = vmatprep.mubr.bf16.mxu0 0
    %1072 = vmatmul.mubr.bf16.gmra.mrb[0].mxu0 %v884
    %v1073 = vpop.f32.mrb[0].mxu0
    %v1074 = vadd.f32 0.0, %v1073
    %v1075 = vpop.f32.mrb[0].mxu0
    %v1076 = vpop.f32.mrb[0].mxu0
    %v1077 = vadd.f32 0.0, %v1076
    %v1078 = vpop.f32.mrb[0].mxu0
    %1079 = vmatprep.mubr.bf16.mxu0 0
    %1080 = vmatmul.mubr.bf16.gmra.mrb[0].mxu0 %v886
    %v1081 = vpop.f32.mrb[0].mxu0
    %v1082 = vadd.f32 0.0, %v1081
    %v1083 = vpop.f32.mrb[0].mxu0
    %v1084 = vpop.f32.mrb[0].mxu0
    %v1085 = vadd.f32 0.0, %v1084
    %v1086 = vpop.f32.mrb[0].mxu0
    %1087 = vmatprep.mubr.bf16.mxu0 0
    %1088 = vmatmul.mubr.bf16.gmra.mrb[0].mxu0 %v888
    %v1089 = vpop.f32.mrb[0].mxu0
    %v1090 = vadd.f32 0.0, %v1089
    %v1091 = vpop.f32.mrb[0].mxu0
    %v1092 = vpop.f32.mrb[0].mxu0
    %v1093 = vadd.f32 0.0, %v1092
    %v1094 = vpop.f32.mrb[0].mxu0
    %1095 = vmatprep.mubr.bf16.mxu0 0
    %1096 = vmatmul.mubr.bf16.gmra.mrb[0].mxu0 %v890
    %v1097 = vpop.f32.mrb[0].mxu0
    %v1098 = vadd.f32 0.0, %v1097
    %v1099 = vpop.f32.mrb[0].mxu0
    %v1100 = vpop.f32.mrb[0].mxu0
    %v1101 = vadd.f32 0.0, %v1100
    %v1102 = vpop.f32.mrb[0].mxu0
    %1103 = vmatprep.mubr.bf16.mxu0 0
    %1104 = vmatmul.mubr.bf16.gmra.mrb[0].mxu0 %v892
    %v1105 = vpop.f32.mrb[0].mxu0
    %v1106 = vadd.f32 0.0, %v1105
    %v1107 = vpop.f32.mrb[0].mxu0
    %v1108 = vpop.f32.mrb[0].mxu0
    %v1109 = vadd.f32 0.0, %v1108
    %v1110 = vpop.f32.mrb[0].mxu0
    %1111 = vmatprep.mubr.bf16.mxu0 0
    %1112 = vmatmul.mubr.bf16.gmra.mrb[0].mxu0 %v894
    %v1113 = vpop.f32.mrb[0].mxu0
    %v1114 = vadd.f32 0.0, %v1113
    %v1115 = vpop.f32.mrb[0].mxu0
    %v1116 = vpop.f32.mrb[0].mxu0
    %v1117 = vadd.f32 0.0, %v1116
    %v1118 = vpop.f32.mrb[0].mxu0
    %1119 = vmatprep.mubr.bf16.mxu0 0
    %1120 = vmatmul.mubr.bf16.gmra.mrb[0].mxu0 %v896
    %v1121 = vpop.f32.mrb[0].mxu0
    %v1122 = vadd.f32 0.0, %v1121
    %v1123 = vpop.f32.mrb[0].mxu0
    %v1124 = vpop.f32.mrb[0].mxu0
    %v1125 = vadd.f32 0.0, %v1124
    %v1126 = vpop.f32.mrb[0].mxu0
    %1127 = vmatprep.mubr.bf16.mxu0 0
    %1128 = vmatmul.mubr.bf16.gmra.mrb[0].mxu0 %v898
    %v1129 = vpop.f32.mrb[0].mxu0
    %v1130 = vadd.f32 0.0, %v1129
    %v1131 = vpop.f32.mrb[0].mxu0
    %v1132 = vpop.f32.mrb[0].mxu0
    %v1133 = vadd.f32 0.0, %v1132
    %v1134 = vpop.f32.mrb[0].mxu0
    %1135 = vmatprep.mubr.bf16.mxu0 0
    %1136 = vmatmul.mubr.bf16.gmra.mrb[0].mxu0 %v900
    %v1137 = vpop.f32.mrb[0].mxu0
    %v1138 = vadd.f32 0.0, %v1137
    %v1139 = vpop.f32.mrb[0].mxu0
    %v1140 = vpop.f32.mrb[0].mxu0
    %v1141 = vadd.f32 0.0, %v1140
    %v1142 = vpop.f32.mrb[0].mxu0
    %1143 = vdwg.mxu0
    %v1144 = vadd.f32 %v700, %v1002
    %v1145 = vadd.f32 %v703, %v1005
    %v1146 = vadd.f32 %v708, %v1010
    %v1147 = vadd.f32 %v711, %v1013
    %v1148 = vadd.f32 %v716, %v1018
    %v1149 = vadd.f32 %v719, %v1021
    %v1150 = vadd.f32 %v724, %v1026
    %v1151 = vadd.f32 %v727, %v1029
    %v1152 = vadd.f32 %v732, %v1034
    %v1153 = vadd.f32 %v735, %v1037
    %v1154 = vadd.f32 %v740, %v1042
    %v1155 = vadd.f32 %v743, %v1045
    %v1156 = vadd.f32 %v748, %v1050
    %v1157 = vadd.f32 %v751, %v1053
    %v1158 = vadd.f32 %v756, %v1058
    %v1159 = vadd.f32 %v759, %v1061
    %v1160 = vadd.f32 %v764, %v1066
    %v1161 = vadd.f32 %v767, %v1069
    %v1162 = vadd.f32 %v772, %v1074
    %v1163 = vadd.f32 %v775, %v1077
    %v1164 = vadd.f32 %v780, %v1082
    %v1165 = vadd.f32 %v783, %v1085
    %v1166 = vadd.f32 %v788, %v1090
    %v1167 = vadd.f32 %v791, %v1093
    %v1168 = vadd.f32 %v796, %v1098
    %v1169 = vadd.f32 %v799, %v1101
    %v1170 = vadd.f32 %v804, %v1106
    %v1171 = vadd.f32 %v807, %v1109
    %v1172 = vadd.f32 %v812, %v1114
    %v1173 = vadd.f32 %v815, %v1117
    %v1174 = vadd.f32 %v820, %v1122
    %v1175 = vadd.f32 %v823, %v1125
    %v1176 = vadd.f32 %v828, %v1130
    %v1177 = vadd.f32 %v831, %v1133
    %v1178 = vadd.f32 %v836, %v1138
    %v1179 = vadd.f32 %v839, %v1141
    %v1180 = vld [vmem:[#allocation2 + $0x8] sm:$0xe]
    %v1181 = vld [vmem:[#allocation2 + $0xc] sm:$0xf]
    %v1182 = vld [vmem:[#allocation2 + $0x10] sm:$0xf]
    %v1183 = vld [vmem:[#allocation2 + $0x14] sm:$0xf]
    %v1184 = vld [vmem:[#allocation2 + $0x18] sm:$0xf]
    %v1185 = vld [vmem:[#allocation2 + $0x1c] sm:$0xf]
    %v1186 = vld [vmem:[#allocation2 + $0x20] sm:$0xf]
    %v1187 = vld [vmem:[#allocation2 + $0x24] sm:$0xf]
    %v1188 = vld [vmem:[#allocation2 + $0x28] sm:$0xf]
    %v1189 = vld [vmem:[#allocation2 + $0x2c] sm:$0xf]
    %v1190 = vld [vmem:[#allocation2 + $0x30] sm:$0xf]
    %v1191 = vld [vmem:[#allocation2 + $0x34] sm:$0xf]
    %v1192 = vld [vmem:[#allocation2 + $0x38] sm:$0xf]
    %v1193 = vld [vmem:[#allocation2 + $0x3c] sm:$0xf]
    %v1194 = vld [vmem:[#allocation2 + $0x40] sm:$0xf]
    %v1195 = vld [vmem:[#allocation2 + $0x44] sm:$0xf]
    %v1196 = vld [vmem:[#allocation2 + $0x48] sm:$0xf]
    %v1197 = vld [vmem:[#allocation2 + $0x4c] sm:$0xf]
    %v1198 = vld [vmem:[#allocation2 + $0x50] sm:$0xf]
    %v1199 = vld [vmem:[#allocation2 + $0x54] sm:$0xf]
    %v1200 = vld [vmem:[#allocation2 + $0x58] sm:$0xf]
    %v1201 = vld [vmem:[#allocation2 + $0x5c] sm:$0xf]
    %v1202 = vld [vmem:[#allocation2 + $0x60] sm:$0xf]
    %v1203 = vld [vmem:[#allocation2 + $0x64] sm:$0xf]
    %v1204 = vld [vmem:[#allocation2 + $0x68] sm:$0xf]
    %v1205 = vld [vmem:[#allocation2 + $0x6c] sm:$0xf]
    %v1206 = vld [vmem:[#allocation2 + $0x70] sm:$0xf]
    %v1207 = vld [vmem:[#allocation2 + $0x74] sm:$0xf]
    %v1208 = vld [vmem:[#allocation2 + $0x78] sm:$0xf]
    %v1209 = vld [vmem:[#allocation2 + $0x7c] sm:$0xf]
    %v1210 = vld [vmem:[#allocation2 + $0x80] sm:$0xf]
    %v1211 = vld [vmem:[#allocation2 + $0x84] sm:$0xf]
    %v1212 = vld [vmem:[#allocation2 + $0x88] sm:$0xf]
    %v1213 = vld [vmem:[#allocation2 + $0x8c] sm:$0xf]
    %v1214 = vld [vmem:[#allocation2 + $0x90] sm:$0xf]
    %v1215 = vld [vmem:[#allocation2 + $0x94] sm:$0xf]
    %v1216 = vld [vmem:[#allocation2 + $0x98] sm:$0x1]
    %s1217 = scalar_lea.vmem [#allocation5], 192
    %v1218 = vld [vmem:[%s1217] sm:$0xf]
    %v1219 = vld [vmem:[%s1217 + $0x4] sm:$0xf]
    %v1220 = vld [vmem:[%s1217 + $0x8] sm:$0xf]
    %v1221 = vld [vmem:[%s1217 + $0xc] sm:$0xf]
    %v1222 = vld [vmem:[%s1217 + $0x10] sm:$0xf]
    %v1223 = vld [vmem:[%s1217 + $0x14] sm:$0xf]
    %v1224 = vld [vmem:[%s1217 + $0x18] sm:$0xf]
    %v1225 = vld [vmem:[%s1217 + $0x1c] sm:$0xf]
    %v1226 = vld [vmem:[%s1217 + $0x20] sm:$0xf]
    %v1227 = vld [vmem:[%s1217 + $0x24] sm:$0xf]
    %v1228 = vld [vmem:[%s1217 + $0x28] sm:$0xf]
    %v1229 = vld [vmem:[%s1217 + $0x2c] sm:$0xf]
    %v1230 = vld [vmem:[%s1217 + $0x30] sm:$0xf]
    %v1231 = vld [vmem:[%s1217 + $0x34] sm:$0xf]
    %v1232 = vld [vmem:[%s1217 + $0x38] sm:$0xf]
    %v1233 = vld [vmem:[%s1217 + $0x3c] sm:$0xf]
    %v1271 = vunpack.c.l.b16 %v1180
    %v1272 = vunpack.c.l.b16 %v1181
    %v1273 = vunpack.c.l.b16 %v1182
    %v1274 = vunpack.c.l.b16 %v1183
    %v1275 = vunpack.c.l.b16 %v1184
    %v1276 = vunpack.c.l.b16 %v1185
    %v1277 = vunpack.c.l.b16 %v1186
    %v1278 = vunpack.c.l.b16 %v1187
    %v1279 = vunpack.c.l.b16 %v1188
    %v1280 = vunpack.c.l.b16 %v1189
    %v1281 = vunpack.c.l.b16 %v1190
    %v1282 = vunpack.c.l.b16 %v1191
    %v1283 = vunpack.c.l.b16 %v1192
    %v1284 = vunpack.c.l.b16 %v1193
    %v1285 = vunpack.c.l.b16 %v1194
    %v1286 = vunpack.c.l.b16 %v1195
    %v1287 = vunpack.c.l.b16 %v1196
    %v1288 = vunpack.c.l.b16 %v1197
    %v1289 = vunpack.c.l.b16 %v1198
    %v1290 = vunpack.c.l.b16 %v1199
    %v1291 = vunpack.c.l.b16 %v1200
    %v1292 = vunpack.c.l.b16 %v1201
    %v1293 = vunpack.c.l.b16 %v1202
    %v1294 = vunpack.c.l.b16 %v1203
    %v1295 = vunpack.c.l.b16 %v1204
    %v1296 = vunpack.c.l.b16 %v1205
    %v1297 = vunpack.c.l.b16 %v1206
    %v1298 = vunpack.c.l.b16 %v1207
    %v1299 = vunpack.c.l.b16 %v1208
    %v1300 = vunpack.c.l.b16 %v1209
    %v1301 = vunpack.c.l.b16 %v1210
    %v1302 = vunpack.c.l.b16 %v1211
    %v1303 = vunpack.c.l.b16 %v1212
    %v1304 = vunpack.c.l.b16 %v1213
    %v1305 = vunpack.c.l.b16 %v1214
    %v1306 = vunpack.c.l.b16 %v1215
    %v1307 = vunpack.c.l.b16 %v1216
    %v1308 = vpack.c.b16 %v1272, %v1271
    %v1309 = vpack.c.b16 %v1274, %v1273
    %v1310 = vpack.c.b16 %v1276, %v1275
    %v1311 = vpack.c.b16 %v1278, %v1277
    %v1312 = vpack.c.b16 %v1280, %v1279
    %v1313 = vpack.c.b16 %v1282, %v1281
    %v1314 = vpack.c.b16 %v1284, %v1283
    %v1315 = vpack.c.b16 %v1286, %v1285
    %v1316 = vpack.c.b16 %v1288, %v1287
    %v1317 = vpack.c.b16 %v1290, %v1289
    %v1318 = vpack.c.b16 %v1292, %v1291
    %v1319 = vpack.c.b16 %v1294, %v1293
    %v1320 = vpack.c.b16 %v1296, %v1295
    %v1321 = vpack.c.b16 %v1298, %v1297
    %v1322 = vpack.c.b16 %v1300, %v1299
    %v1323 = vpack.c.b16 %v1302, %v1301
    %v1324 = vpack.c.b16 %v1304, %v1303
    %v1325 = vpack.c.b16 %v1306, %v1305
    %v1326 = vpack.c.b16 %v1307, %v1307
    %v1327 = vrot.slane %v1308, 1
    %v1328 = vrot.slane %v1309, 1
    %v1329 = vsel %vm863, %v1327, %v1328
    %v1330 = vrot.slane %v1310, 1
    %v1331 = vsel %vm863, %v1328, %v1330
    %v1332 = vrot.slane %v1311, 1
    %v1333 = vsel %vm863, %v1330, %v1332
    %v1334 = vrot.slane %v1312, 1
    %v1335 = vsel %vm863, %v1332, %v1334
    %v1336 = vrot.slane %v1313, 1
    %v1337 = vsel %vm863, %v1334, %v1336
    %v1338 = vrot.slane %v1314, 1
    %v1339 = vsel %vm863, %v1336, %v1338
    %v1340 = vrot.slane %v1315, 1
    %v1341 = vsel %vm863, %v1338, %v1340
    %v1342 = vrot.slane %v1316, 1
    %v1343 = vsel %vm863, %v1340, %v1342
    %v1344 = vrot.slane %v1317, 1
    %v1345 = vsel %vm863, %v1342, %v1344
    %v1346 = vrot.slane %v1318, 1
    %v1347 = vsel %vm863, %v1344, %v1346
    %v1348 = vrot.slane %v1319, 1
    %v1349 = vsel %vm863, %v1346, %v1348
    %v1350 = vrot.slane %v1320, 1
    %v1351 = vsel %vm863, %v1348, %v1350
    %v1352 = vrot.slane %v1321, 1
    %v1353 = vsel %vm863, %v1350, %v1352
    %v1354 = vrot.slane %v1322, 1
    %v1355 = vsel %vm863, %v1352, %v1354
    %v1356 = vrot.slane %v1323, 1
    %v1357 = vsel %vm863, %v1354, %v1356
    %v1358 = vrot.slane %v1324, 1
    %v1359 = vsel %vm863, %v1356, %v1358
    %v1360 = vrot.slane %v1325, 1
    %v1361 = vsel %vm863, %v1358, %v1360
    %v1362 = vrot.slane %v1326, 1
    %v1363 = vsel %vm863, %v1360, %v1362
    %v1398 = vunpack.c.l.b16 %v1218
    %v1399 = vunpack.c.l.b16 %v1219
    %v1400 = vunpack.c.l.b16 %v1220
    %v1401 = vunpack.c.l.b16 %v1221
    %v1402 = vunpack.c.l.b16 %v1222
    %v1403 = vunpack.c.l.b16 %v1223
    %v1404 = vunpack.c.l.b16 %v1224
    %v1405 = vunpack.c.l.b16 %v1225
    %v1406 = vunpack.c.l.b16 %v1226
    %v1407 = vunpack.c.l.b16 %v1227
    %v1408 = vunpack.c.l.b16 %v1228
    %v1409 = vunpack.c.l.b16 %v1229
    %v1410 = vunpack.c.l.b16 %v1230
    %v1411 = vunpack.c.l.b16 %v1231
    %v1412 = vunpack.c.l.b16 %v1232
    %v1413 = vunpack.c.l.b16 %v1233
    %v1414 = vpack.c.b16 %v1399, %v1398
    %v1415 = vpack.c.b16 %v1401, %v1400
    %v1416 = vpack.c.b16 %v1403, %v1402
    %v1417 = vpack.c.b16 %v1405, %v1404
    %v1418 = vpack.c.b16 %v1407, %v1406
    %v1419 = vpack.c.b16 %v1409, %v1408
    %v1420 = vpack.c.b16 %v1411, %v1410
    %v1421 = vpack.c.b16 %v1413, %v1412
    %1430 = vmatprep.subr.bf16.mxu0 0
    %1431 = vmatpush1.bf16.msra.mxu0 %v1414
    %1432 = vmatprep.subr.bf16.mxu0 0
    %1433 = vmatpush1.bf16.msra.mxu0 %v1415
    %1434 = vmatprep.subr.bf16.mxu0 0
    %1435 = vmatpush1.bf16.msra.mxu0 %v1416
    %1436 = vmatprep.subr.bf16.mxu0 0
    %1437 = vmatpush1.bf16.msra.mxu0 %v1417
    %1438 = vmatprep.subr.bf16.mxu0 0
    %1439 = vmatpush1.bf16.msra.mxu0 %v1418
    %1440 = vmatprep.subr.bf16.mxu0 0
    %1441 = vmatpush1.bf16.msra.mxu0 %v1419
    %1442 = vmatprep.subr.bf16.mxu0 0
    %1443 = vmatpush1.bf16.msra.mxu0 %v1420
    %1444 = vmatprep.subr.bf16.mxu0 0
    %1445 = vmatpush1.bf16.msra.mxu0 %v1421
    %1446 = vmatprep.subr.bf16.mxu0 0
    %1447 = vmatpush1.bf16.msra.mxu0 0
    %1448 = vmatprep.subr.bf16.mxu0 0
    %1449 = vmatpush1.bf16.msra.mxu0 0
    %1450 = vmatprep.subr.bf16.mxu0 0
    %1451 = vmatpush1.bf16.msra.mxu0 0
    %1452 = vmatprep.subr.bf16.mxu0 0
    %1453 = vmatpush1.bf16.msra.mxu0 0
    %1454 = vmatprep.subr.bf16.mxu0 0
    %1455 = vmatpush1.bf16.msra.mxu0 0
    %1456 = vmatprep.subr.bf16.mxu0 0
    %1457 = vmatpush1.bf16.msra.mxu0 0
    %1458 = vmatprep.subr.bf16.mxu0 0
    %1459 = vmatpush1.bf16.msra.mxu0 0
    %1460 = vmatprep.subr.bf16.mxu0 0
    %1461 = vmatpush1.bf16.msra.mxu0 0
    %1462 = vmatprep.mubr.bf16.mxu0 0
    %1463 = vmatmul.mubr.bf16.gmra.mrb[0].mxu0 %v1329
    %v1464 = vpop.f32.mrb[0].mxu0
    %v1465 = vadd.f32 0.0, %v1464
    %v1466 = vpop.f32.mrb[0].mxu0
    %v1467 = vpop.f32.mrb[0].mxu0
    %v1468 = vadd.f32 0.0, %v1467
    %v1469 = vpop.f32.mrb[0].mxu0
    %1470 = vmatprep.mubr.bf16.mxu0 0
    %1471 = vmatmul.mubr.bf16.gmra.mrb[0].mxu0 %v1331
    %v1472 = vpop.f32.mrb[0].mxu0
    %v1473 = vadd.f32 0.0, %v1472
    %v1474 = vpop.f32.mrb[0].mxu0
    %v1475 = vpop.f32.mrb[0].mxu0
    %v1476 = vadd.f32 0.0, %v1475
    %v1477 = vpop.f32.mrb[0].mxu0
    %1478 = vmatprep.mubr.bf16.mxu0 0
    %1479 = vmatmul.mubr.bf16.gmra.mrb[0].mxu0 %v1333
    %v1480 = vpop.f32.mrb[0].mxu0
    %v1481 = vadd.f32 0.0, %v1480
    %v1482 = vpop.f32.mrb[0].mxu0
    %v1483 = vpop.f32.mrb[0].mxu0
    %v1484 = vadd.f32 0.0, %v1483
    %v1485 = vpop.f32.mrb[0].mxu0
    %1486 = vmatprep.mubr.bf16.mxu0 0
    %1487 = vmatmul.mubr.bf16.gmra.mrb[0].mxu0 %v1335
    %v1488 = vpop.f32.mrb[0].mxu0
    %v1489 = vadd.f32 0.0, %v1488
    %v1490 = vpop.f32.mrb[0].mxu0
    %v1491 = vpop.f32.mrb[0].mxu0
    %v1492 = vadd.f32 0.0, %v1491
    %v1493 = vpop.f32.mrb[0].mxu0
    %1494 = vmatprep.mubr.bf16.mxu0 0
    %1495 = vmatmul.mubr.bf16.gmra.mrb[0].mxu0 %v1337
    %v1496 = vpop.f32.mrb[0].mxu0
    %v1497 = vadd.f32 0.0, %v1496
    %v1498 = vpop.f32.mrb[0].mxu0
    %v1499 = vpop.f32.mrb[0].mxu0
    %v1500 = vadd.f32 0.0, %v1499
    %v1501 = vpop.f32.mrb[0].mxu0
    %1502 = vmatprep.mubr.bf16.mxu0 0
    %1503 = vmatmul.mubr.bf16.gmra.mrb[0].mxu0 %v1339
    %v1504 = vpop.f32.mrb[0].mxu0
    %v1505 = vadd.f32 0.0, %v1504
    %v1506 = vpop.f32.mrb[0].mxu0
    %v1507 = vpop.f32.mrb[0].mxu0
    %v1508 = vadd.f32 0.0, %v1507
    %v1509 = vpop.f32.mrb[0].mxu0
    %1510 = vmatprep.mubr.bf16.mxu0 0
    %1511 = vmatmul.mubr.bf16.gmra.mrb[0].mxu0 %v1341
    %v1512 = vpop.f32.mrb[0].mxu0
    %v1513 = vadd.f32 0.0, %v1512
    %v1514 = vpop.f32.mrb[0].mxu0
    %v1515 = vpop.f32.mrb[0].mxu0
    %v1516 = vadd.f32 0.0, %v1515
    %v1517 = vpop.f32.mrb[0].mxu0
    %1518 = vmatprep.mubr.bf16.mxu0 0
    %1519 = vmatmul.mubr.bf16.gmra.mrb[0].mxu0 %v1343
    %v1520 = vpop.f32.mrb[0].mxu0
    %v1521 = vadd.f32 0.0, %v1520
    %v1522 = vpop.f32.mrb[0].mxu0
    %v1523 = vpop.f32.mrb[0].mxu0
    %v1524 = vadd.f32 0.0, %v1523
    %v1525 = vpop.f32.mrb[0].mxu0
    %1526 = vmatprep.mubr.bf16.mxu0 0
    %1527 = vmatmul.mubr.bf16.gmra.mrb[0].mxu0 %v1345
    %v1528 = vpop.f32.mrb[0].mxu0
    %v1529 = vadd.f32 0.0, %v1528
    %v1530 = vpop.f32.mrb[0].mxu0
    %v1531 = vpop.f32.mrb[0].mxu0
    %v1532 = vadd.f32 0.0, %v1531
    %v1533 = vpop.f32.mrb[0].mxu0
    %1534 = vmatprep.mubr.bf16.mxu0 0
    %1535 = vmatmul.mubr.bf16.gmra.mrb[0].mxu0 %v1347
    %v1536 = vpop.f32.mrb[0].mxu0
    %v1537 = vadd.f32 0.0, %v1536
    %v1538 = vpop.f32.mrb[0].mxu0
    %v1539 = vpop.f32.mrb[0].mxu0
    %v1540 = vadd.f32 0.0, %v1539
    %v1541 = vpop.f32.mrb[0].mxu0
    %1542 = vmatprep.mubr.bf16.mxu0 0
    %1543 = vmatmul.mubr.bf16.gmra.mrb[0].mxu0 %v1349
    %v1544 = vpop.f32.mrb[0].mxu0
    %v1545 = vadd.f32 0.0, %v1544
    %v1546 = vpop.f32.mrb[0].mxu0
    %v1547 = vpop.f32.mrb[0].mxu0
    %v1548 = vadd.f32 0.0, %v1547
    %v1549 = vpop.f32.mrb[0].mxu0
    %1550 = vmatprep.mubr.bf16.mxu0 0
    %1551 = vmatmul.mubr.bf16.gmra.mrb[0].mxu0 %v1351
    %v1552 = vpop.f32.mrb[0].mxu0
    %v1553 = vadd.f32 0.0, %v1552
    %v1554 = vpop.f32.mrb[0].mxu0
    %v1555 = vpop.f32.mrb[0].mxu0
    %v1556 = vadd.f32 0.0, %v1555
    %v1557 = vpop.f32.mrb[0].mxu0
    %1558 = vmatprep.mubr.bf16.mxu0 0
    %1559 = vmatmul.mubr.bf16.gmra.mrb[0].mxu0 %v1353
    %v1560 = vpop.f32.mrb[0].mxu0
    %v1561 = vadd.f32 0.0, %v1560
    %v1562 = vpop.f32.mrb[0].mxu0
    %v1563 = vpop.f32.mrb[0].mxu0
    %v1564 = vadd.f32 0.0, %v1563
    %v1565 = vpop.f32.mrb[0].mxu0
    %1566 = vmatprep.mubr.bf16.mxu0 0
    %1567 = vmatmul.mubr.bf16.gmra.mrb[0].mxu0 %v1355
    %v1568 = vpop.f32.mrb[0].mxu0
    %v1569 = vadd.f32 0.0, %v1568
    %v1570 = vpop.f32.mrb[0].mxu0
    %v1571 = vpop.f32.mrb[0].mxu0
    %v1572 = vadd.f32 0.0, %v1571
    %v1573 = vpop.f32.mrb[0].mxu0
    %1574 = vmatprep.mubr.bf16.mxu0 0
    %1575 = vmatmul.mubr.bf16.gmra.mrb[0].mxu0 %v1357
    %v1576 = vpop.f32.mrb[0].mxu0
    %v1577 = vadd.f32 0.0, %v1576
    %v1578 = vpop.f32.mrb[0].mxu0
    %v1579 = vpop.f32.mrb[0].mxu0
    %v1580 = vadd.f32 0.0, %v1579
    %v1581 = vpop.f32.mrb[0].mxu0
    %1582 = vmatprep.mubr.bf16.mxu0 0
    %1583 = vmatmul.mubr.bf16.gmra.mrb[0].mxu0 %v1359
    %v1584 = vpop.f32.mrb[0].mxu0
    %v1585 = vadd.f32 0.0, %v1584
    %v1586 = vpop.f32.mrb[0].mxu0
    %v1587 = vpop.f32.mrb[0].mxu0
    %v1588 = vadd.f32 0.0, %v1587
    %v1589 = vpop.f32.mrb[0].mxu0
    %1590 = vmatprep.mubr.bf16.mxu0 0
    %1591 = vmatmul.mubr.bf16.gmra.mrb[0].mxu0 %v1361
    %v1592 = vpop.f32.mrb[0].mxu0
    %v1593 = vadd.f32 0.0, %v1592
    %v1594 = vpop.f32.mrb[0].mxu0
    %v1595 = vpop.f32.mrb[0].mxu0
    %v1596 = vadd.f32 0.0, %v1595
    %v1597 = vpop.f32.mrb[0].mxu0
    %1598 = vmatprep.mubr.bf16.mxu0 0
    %1599 = vmatmul.mubr.bf16.gmra.mrb[0].mxu0 %v1363
    %v1600 = vpop.f32.mrb[0].mxu0
    %v1601 = vadd.f32 0.0, %v1600
    %v1602 = vpop.f32.mrb[0].mxu0
    %v1603 = vpop.f32.mrb[0].mxu0
    %v1604 = vadd.f32 0.0, %v1603
    %v1605 = vpop.f32.mrb[0].mxu0
    %1606 = vdwg.mxu0
    %v1607 = vadd.f32 %v1144, %v1465
    %v1608 = vadd.f32 %v1145, %v1468
    %v1609 = vadd.f32 %v1146, %v1473
    %v1610 = vadd.f32 %v1147, %v1476
    %v1611 = vadd.f32 %v1148, %v1481
    %v1612 = vadd.f32 %v1149, %v1484
    %v1613 = vadd.f32 %v1150, %v1489
    %v1614 = vadd.f32 %v1151, %v1492
    %v1615 = vadd.f32 %v1152, %v1497
    %v1616 = vadd.f32 %v1153, %v1500
    %v1617 = vadd.f32 %v1154, %v1505
    %v1618 = vadd.f32 %v1155, %v1508
    %v1619 = vadd.f32 %v1156, %v1513
    %v1620 = vadd.f32 %v1157, %v1516
    %v1621 = vadd.f32 %v1158, %v1521
    %v1622 = vadd.f32 %v1159, %v1524
    %v1623 = vadd.f32 %v1160, %v1529
    %v1624 = vadd.f32 %v1161, %v1532
    %v1625 = vadd.f32 %v1162, %v1537
    %v1626 = vadd.f32 %v1163, %v1540
    %v1627 = vadd.f32 %v1164, %v1545
    %v1628 = vadd.f32 %v1165, %v1548
    %v1629 = vadd.f32 %v1166, %v1553
    %v1630 = vadd.f32 %v1167, %v1556
    %v1631 = vadd.f32 %v1168, %v1561
    %v1632 = vadd.f32 %v1169, %v1564
    %v1633 = vadd.f32 %v1170, %v1569
    %v1634 = vadd.f32 %v1171, %v1572
    %v1635 = vadd.f32 %v1172, %v1577
    %v1636 = vadd.f32 %v1173, %v1580
    %v1637 = vadd.f32 %v1174, %v1585
    %v1638 = vadd.f32 %v1175, %v1588
    %v1639 = vadd.f32 %v1176, %v1593
    %v1640 = vadd.f32 %v1177, %v1596
    %v1641 = vadd.f32 %v1178, %v1601
    %v1642 = vadd.f32 %v1179, %v1604
    %v1643 = vld [vmem:[#allocation2 + $0x98] sm:$0x3]
    %s1644 = scalar_lea.vmem [#allocation5], 256
    %v1645 = vld [vmem:[%s1644] sm:$0xf]
    %v1646 = vld [vmem:[%s1644 + $0x4] sm:$0xf]
    %v1647 = vld [vmem:[%s1644 + $0x8] sm:$0xf]
    %v1648 = vld [vmem:[%s1644 + $0xc] sm:$0xf]
    %v1649 = vld [vmem:[%s1644 + $0x10] sm:$0xf]
    %v1650 = vld [vmem:[%s1644 + $0x14] sm:$0xf]
    %v1651 = vld [vmem:[%s1644 + $0x18] sm:$0xf]
    %v1652 = vld [vmem:[%s1644 + $0x1c] sm:$0xf]
    %v1653 = vld [vmem:[%s1644 + $0x20] sm:$0xf]
    %v1654 = vld [vmem:[%s1644 + $0x24] sm:$0xf]
    %v1655 = vld [vmem:[%s1644 + $0x28] sm:$0xf]
    %v1656 = vld [vmem:[%s1644 + $0x2c] sm:$0xf]
    %v1657 = vld [vmem:[%s1644 + $0x30] sm:$0xf]
    %v1658 = vld [vmem:[%s1644 + $0x34] sm:$0xf]
    %v1659 = vld [vmem:[%s1644 + $0x38] sm:$0xf]
    %v1660 = vld [vmem:[%s1644 + $0x3c] sm:$0xf]
    %v1662 = vunpack.c.l.b16 %v1643
    %v1663 = vpack.c.b16 %v1662, %v1662
    %vm1664 = vsmask.f32 6400
    %v1666 = vshrl.u32 %v1308, 16
    %v1668 = vrot.slane %v1666, 1
    %v1669 = vshll.u32 %v1308, 16
    %v1671 = vrot.slane %v1669, 2
    %v1672 = vor.u32 %v1668, %v1671
    %v1674 = vshrl.u32 %v1309, 16
    %v1676 = vrot.slane %v1674, 1
    %v1677 = vshll.u32 %v1309, 16
    %v1679 = vrot.slane %v1677, 2
    %v1680 = vor.u32 %v1676, %v1679
    %v1681 = vsel %vm1664, %v1672, %v1680
    %v1683 = vshrl.u32 %v1310, 16
    %v1685 = vrot.slane %v1683, 1
    %v1686 = vshll.u32 %v1310, 16
    %v1688 = vrot.slane %v1686, 2
    %v1689 = vor.u32 %v1685, %v1688
    %v1690 = vsel %vm1664, %v1680, %v1689
    %v1692 = vshrl.u32 %v1311, 16
    %v1694 = vrot.slane %v1692, 1
    %v1695 = vshll.u32 %v1311, 16
    %v1697 = vrot.slane %v1695, 2
    %v1698 = vor.u32 %v1694, %v1697
    %v1699 = vsel %vm1664, %v1689, %v1698
    %v1701 = vshrl.u32 %v1312, 16
    %v1703 = vrot.slane %v1701, 1
    %v1704 = vshll.u32 %v1312, 16
    %v1706 = vrot.slane %v1704, 2
    %v1707 = vor.u32 %v1703, %v1706
    %v1708 = vsel %vm1664, %v1698, %v1707
    %v1710 = vshrl.u32 %v1313, 16
    %v1712 = vrot.slane %v1710, 1
    %v1713 = vshll.u32 %v1313, 16
    %v1715 = vrot.slane %v1713, 2
    %v1716 = vor.u32 %v1712, %v1715
    %v1717 = vsel %vm1664, %v1707, %v1716
    %v1719 = vshrl.u32 %v1314, 16
    %v1721 = vrot.slane %v1719, 1
    %v1722 = vshll.u32 %v1314, 16
    %v1724 = vrot.slane %v1722, 2
    %v1725 = vor.u32 %v1721, %v1724
    %v1726 = vsel %vm1664, %v1716, %v1725
    %v1728 = vshrl.u32 %v1315, 16
    %v1730 = vrot.slane %v1728, 1
    %v1731 = vshll.u32 %v1315, 16
    %v1733 = vrot.slane %v1731, 2
    %v1734 = vor.u32 %v1730, %v1733
    %v1735 = vsel %vm1664, %v1725, %v1734
    %v1737 = vshrl.u32 %v1316, 16
    %v1739 = vrot.slane %v1737, 1
    %v1740 = vshll.u32 %v1316, 16
    %v1742 = vrot.slane %v1740, 2
    %v1743 = vor.u32 %v1739, %v1742
    %v1744 = vsel %vm1664, %v1734, %v1743
    %v1746 = vshrl.u32 %v1317, 16
    %v1748 = vrot.slane %v1746, 1
    %v1749 = vshll.u32 %v1317, 16
    %v1751 = vrot.slane %v1749, 2
    %v1752 = vor.u32 %v1748, %v1751
    %v1753 = vsel %vm1664, %v1743, %v1752
    %v1755 = vshrl.u32 %v1318, 16
    %v1757 = vrot.slane %v1755, 1
    %v1758 = vshll.u32 %v1318, 16
    %v1760 = vrot.slane %v1758, 2
    %v1761 = vor.u32 %v1757, %v1760
    %v1762 = vsel %vm1664, %v1752, %v1761
    %v1764 = vshrl.u32 %v1319, 16
    %v1766 = vrot.slane %v1764, 1
    %v1767 = vshll.u32 %v1319, 16
    %v1769 = vrot.slane %v1767, 2
    %v1770 = vor.u32 %v1766, %v1769
    %v1771 = vsel %vm1664, %v1761, %v1770
    %v1773 = vshrl.u32 %v1320, 16
    %v1775 = vrot.slane %v1773, 1
    %v1776 = vshll.u32 %v1320, 16
    %v1778 = vrot.slane %v1776, 2
    %v1779 = vor.u32 %v1775, %v1778
    %v1780 = vsel %vm1664, %v1770, %v1779
    %v1782 = vshrl.u32 %v1321, 16
    %v1784 = vrot.slane %v1782, 1
    %v1785 = vshll.u32 %v1321, 16
    %v1787 = vrot.slane %v1785, 2
    %v1788 = vor.u32 %v1784, %v1787
    %v1789 = vsel %vm1664, %v1779, %v1788
    %v1791 = vshrl.u32 %v1322, 16
    %v1793 = vrot.slane %v1791, 1
    %v1794 = vshll.u32 %v1322, 16
    %v1796 = vrot.slane %v1794, 2
    %v1797 = vor.u32 %v1793, %v1796
    %v1798 = vsel %vm1664, %v1788, %v1797
    %v1800 = vshrl.u32 %v1323, 16
    %v1802 = vrot.slane %v1800, 1
    %v1803 = vshll.u32 %v1323, 16
    %v1805 = vrot.slane %v1803, 2
    %v1806 = vor.u32 %v1802, %v1805
    %v1807 = vsel %vm1664, %v1797, %v1806
    %v1809 = vshrl.u32 %v1324, 16
    %v1811 = vrot.slane %v1809, 1
    %v1812 = vshll.u32 %v1324, 16
    %v1814 = vrot.slane %v1812, 2
    %v1815 = vor.u32 %v1811, %v1814
    %v1816 = vsel %vm1664, %v1806, %v1815
    %v1818 = vshrl.u32 %v1325, 16
    %v1820 = vrot.slane %v1818, 1
    %v1821 = vshll.u32 %v1325, 16
    %v1823 = vrot.slane %v1821, 2
    %v1824 = vor.u32 %v1820, %v1823
    %v1825 = vsel %vm1664, %v1815, %v1824
    %v1827 = vshrl.u32 %v1663, 16
    %v1829 = vrot.slane %v1827, 1
    %v1830 = vshll.u32 %v1663, 16
    %v1832 = vrot.slane %v1830, 2
    %v1833 = vor.u32 %v1829, %v1832
    %v1834 = vsel %vm1664, %v1824, %v1833
    %v1869 = vunpack.c.l.b16 %v1645
    %v1870 = vunpack.c.l.b16 %v1646
    %v1871 = vunpack.c.l.b16 %v1647
    %v1872 = vunpack.c.l.b16 %v1648
    %v1873 = vunpack.c.l.b16 %v1649
    %v1874 = vunpack.c.l.b16 %v1650
    %v1875 = vunpack.c.l.b16 %v1651
    %v1876 = vunpack.c.l.b16 %v1652
    %v1877 = vunpack.c.l.b16 %v1653
    %v1878 = vunpack.c.l.b16 %v1654
    %v1879 = vunpack.c.l.b16 %v1655
    %v1880 = vunpack.c.l.b16 %v1656
    %v1881 = vunpack.c.l.b16 %v1657
    %v1882 = vunpack.c.l.b16 %v1658
    %v1883 = vunpack.c.l.b16 %v1659
    %v1884 = vunpack.c.l.b16 %v1660
    %v1885 = vpack.c.b16 %v1870, %v1869
    %v1886 = vpack.c.b16 %v1872, %v1871
    %v1887 = vpack.c.b16 %v1874, %v1873
    %v1888 = vpack.c.b16 %v1876, %v1875
    %v1889 = vpack.c.b16 %v1878, %v1877
    %v1890 = vpack.c.b16 %v1880, %v1879
    %v1891 = vpack.c.b16 %v1882, %v1881
    %v1892 = vpack.c.b16 %v1884, %v1883
    %1901 = vmatprep.subr.bf16.mxu0 0
    %1902 = vmatpush1.bf16.msra.mxu0 %v1885
    %1903 = vmatprep.subr.bf16.mxu0 0
    %1904 = vmatpush1.bf16.msra.mxu0 %v1886
    %1905 = vmatprep.subr.bf16.mxu0 0
    %1906 = vmatpush1.bf16.msra.mxu0 %v1887
    %1907 = vmatprep.subr.bf16.mxu0 0
    %1908 = vmatpush1.bf16.msra.mxu0 %v1888
    %1909 = vmatprep.subr.bf16.mxu0 0
    %1910 = vmatpush1.bf16.msra.mxu0 %v1889
    %1911 = vmatprep.subr.bf16.mxu0 0
    %1912 = vmatpush1.bf16.msra.mxu0 %v1890
    %1913 = vmatprep.subr.bf16.mxu0 0
    %1914 = vmatpush1.bf16.msra.mxu0 %v1891
    %1915 = vmatprep.subr.bf16.mxu0 0
    %1916 = vmatpush1.bf16.msra.mxu0 %v1892
    %1917 = vmatprep.subr.bf16.mxu0 0
    %1918 = vmatpush1.bf16.msra.mxu0 0
    %1919 = vmatprep.subr.bf16.mxu0 0
    %1920 = vmatpush1.bf16.msra.mxu0 0
    %1921 = vmatprep.subr.bf16.mxu0 0
    %1922 = vmatpush1.bf16.msra.mxu0 0
    %1923 = vmatprep.subr.bf16.mxu0 0
    %1924 = vmatpush1.bf16.msra.mxu0 0
    %1925 = vmatprep.subr.bf16.mxu0 0
    %1926 = vmatpush1.bf16.msra.mxu0 0
    %1927 = vmatprep.subr.bf16.mxu0 0
    %1928 = vmatpush1.bf16.msra.mxu0 0
    %1929 = vmatprep.subr.bf16.mxu0 0
    %1930 = vmatpush1.bf16.msra.mxu0 0
    %1931 = vmatprep.subr.bf16.mxu0 0
    %1932 = vmatpush1.bf16.msra.mxu0 0
    %1933 = vmatprep.mubr.bf16.mxu0 0
    %1934 = vmatmul.mubr.bf16.gmra.mrb[0].mxu0 %v1681
    %v1935 = vpop.f32.mrb[0].mxu0
    %v1936 = vadd.f32 0.0, %v1935
    %v1937 = vpop.f32.mrb[0].mxu0
    %v1938 = vpop.f32.mrb[0].mxu0
    %v1939 = vadd.f32 0.0, %v1938
    %v1940 = vpop.f32.mrb[0].mxu0
    %1941 = vmatprep.mubr.bf16.mxu0 0
    %1942 = vmatmul.mubr.bf16.gmra.mrb[0].mxu0 %v1690
    %v1943 = vpop.f32.mrb[0].mxu0
    %v1944 = vadd.f32 0.0, %v1943
    %v1945 = vpop.f32.mrb[0].mxu0
    %v1946 = vpop.f32.mrb[0].mxu0
    %v1947 = vadd.f32 0.0, %v1946
    %v1948 = vpop.f32.mrb[0].mxu0
    %1949 = vmatprep.mubr.bf16.mxu0 0
    %1950 = vmatmul.mubr.bf16.gmra.mrb[0].mxu0 %v1699
    %v1951 = vpop.f32.mrb[0].mxu0
    %v1952 = vadd.f32 0.0, %v1951
    %v1953 = vpop.f32.mrb[0].mxu0
    %v1954 = vpop.f32.mrb[0].mxu0
    %v1955 = vadd.f32 0.0, %v1954
    %v1956 = vpop.f32.mrb[0].mxu0
    %1957 = vmatprep.mubr.bf16.mxu0 0
    %1958 = vmatmul.mubr.bf16.gmra.mrb[0].mxu0 %v1708
    %v1959 = vpop.f32.mrb[0].mxu0
    %v1960 = vadd.f32 0.0, %v1959
    %v1961 = vpop.f32.mrb[0].mxu0
    %v1962 = vpop.f32.mrb[0].mxu0
    %v1963 = vadd.f32 0.0, %v1962
    %v1964 = vpop.f32.mrb[0].mxu0
    %1965 = vmatprep.mubr.bf16.mxu0 0
    %1966 = vmatmul.mubr.bf16.gmra.mrb[0].mxu0 %v1717
    %v1967 = vpop.f32.mrb[0].mxu0
    %v1968 = vadd.f32 0.0, %v1967
    %v1969 = vpop.f32.mrb[0].mxu0
    %v1970 = vpop.f32.mrb[0].mxu0
    %v1971 = vadd.f32 0.0, %v1970
    %v1972 = vpop.f32.mrb[0].mxu0
    %1973 = vmatprep.mubr.bf16.mxu0 0
    %1974 = vmatmul.mubr.bf16.gmra.mrb[0].mxu0 %v1726
    %v1975 = vpop.f32.mrb[0].mxu0
    %v1976 = vadd.f32 0.0, %v1975
    %v1977 = vpop.f32.mrb[0].mxu0
    %v1978 = vpop.f32.mrb[0].mxu0
    %v1979 = vadd.f32 0.0, %v1978
    %v1980 = vpop.f32.mrb[0].mxu0
    %1981 = vmatprep.mubr.bf16.mxu0 0
    %1982 = vmatmul.mubr.bf16.gmra.mrb[0].mxu0 %v1735
    %v1983 = vpop.f32.mrb[0].mxu0
    %v1984 = vadd.f32 0.0, %v1983
    %v1985 = vpop.f32.mrb[0].mxu0
    %v1986 = vpop.f32.mrb[0].mxu0
    %v1987 = vadd.f32 0.0, %v1986
    %v1988 = vpop.f32.mrb[0].mxu0
    %1989 = vmatprep.mubr.bf16.mxu0 0
    %1990 = vmatmul.mubr.bf16.gmra.mrb[0].mxu0 %v1744
    %v1991 = vpop.f32.mrb[0].mxu0
    %v1992 = vadd.f32 0.0, %v1991
    %v1993 = vpop.f32.mrb[0].mxu0
    %v1994 = vpop.f32.mrb[0].mxu0
    %v1995 = vadd.f32 0.0, %v1994
    %v1996 = vpop.f32.mrb[0].mxu0
    %1997 = vmatprep.mubr.bf16.mxu0 0
    %1998 = vmatmul.mubr.bf16.gmra.mrb[0].mxu0 %v1753
    %v1999 = vpop.f32.mrb[0].mxu0
    %v2000 = vadd.f32 0.0, %v1999
    %v2001 = vpop.f32.mrb[0].mxu0
    %v2002 = vpop.f32.mrb[0].mxu0
    %v2003 = vadd.f32 0.0, %v2002
    %v2004 = vpop.f32.mrb[0].mxu0
    %2005 = vmatprep.mubr.bf16.mxu0 0
    %2006 = vmatmul.mubr.bf16.gmra.mrb[0].mxu0 %v1762
    %v2007 = vpop.f32.mrb[0].mxu0
    %v2008 = vadd.f32 0.0, %v2007
    %v2009 = vpop.f32.mrb[0].mxu0
    %v2010 = vpop.f32.mrb[0].mxu0
    %v2011 = vadd.f32 0.0, %v2010
    %v2012 = vpop.f32.mrb[0].mxu0
    %2013 = vmatprep.mubr.bf16.mxu0 0
    %2014 = vmatmul.mubr.bf16.gmra.mrb[0].mxu0 %v1771
    %v2015 = vpop.f32.mrb[0].mxu0
    %v2016 = vadd.f32 0.0, %v2015
    %v2017 = vpop.f32.mrb[0].mxu0
    %v2018 = vpop.f32.mrb[0].mxu0
    %v2019 = vadd.f32 0.0, %v2018
    %v2020 = vpop.f32.mrb[0].mxu0
    %2021 = vmatprep.mubr.bf16.mxu0 0
    %2022 = vmatmul.mubr.bf16.gmra.mrb[0].mxu0 %v1780
    %v2023 = vpop.f32.mrb[0].mxu0
    %v2024 = vadd.f32 0.0, %v2023
    %v2025 = vpop.f32.mrb[0].mxu0
    %v2026 = vpop.f32.mrb[0].mxu0
    %v2027 = vadd.f32 0.0, %v2026
    %v2028 = vpop.f32.mrb[0].mxu0
    %2029 = vmatprep.mubr.bf16.mxu0 0
    %2030 = vmatmul.mubr.bf16.gmra.mrb[0].mxu0 %v1789
    %v2031 = vpop.f32.mrb[0].mxu0
    %v2032 = vadd.f32 0.0, %v2031
    %v2033 = vpop.f32.mrb[0].mxu0
    %v2034 = vpop.f32.mrb[0].mxu0
    %v2035 = vadd.f32 0.0, %v2034
    %v2036 = vpop.f32.mrb[0].mxu0
    %2037 = vmatprep.mubr.bf16.mxu0 0
    %2038 = vmatmul.mubr.bf16.gmra.mrb[0].mxu0 %v1798
    %v2039 = vpop.f32.mrb[0].mxu0
    %v2040 = vadd.f32 0.0, %v2039
    %v2041 = vpop.f32.mrb[0].mxu0
    %v2042 = vpop.f32.mrb[0].mxu0
    %v2043 = vadd.f32 0.0, %v2042
    %v2044 = vpop.f32.mrb[0].mxu0
    %2045 = vmatprep.mubr.bf16.mxu0 0
    %2046 = vmatmul.mubr.bf16.gmra.mrb[0].mxu0 %v1807
    %v2047 = vpop.f32.mrb[0].mxu0
    %v2048 = vadd.f32 0.0, %v2047
    %v2049 = vpop.f32.mrb[0].mxu0
    %v2050 = vpop.f32.mrb[0].mxu0
    %v2051 = vadd.f32 0.0, %v2050
    %v2052 = vpop.f32.mrb[0].mxu0
    %2053 = vmatprep.mubr.bf16.mxu0 0
    %2054 = vmatmul.mubr.bf16.gmra.mrb[0].mxu0 %v1816
    %v2055 = vpop.f32.mrb[0].mxu0
    %v2056 = vadd.f32 0.0, %v2055
    %v2057 = vpop.f32.mrb[0].mxu0
    %v2058 = vpop.f32.mrb[0].mxu0
    %v2059 = vadd.f32 0.0, %v2058
    %v2060 = vpop.f32.mrb[0].mxu0
    %2061 = vmatprep.mubr.bf16.mxu0 0
    %2062 = vmatmul.mubr.bf16.gmra.mrb[0].mxu0 %v1825
    %v2063 = vpop.f32.mrb[0].mxu0
    %v2064 = vadd.f32 0.0, %v2063
    %v2065 = vpop.f32.mrb[0].mxu0
    %v2066 = vpop.f32.mrb[0].mxu0
    %v2067 = vadd.f32 0.0, %v2066
    %v2068 = vpop.f32.mrb[0].mxu0
    %2069 = vmatprep.mubr.bf16.mxu0 0
    %2070 = vmatmul.mubr.bf16.gmra.mrb[0].mxu0 %v1834
    %v2071 = vpop.f32.mrb[0].mxu0
    %v2072 = vadd.f32 0.0, %v2071
    %v2073 = vpop.f32.mrb[0].mxu0
    %v2074 = vpop.f32.mrb[0].mxu0
    %v2075 = vadd.f32 0.0, %v2074
    %v2076 = vpop.f32.mrb[0].mxu0
    %2077 = vdwg.mxu0
    %v2078 = vadd.f32 %v1607, %v1936
    %v2079 = vadd.f32 %v1608, %v1939
    %v2080 = vadd.f32 %v1609, %v1944
    %v2081 = vadd.f32 %v1610, %v1947
    %v2082 = vadd.f32 %v1611, %v1952
    %v2083 = vadd.f32 %v1612, %v1955
    %v2084 = vadd.f32 %v1613, %v1960
    %v2085 = vadd.f32 %v1614, %v1963
    %v2086 = vadd.f32 %v1615, %v1968
    %v2087 = vadd.f32 %v1616, %v1971
    %v2088 = vadd.f32 %v1617, %v1976
    %v2089 = vadd.f32 %v1618, %v1979
    %v2090 = vadd.f32 %v1619, %v1984
    %v2091 = vadd.f32 %v1620, %v1987
    %v2092 = vadd.f32 %v1621, %v1992
    %v2093 = vadd.f32 %v1622, %v1995
    %v2094 = vadd.f32 %v1623, %v2000
    %v2095 = vadd.f32 %v1624, %v2003
    %v2096 = vadd.f32 %v1625, %v2008
    %v2097 = vadd.f32 %v1626, %v2011
    %v2098 = vadd.f32 %v1627, %v2016
    %v2099 = vadd.f32 %v1628, %v2019
    %v2100 = vadd.f32 %v1629, %v2024
    %v2101 = vadd.f32 %v1630, %v2027
    %v2102 = vadd.f32 %v1631, %v2032
    %v2103 = vadd.f32 %v1632, %v2035
    %v2104 = vadd.f32 %v1633, %v2040
    %v2105 = vadd.f32 %v1634, %v2043
    %v2106 = vadd.f32 %v1635, %v2048
    %v2107 = vadd.f32 %v1636, %v2051
    %v2108 = vadd.f32 %v1637, %v2056
    %v2109 = vadd.f32 %v1638, %v2059
    %v2110 = vadd.f32 %v1639, %v2064
    %v2111 = vadd.f32 %v1640, %v2067
    %v2112 = vadd.f32 %v1641, %v2072
    %v2113 = vadd.f32 %v1642, %v2075
    %v2114 = vld [vmem:[#allocation2 + $0x8] sm:$0xc]
    %s2115 = scalar_lea.vmem [#allocation5], 320
    %v2116 = vld [vmem:[%s2115] sm:$0xf]
    %v2117 = vld [vmem:[%s2115 + $0x4] sm:$0xf]
    %v2118 = vld [vmem:[%s2115 + $0x8] sm:$0xf]
    %v2119 = vld [vmem:[%s2115 + $0xc] sm:$0xf]
    %v2120 = vld [vmem:[%s2115 + $0x10] sm:$0xf]
    %v2121 = vld [vmem:[%s2115 + $0x14] sm:$0xf]
    %v2122 = vld [vmem:[%s2115 + $0x18] sm:$0xf]
    %v2123 = vld [vmem:[%s2115 + $0x1c] sm:$0xf]
    %v2124 = vld [vmem:[%s2115 + $0x20] sm:$0xf]
    %v2125 = vld [vmem:[%s2115 + $0x24] sm:$0xf]
    %v2126 = vld [vmem:[%s2115 + $0x28] sm:$0xf]
    %v2127 = vld [vmem:[%s2115 + $0x2c] sm:$0xf]
    %v2128 = vld [vmem:[%s2115 + $0x30] sm:$0xf]
    %v2129 = vld [vmem:[%s2115 + $0x34] sm:$0xf]
    %v2130 = vld [vmem:[%s2115 + $0x38] sm:$0xf]
    %v2131 = vld [vmem:[%s2115 + $0x3c] sm:$0xf]
    %v2133 = vunpack.c.l.b16 %v2114
    %v2134 = vpack.c.b16 %v1272, %v2133
    %vm2135 = vcmask 1045504
    %v2136 = vrot.slane %v2134, 2
    %v2137 = vrot.slane %v1309, 2
    %v2138 = vsel %vm2135, %v2136, %v2137
    %v2139 = vrot.slane %v1310, 2
    %v2140 = vsel %vm2135, %v2137, %v2139
    %v2141 = vrot.slane %v1311, 2
    %v2142 = vsel %vm2135, %v2139, %v2141
    %v2143 = vrot.slane %v1312, 2
    %v2144 = vsel %vm2135, %v2141, %v2143
    %v2145 = vrot.slane %v1313, 2
    %v2146 = vsel %vm2135, %v2143, %v2145
    %v2147 = vrot.slane %v1314, 2
    %v2148 = vsel %vm2135, %v2145, %v2147
    %v2149 = vrot.slane %v1315, 2
    %v2150 = vsel %vm2135, %v2147, %v2149
    %v2151 = vrot.slane %v1316, 2
    %v2152 = vsel %vm2135, %v2149, %v2151
    %v2153 = vrot.slane %v1317, 2
    %v2154 = vsel %vm2135, %v2151, %v2153
    %v2155 = vrot.slane %v1318, 2
    %v2156 = vsel %vm2135, %v2153, %v2155
    %v2157 = vrot.slane %v1319, 2
    %v2158 = vsel %vm2135, %v2155, %v2157
    %v2159 = vrot.slane %v1320, 2
    %v2160 = vsel %vm2135, %v2157, %v2159
    %v2161 = vrot.slane %v1321, 2
    %v2162 = vsel %vm2135, %v2159, %v2161
    %v2163 = vrot.slane %v1322, 2
    %v2164 = vsel %vm2135, %v2161, %v2163
    %v2165 = vrot.slane %v1323, 2
    %v2166 = vsel %vm2135, %v2163, %v2165
    %v2167 = vrot.slane %v1324, 2
    %v2168 = vsel %vm2135, %v2165, %v2167
    %v2169 = vrot.slane %v1325, 2
    %v2170 = vsel %vm2135, %v2167, %v2169
    %v2171 = vrot.slane %v1663, 2
    %v2172 = vsel %vm2135, %v2169, %v2171
    %v2207 = vunpack.c.l.b16 %v2116
    %v2208 = vunpack.c.l.b16 %v2117
    %v2209 = vunpack.c.l.b16 %v2118
    %v2210 = vunpack.c.l.b16 %v2119
    %v2211 = vunpack.c.l.b16 %v2120
    %v2212 = vunpack.c.l.b16 %v2121
    %v2213 = vunpack.c.l.b16 %v2122
    %v2214 = vunpack.c.l.b16 %v2123
    %v2215 = vunpack.c.l.b16 %v2124
    %v2216 = vunpack.c.l.b16 %v2125
    %v2217 = vunpack.c.l.b16 %v2126
    %v2218 = vunpack.c.l.b16 %v2127
    %v2219 = vunpack.c.l.b16 %v2128
    %v2220 = vunpack.c.l.b16 %v2129
    %v2221 = vunpack.c.l.b16 %v2130
    %v2222 = vunpack.c.l.b16 %v2131
    %v2223 = vpack.c.b16 %v2208, %v2207
    %v2224 = vpack.c.b16 %v2210, %v2209
    %v2225 = vpack.c.b16 %v2212, %v2211
    %v2226 = vpack.c.b16 %v2214, %v2213
    %v2227 = vpack.c.b16 %v2216, %v2215
    %v2228 = vpack.c.b16 %v2218, %v2217
    %v2229 = vpack.c.b16 %v2220, %v2219
    %v2230 = vpack.c.b16 %v2222, %v2221
    %2239 = vmatprep.subr.bf16.mxu0 0
    %2240 = vmatpush1.bf16.msra.mxu0 %v2223
    %2241 = vmatprep.subr.bf16.mxu0 0
    %2242 = vmatpush1.bf16.msra.mxu0 %v2224
    %2243 = vmatprep.subr.bf16.mxu0 0
    %2244 = vmatpush1.bf16.msra.mxu0 %v2225
    %2245 = vmatprep.subr.bf16.mxu0 0
    %2246 = vmatpush1.bf16.msra.mxu0 %v2226
    %2247 = vmatprep.subr.bf16.mxu0 0
    %2248 = vmatpush1.bf16.msra.mxu0 %v2227
    %2249 = vmatprep.subr.bf16.mxu0 0
    %2250 = vmatpush1.bf16.msra.mxu0 %v2228
    %2251 = vmatprep.subr.bf16.mxu0 0
    %2252 = vmatpush1.bf16.msra.mxu0 %v2229
    %2253 = vmatprep.subr.bf16.mxu0 0
    %2254 = vmatpush1.bf16.msra.mxu0 %v2230
    %2255 = vmatprep.subr.bf16.mxu0 0
    %2256 = vmatpush1.bf16.msra.mxu0 0
    %2257 = vmatprep.subr.bf16.mxu0 0
    %2258 = vmatpush1.bf16.msra.mxu0 0
    %2259 = vmatprep.subr.bf16.mxu0 0
    %2260 = vmatpush1.bf16.msra.mxu0 0
    %2261 = vmatprep.subr.bf16.mxu0 0
    %2262 = vmatpush1.bf16.msra.mxu0 0
    %2263 = vmatprep.subr.bf16.mxu0 0
    %2264 = vmatpush1.bf16.msra.mxu0 0
    %2265 = vmatprep.subr.bf16.mxu0 0
    %2266 = vmatpush1.bf16.msra.mxu0 0
    %2267 = vmatprep.subr.bf16.mxu0 0
    %2268 = vmatpush1.bf16.msra.mxu0 0
    %2269 = vmatprep.subr.bf16.mxu0 0
    %2270 = vmatpush1.bf16.msra.mxu0 0
    %2271 = vmatprep.mubr.bf16.mxu0 0
    %2272 = vmatmul.mubr.bf16.gmra.mrb[0].mxu0 %v2138
    %v2273 = vpop.f32.mrb[0].mxu0
    %v2274 = vadd.f32 0.0, %v2273
    %v2275 = vpop.f32.mrb[0].mxu0
    %v2276 = vpop.f32.mrb[0].mxu0
    %v2277 = vadd.f32 0.0, %v2276
    %v2278 = vpop.f32.mrb[0].mxu0
    %2279 = vmatprep.mubr.bf16.mxu0 0
    %2280 = vmatmul.mubr.bf16.gmra.mrb[0].mxu0 %v2140
    %v2281 = vpop.f32.mrb[0].mxu0
    %v2282 = vadd.f32 0.0, %v2281
    %v2283 = vpop.f32.mrb[0].mxu0
    %v2284 = vpop.f32.mrb[0].mxu0
    %v2285 = vadd.f32 0.0, %v2284
    %v2286 = vpop.f32.mrb[0].mxu0
    %2287 = vmatprep.mubr.bf16.mxu0 0
    %2288 = vmatmul.mubr.bf16.gmra.mrb[0].mxu0 %v2142
    %v2289 = vpop.f32.mrb[0].mxu0
    %v2290 = vadd.f32 0.0, %v2289
    %v2291 = vpop.f32.mrb[0].mxu0
    %v2292 = vpop.f32.mrb[0].mxu0
    %v2293 = vadd.f32 0.0, %v2292
    %v2294 = vpop.f32.mrb[0].mxu0
    %2295 = vmatprep.mubr.bf16.mxu0 0
    %2296 = vmatmul.mubr.bf16.gmra.mrb[0].mxu0 %v2144
    %v2297 = vpop.f32.mrb[0].mxu0
    %v2298 = vadd.f32 0.0, %v2297
    %v2299 = vpop.f32.mrb[0].mxu0
    %v2300 = vpop.f32.mrb[0].mxu0
    %v2301 = vadd.f32 0.0, %v2300
    %v2302 = vpop.f32.mrb[0].mxu0
    %2303 = vmatprep.mubr.bf16.mxu0 0
    %2304 = vmatmul.mubr.bf16.gmra.mrb[0].mxu0 %v2146
    %v2305 = vpop.f32.mrb[0].mxu0
    %v2306 = vadd.f32 0.0, %v2305
    %v2307 = vpop.f32.mrb[0].mxu0
    %v2308 = vpop.f32.mrb[0].mxu0
    %v2309 = vadd.f32 0.0, %v2308
    %v2310 = vpop.f32.mrb[0].mxu0
    %2311 = vmatprep.mubr.bf16.mxu0 0
    %2312 = vmatmul.mubr.bf16.gmra.mrb[0].mxu0 %v2148
    %v2313 = vpop.f32.mrb[0].mxu0
    %v2314 = vadd.f32 0.0, %v2313
    %v2315 = vpop.f32.mrb[0].mxu0
    %v2316 = vpop.f32.mrb[0].mxu0
    %v2317 = vadd.f32 0.0, %v2316
    %v2318 = vpop.f32.mrb[0].mxu0
    %2319 = vmatprep.mubr.bf16.mxu0 0
    %2320 = vmatmul.mubr.bf16.gmra.mrb[0].mxu0 %v2150
    %v2321 = vpop.f32.mrb[0].mxu0
    %v2322 = vadd.f32 0.0, %v2321
    %v2323 = vpop.f32.mrb[0].mxu0
    %v2324 = vpop.f32.mrb[0].mxu0
    %v2325 = vadd.f32 0.0, %v2324
    %v2326 = vpop.f32.mrb[0].mxu0
    %2327 = vmatprep.mubr.bf16.mxu0 0
    %2328 = vmatmul.mubr.bf16.gmra.mrb[0].mxu0 %v2152
    %v2329 = vpop.f32.mrb[0].mxu0
    %v2330 = vadd.f32 0.0, %v2329
    %v2331 = vpop.f32.mrb[0].mxu0
    %v2332 = vpop.f32.mrb[0].mxu0
    %v2333 = vadd.f32 0.0, %v2332
    %v2334 = vpop.f32.mrb[0].mxu0
    %2335 = vmatprep.mubr.bf16.mxu0 0
    %2336 = vmatmul.mubr.bf16.gmra.mrb[0].mxu0 %v2154
    %v2337 = vpop.f32.mrb[0].mxu0
    %v2338 = vadd.f32 0.0, %v2337
    %v2339 = vpop.f32.mrb[0].mxu0
    %v2340 = vpop.f32.mrb[0].mxu0
    %v2341 = vadd.f32 0.0, %v2340
    %v2342 = vpop.f32.mrb[0].mxu0
    %2343 = vmatprep.mubr.bf16.mxu0 0
    %2344 = vmatmul.mubr.bf16.gmra.mrb[0].mxu0 %v2156
    %v2345 = vpop.f32.mrb[0].mxu0
    %v2346 = vadd.f32 0.0, %v2345
    %v2347 = vpop.f32.mrb[0].mxu0
    %v2348 = vpop.f32.mrb[0].mxu0
    %v2349 = vadd.f32 0.0, %v2348
    %v2350 = vpop.f32.mrb[0].mxu0
    %2351 = vmatprep.mubr.bf16.mxu0 0
    %2352 = vmatmul.mubr.bf16.gmra.mrb[0].mxu0 %v2158
    %v2353 = vpop.f32.mrb[0].mxu0
    %v2354 = vadd.f32 0.0, %v2353
    %v2355 = vpop.f32.mrb[0].mxu0
    %v2356 = vpop.f32.mrb[0].mxu0
    %v2357 = vadd.f32 0.0, %v2356
    %v2358 = vpop.f32.mrb[0].mxu0
    %2359 = vmatprep.mubr.bf16.mxu0 0
    %2360 = vmatmul.mubr.bf16.gmra.mrb[0].mxu0 %v2160
    %v2361 = vpop.f32.mrb[0].mxu0
    %v2362 = vadd.f32 0.0, %v2361
    %v2363 = vpop.f32.mrb[0].mxu0
    %v2364 = vpop.f32.mrb[0].mxu0
    %v2365 = vadd.f32 0.0, %v2364
    %v2366 = vpop.f32.mrb[0].mxu0
    %2367 = vmatprep.mubr.bf16.mxu0 0
    %2368 = vmatmul.mubr.bf16.gmra.mrb[0].mxu0 %v2162
    %v2369 = vpop.f32.mrb[0].mxu0
    %v2370 = vadd.f32 0.0, %v2369
    %v2371 = vpop.f32.mrb[0].mxu0
    %v2372 = vpop.f32.mrb[0].mxu0
    %v2373 = vadd.f32 0.0, %v2372
    %v2374 = vpop.f32.mrb[0].mxu0
    %2375 = vmatprep.mubr.bf16.mxu0 0
    %2376 = vmatmul.mubr.bf16.gmra.mrb[0].mxu0 %v2164
    %v2377 = vpop.f32.mrb[0].mxu0
    %v2378 = vadd.f32 0.0, %v2377
    %v2379 = vpop.f32.mrb[0].mxu0
    %v2380 = vpop.f32.mrb[0].mxu0
    %v2381 = vadd.f32 0.0, %v2380
    %v2382 = vpop.f32.mrb[0].mxu0
    %2383 = vmatprep.mubr.bf16.mxu0 0
    %2384 = vmatmul.mubr.bf16.gmra.mrb[0].mxu0 %v2166
    %v2385 = vpop.f32.mrb[0].mxu0
    %v2386 = vadd.f32 0.0, %v2385
    %v2387 = vpop.f32.mrb[0].mxu0
    %v2388 = vpop.f32.mrb[0].mxu0
    %v2389 = vadd.f32 0.0, %v2388
    %v2390 = vpop.f32.mrb[0].mxu0
    %2391 = vmatprep.mubr.bf16.mxu0 0
    %2392 = vmatmul.mubr.bf16.gmra.mrb[0].mxu0 %v2168
    %v2393 = vpop.f32.mrb[0].mxu0
    %v2394 = vadd.f32 0.0, %v2393
    %v2395 = vpop.f32.mrb[0].mxu0
    %v2396 = vpop.f32.mrb[0].mxu0
    %v2397 = vadd.f32 0.0, %v2396
    %v2398 = vpop.f32.mrb[0].mxu0
    %2399 = vmatprep.mubr.bf16.mxu0 0
    %2400 = vmatmul.mubr.bf16.gmra.mrb[0].mxu0 %v2170
    %v2401 = vpop.f32.mrb[0].mxu0
    %v2402 = vadd.f32 0.0, %v2401
    %v2403 = vpop.f32.mrb[0].mxu0
    %v2404 = vpop.f32.mrb[0].mxu0
    %v2405 = vadd.f32 0.0, %v2404
    %v2406 = vpop.f32.mrb[0].mxu0
    %2407 = vmatprep.mubr.bf16.mxu0 0
    %2408 = vmatmul.mubr.bf16.gmra.mrb[0].mxu0 %v2172
    %v2409 = vpop.f32.mrb[0].mxu0
    %v2410 = vadd.f32 0.0, %v2409
    %v2411 = vpop.f32.mrb[0].mxu0
    %v2412 = vpop.f32.mrb[0].mxu0
    %v2413 = vadd.f32 0.0, %v2412
    %v2414 = vpop.f32.mrb[0].mxu0
    %2415 = vdwg.mxu0
    %v2416 = vadd.f32 %v2078, %v2274
    %v2417 = vadd.f32 %v2079, %v2277
    %v2418 = vadd.f32 %v2080, %v2282
    %v2419 = vadd.f32 %v2081, %v2285
    %v2420 = vadd.f32 %v2082, %v2290
    %v2421 = vadd.f32 %v2083, %v2293
    %v2422 = vadd.f32 %v2084, %v2298
    %v2423 = vadd.f32 %v2085, %v2301
    %v2424 = vadd.f32 %v2086, %v2306
    %v2425 = vadd.f32 %v2087, %v2309
    %v2426 = vadd.f32 %v2088, %v2314
    %v2427 = vadd.f32 %v2089, %v2317
    %v2428 = vadd.f32 %v2090, %v2322
    %v2429 = vadd.f32 %v2091, %v2325
    %v2430 = vadd.f32 %v2092, %v2330
    %v2431 = vadd.f32 %v2093, %v2333
    %v2432 = vadd.f32 %v2094, %v2338
    %v2433 = vadd.f32 %v2095, %v2341
    %v2434 = vadd.f32 %v2096, %v2346
    %v2435 = vadd.f32 %v2097, %v2349
    %v2436 = vadd.f32 %v2098, %v2354
    %v2437 = vadd.f32 %v2099, %v2357
    %v2438 = vadd.f32 %v2100, %v2362
    %v2439 = vadd.f32 %v2101, %v2365
    %v2440 = vadd.f32 %v2102, %v2370
    %v2441 = vadd.f32 %v2103, %v2373
    %v2442 = vadd.f32 %v2104, %v2378
    %v2443 = vadd.f32 %v2105, %v2381
    %v2444 = vadd.f32 %v2106, %v2386
    %v2445 = vadd.f32 %v2107, %v2389
    %v2446 = vadd.f32 %v2108, %v2394
    %v2447 = vadd.f32 %v2109, %v2397
    %v2448 = vadd.f32 %v2110, %v2402
    %v2449 = vadd.f32 %v2111, %v2405
    %v2450 = vadd.f32 %v2112, %v2410
    %v2451 = vadd.f32 %v2113, %v2413
    %v2452 = vld [vmem:[#allocation2 + $0x10] sm:$0xc]
    %v2453 = vld [vmem:[#allocation2 + $0x14] sm:$0xf]
    %v2454 = vld [vmem:[#allocation2 + $0x18] sm:$0xf]
    %v2455 = vld [vmem:[#allocation2 + $0x1c] sm:$0xf]
    %v2456 = vld [vmem:[#allocation2 + $0x20] sm:$0xf]
    %v2457 = vld [vmem:[#allocation2 + $0x24] sm:$0xf]
    %v2458 = vld [vmem:[#allocation2 + $0x28] sm:$0xf]
    %v2459 = vld [vmem:[#allocation2 + $0x2c] sm:$0xf]
    %v2460 = vld [vmem:[#allocation2 + $0x30] sm:$0xf]
    %v2461 = vld [vmem:[#allocation2 + $0x34] sm:$0xf]
    %v2462 = vld [vmem:[#allocation2 + $0x38] sm:$0xf]
    %v2463 = vld [vmem:[#allocation2 + $0x3c] sm:$0xf]
    %v2464 = vld [vmem:[#allocation2 + $0x40] sm:$0xf]
    %v2465 = vld [vmem:[#allocation2 + $0x44] sm:$0xf]
    %v2466 = vld [vmem:[#allocation2 + $0x48] sm:$0xf]
    %v2467 = vld [vmem:[#allocation2 + $0x4c] sm:$0xf]
    %v2468 = vld [vmem:[#allocation2 + $0x50] sm:$0xf]
    %v2469 = vld [vmem:[#allocation2 + $0x54] sm:$0xf]
    %v2470 = vld [vmem:[#allocation2 + $0x58] sm:$0xf]
    %v2471 = vld [vmem:[#allocation2 + $0x5c] sm:$0xf]
    %v2472 = vld [vmem:[#allocation2 + $0x60] sm:$0xf]
    %v2473 = vld [vmem:[#allocation2 + $0x64] sm:$0xf]
    %v2474 = vld [vmem:[#allocation2 + $0x68] sm:$0xf]
    %v2475 = vld [vmem:[#allocation2 + $0x6c] sm:$0xf]
    %v2476 = vld [vmem:[#allocation2 + $0x70] sm:$0xf]
    %v2477 = vld [vmem:[#allocation2 + $0x74] sm:$0xf]
    %v2478 = vld [vmem:[#allocation2 + $0x78] sm:$0xf]
    %v2479 = vld [vmem:[#allocation2 + $0x7c] sm:$0xf]
    %v2480 = vld [vmem:[#allocation2 + $0x80] sm:$0xf]
    %v2481 = vld [vmem:[#allocation2 + $0x84] sm:$0xf]
    %v2482 = vld [vmem:[#allocation2 + $0x88] sm:$0xf]
    %v2483 = vld [vmem:[#allocation2 + $0x8c] sm:$0xf]
    %v2484 = vld [vmem:[#allocation2 + $0x90] sm:$0xf]
    %v2485 = vld [vmem:[#allocation2 + $0x94] sm:$0xf]
    %v2486 = vld [vmem:[#allocation2 + $0x98] sm:$0xf]
    %v2487 = vld [vmem:[#allocation2 + $0x9c] sm:$0xf]
    %v2488 = vld [vmem:[#allocation2 + $0xa0] sm:$0x3]
    %s2489 = scalar_lea.vmem [#allocation5], 384
    %v2490 = vld [vmem:[%s2489] sm:$0xf]
    %v2491 = vld [vmem:[%s2489 + $0x4] sm:$0xf]
    %v2492 = vld [vmem:[%s2489 + $0x8] sm:$0xf]
    %v2493 = vld [vmem:[%s2489 + $0xc] sm:$0xf]
    %v2494 = vld [vmem:[%s2489 + $0x10] sm:$0xf]
    %v2495 = vld [vmem:[%s2489 + $0x14] sm:$0xf]
    %v2496 = vld [vmem:[%s2489 + $0x18] sm:$0xf]
    %v2497 = vld [vmem:[%s2489 + $0x1c] sm:$0xf]
    %v2498 = vld [vmem:[%s2489 + $0x20] sm:$0xf]
    %v2499 = vld [vmem:[%s2489 + $0x24] sm:$0xf]
    %v2500 = vld [vmem:[%s2489 + $0x28] sm:$0xf]
    %v2501 = vld [vmem:[%s2489 + $0x2c] sm:$0xf]
    %v2502 = vld [vmem:[%s2489 + $0x30] sm:$0xf]
    %v2503 = vld [vmem:[%s2489 + $0x34] sm:$0xf]
    %v2504 = vld [vmem:[%s2489 + $0x38] sm:$0xf]
    %v2505 = vld [vmem:[%s2489 + $0x3c] sm:$0xf]
    %v2543 = vunpack.c.l.b16 %v2452
    %v2544 = vunpack.c.l.b16 %v2453
    %v2545 = vunpack.c.l.b16 %v2454
    %v2546 = vunpack.c.l.b16 %v2455
    %v2547 = vunpack.c.l.b16 %v2456
    %v2548 = vunpack.c.l.b16 %v2457
    %v2549 = vunpack.c.l.b16 %v2458
    %v2550 = vunpack.c.l.b16 %v2459
    %v2551 = vunpack.c.l.b16 %v2460
    %v2552 = vunpack.c.l.b16 %v2461
    %v2553 = vunpack.c.l.b16 %v2462
    %v2554 = vunpack.c.l.b16 %v2463
    %v2555 = vunpack.c.l.b16 %v2464
    %v2556 = vunpack.c.l.b16 %v2465
    %v2557 = vunpack.c.l.b16 %v2466
    %v2558 = vunpack.c.l.b16 %v2467
    %v2559 = vunpack.c.l.b16 %v2468
    %v2560 = vunpack.c.l.b16 %v2469
    %v2561 = vunpack.c.l.b16 %v2470
    %v2562 = vunpack.c.l.b16 %v2471
    %v2563 = vunpack.c.l.b16 %v2472
    %v2564 = vunpack.c.l.b16 %v2473
    %v2565 = vunpack.c.l.b16 %v2474
    %v2566 = vunpack.c.l.b16 %v2475
    %v2567 = vunpack.c.l.b16 %v2476
    %v2568 = vunpack.c.l.b16 %v2477
    %v2569 = vunpack.c.l.b16 %v2478
    %v2570 = vunpack.c.l.b16 %v2479
    %v2571 = vunpack.c.l.b16 %v2480
    %v2572 = vunpack.c.l.b16 %v2481
    %v2573 = vunpack.c.l.b16 %v2482
    %v2574 = vunpack.c.l.b16 %v2483
    %v2575 = vunpack.c.l.b16 %v2484
    %v2576 = vunpack.c.l.b16 %v2485
    %v2577 = vunpack.c.l.b16 %v2486
    %v2578 = vunpack.c.l.b16 %v2487
    %v2579 = vunpack.c.l.b16 %v2488
    %v2580 = vpack.c.b16 %v2544, %v2543
    %v2581 = vpack.c.b16 %v2546, %v2545
    %v2582 = vpack.c.b16 %v2548, %v2547
    %v2583 = vpack.c.b16 %v2550, %v2549
    %v2584 = vpack.c.b16 %v2552, %v2551
    %v2585 = vpack.c.b16 %v2554, %v2553
    %v2586 = vpack.c.b16 %v2556, %v2555
    %v2587 = vpack.c.b16 %v2558, %v2557
    %v2588 = vpack.c.b16 %v2560, %v2559
    %v2589 = vpack.c.b16 %v2562, %v2561
    %v2590 = vpack.c.b16 %v2564, %v2563
    %v2591 = vpack.c.b16 %v2566, %v2565
    %v2592 = vpack.c.b16 %v2568, %v2567
    %v2593 = vpack.c.b16 %v2570, %v2569
    %v2594 = vpack.c.b16 %v2572, %v2571
    %v2595 = vpack.c.b16 %v2574, %v2573
    %v2596 = vpack.c.b16 %v2576, %v2575
    %v2597 = vpack.c.b16 %v2578, %v2577
    %v2598 = vpack.c.b16 %v2579, %v2579
    %v2599 = vrot.slane %v2580, 2
    %v2600 = vrot.slane %v2581, 2
    %v2601 = vsel %vm2135, %v2599, %v2600
    %v2602 = vrot.slane %v2582, 2
    %v2603 = vsel %vm2135, %v2600, %v2602
    %v2604 = vrot.slane %v2583, 2
    %v2605 = vsel %vm2135, %v2602, %v2604
    %v2606 = vrot.slane %v2584, 2
    %v2607 = vsel %vm2135, %v2604, %v2606
    %v2608 = vrot.slane %v2585, 2
    %v2609 = vsel %vm2135, %v2606, %v2608
    %v2610 = vrot.slane %v2586, 2
    %v2611 = vsel %vm2135, %v2608, %v2610
    %v2612 = vrot.slane %v2587, 2
    %v2613 = vsel %vm2135, %v2610, %v2612
    %v2614 = vrot.slane %v2588, 2
    %v2615 = vsel %vm2135, %v2612, %v2614
    %v2616 = vrot.slane %v2589, 2
    %v2617 = vsel %vm2135, %v2614, %v2616
    %v2618 = vrot.slane %v2590, 2
    %v2619 = vsel %vm2135, %v2616, %v2618
    %v2620 = vrot.slane %v2591, 2
    %v2621 = vsel %vm2135, %v2618, %v2620
    %v2622 = vrot.slane %v2592, 2
    %v2623 = vsel %vm2135, %v2620, %v2622
    %v2624 = vrot.slane %v2593, 2
    %v2625 = vsel %vm2135, %v2622, %v2624
    %v2626 = vrot.slane %v2594, 2
    %v2627 = vsel %vm2135, %v2624, %v2626
    %v2628 = vrot.slane %v2595, 2
    %v2629 = vsel %vm2135, %v2626, %v2628
    %v2630 = vrot.slane %v2596, 2
    %v2631 = vsel %vm2135, %v2628, %v2630
    %v2632 = vrot.slane %v2597, 2
    %v2633 = vsel %vm2135, %v2630, %v2632
    %v2634 = vrot.slane %v2598, 2
    %v2635 = vsel %vm2135, %v2632, %v2634
    %v2670 = vunpack.c.l.b16 %v2490
    %v2671 = vunpack.c.l.b16 %v2491
    %v2672 = vunpack.c.l.b16 %v2492
    %v2673 = vunpack.c.l.b16 %v2493
    %v2674 = vunpack.c.l.b16 %v2494
    %v2675 = vunpack.c.l.b16 %v2495
    %v2676 = vunpack.c.l.b16 %v2496
    %v2677 = vunpack.c.l.b16 %v2497
    %v2678 = vunpack.c.l.b16 %v2498
    %v2679 = vunpack.c.l.b16 %v2499
    %v2680 = vunpack.c.l.b16 %v2500
    %v2681 = vunpack.c.l.b16 %v2501
    %v2682 = vunpack.c.l.b16 %v2502
    %v2683 = vunpack.c.l.b16 %v2503
    %v2684 = vunpack.c.l.b16 %v2504
    %v2685 = vunpack.c.l.b16 %v2505
    %v2686 = vpack.c.b16 %v2671, %v2670
    %v2687 = vpack.c.b16 %v2673, %v2672
    %v2688 = vpack.c.b16 %v2675, %v2674
    %v2689 = vpack.c.b16 %v2677, %v2676
    %v2690 = vpack.c.b16 %v2679, %v2678
    %v2691 = vpack.c.b16 %v2681, %v2680
    %v2692 = vpack.c.b16 %v2683, %v2682
    %v2693 = vpack.c.b16 %v2685, %v2684
    %2702 = vmatprep.subr.bf16.mxu0 0
    %2703 = vmatpush1.bf16.msra.mxu0 %v2686
    %2704 = vmatprep.subr.bf16.mxu0 0
    %2705 = vmatpush1.bf16.msra.mxu0 %v2687
    %2706 = vmatprep.subr.bf16.mxu0 0
    %2707 = vmatpush1.bf16.msra.mxu0 %v2688
    %2708 = vmatprep.subr.bf16.mxu0 0
    %2709 = vmatpush1.bf16.msra.mxu0 %v2689
    %2710 = vmatprep.subr.bf16.mxu0 0
    %2711 = vmatpush1.bf16.msra.mxu0 %v2690
    %2712 = vmatprep.subr.bf16.mxu0 0
    %2713 = vmatpush1.bf16.msra.mxu0 %v2691
    %2714 = vmatprep.subr.bf16.mxu0 0
    %2715 = vmatpush1.bf16.msra.mxu0 %v2692
    %2716 = vmatprep.subr.bf16.mxu0 0
    %2717 = vmatpush1.bf16.msra.mxu0 %v2693
    %2718 = vmatprep.subr.bf16.mxu0 0
    %2719 = vmatpush1.bf16.msra.mxu0 0
    %2720 = vmatprep.subr.bf16.mxu0 0
    %2721 = vmatpush1.bf16.msra.mxu0 0
    %2722 = vmatprep.subr.bf16.mxu0 0
    %2723 = vmatpush1.bf16.msra.mxu0 0
    %2724 = vmatprep.subr.bf16.mxu0 0
    %2725 = vmatpush1.bf16.msra.mxu0 0
    %2726 = vmatprep.subr.bf16.mxu0 0
    %2727 = vmatpush1.bf16.msra.mxu0 0
    %2728 = vmatprep.subr.bf16.mxu0 0
    %2729 = vmatpush1.bf16.msra.mxu0 0
    %2730 = vmatprep.subr.bf16.mxu0 0
    %2731 = vmatpush1.bf16.msra.mxu0 0
    %2732 = vmatprep.subr.bf16.mxu0 0
    %2733 = vmatpush1.bf16.msra.mxu0 0
    %2734 = vmatprep.mubr.bf16.mxu0 0
    %2735 = vmatmul.mubr.bf16.gmra.mrb[0].mxu0 %v2601
    %v2736 = vpop.f32.mrb[0].mxu0
    %v2737 = vadd.f32 0.0, %v2736
    %v2738 = vpop.f32.mrb[0].mxu0
    %v2739 = vpop.f32.mrb[0].mxu0
    %v2740 = vadd.f32 0.0, %v2739
    %v2741 = vpop.f32.mrb[0].mxu0
    %2742 = vmatprep.mubr.bf16.mxu0 0
    %2743 = vmatmul.mubr.bf16.gmra.mrb[0].mxu0 %v2603
    %v2744 = vpop.f32.mrb[0].mxu0
    %v2745 = vadd.f32 0.0, %v2744
    %v2746 = vpop.f32.mrb[0].mxu0
    %v2747 = vpop.f32.mrb[0].mxu0
    %v2748 = vadd.f32 0.0, %v2747
    %v2749 = vpop.f32.mrb[0].mxu0
    %2750 = vmatprep.mubr.bf16.mxu0 0
    %2751 = vmatmul.mubr.bf16.gmra.mrb[0].mxu0 %v2605
    %v2752 = vpop.f32.mrb[0].mxu0
    %v2753 = vadd.f32 0.0, %v2752
    %v2754 = vpop.f32.mrb[0].mxu0
    %v2755 = vpop.f32.mrb[0].mxu0
    %v2756 = vadd.f32 0.0, %v2755
    %v2757 = vpop.f32.mrb[0].mxu0
    %2758 = vmatprep.mubr.bf16.mxu0 0
    %2759 = vmatmul.mubr.bf16.gmra.mrb[0].mxu0 %v2607
    %v2760 = vpop.f32.mrb[0].mxu0
    %v2761 = vadd.f32 0.0, %v2760
    %v2762 = vpop.f32.mrb[0].mxu0
    %v2763 = vpop.f32.mrb[0].mxu0
    %v2764 = vadd.f32 0.0, %v2763
    %v2765 = vpop.f32.mrb[0].mxu0
    %2766 = vmatprep.mubr.bf16.mxu0 0
    %2767 = vmatmul.mubr.bf16.gmra.mrb[0].mxu0 %v2609
    %v2768 = vpop.f32.mrb[0].mxu0
    %v2769 = vadd.f32 0.0, %v2768
    %v2770 = vpop.f32.mrb[0].mxu0
    %v2771 = vpop.f32.mrb[0].mxu0
    %v2772 = vadd.f32 0.0, %v2771
    %v2773 = vpop.f32.mrb[0].mxu0
    %2774 = vmatprep.mubr.bf16.mxu0 0
    %2775 = vmatmul.mubr.bf16.gmra.mrb[0].mxu0 %v2611
    %v2776 = vpop.f32.mrb[0].mxu0
    %v2777 = vadd.f32 0.0, %v2776
    %v2778 = vpop.f32.mrb[0].mxu0
    %v2779 = vpop.f32.mrb[0].mxu0
    %v2780 = vadd.f32 0.0, %v2779
    %v2781 = vpop.f32.mrb[0].mxu0
    %2782 = vmatprep.mubr.bf16.mxu0 0
    %2783 = vmatmul.mubr.bf16.gmra.mrb[0].mxu0 %v2613
    %v2784 = vpop.f32.mrb[0].mxu0
    %v2785 = vadd.f32 0.0, %v2784
    %v2786 = vpop.f32.mrb[0].mxu0
    %v2787 = vpop.f32.mrb[0].mxu0
    %v2788 = vadd.f32 0.0, %v2787
    %v2789 = vpop.f32.mrb[0].mxu0
    %2790 = vmatprep.mubr.bf16.mxu0 0
    %2791 = vmatmul.mubr.bf16.gmra.mrb[0].mxu0 %v2615
    %v2792 = vpop.f32.mrb[0].mxu0
    %v2793 = vadd.f32 0.0, %v2792
    %v2794 = vpop.f32.mrb[0].mxu0
    %v2795 = vpop.f32.mrb[0].mxu0
    %v2796 = vadd.f32 0.0, %v2795
    %v2797 = vpop.f32.mrb[0].mxu0
    %2798 = vmatprep.mubr.bf16.mxu0 0
    %2799 = vmatmul.mubr.bf16.gmra.mrb[0].mxu0 %v2617
    %v2800 = vpop.f32.mrb[0].mxu0
    %v2801 = vadd.f32 0.0, %v2800
    %v2802 = vpop.f32.mrb[0].mxu0
    %v2803 = vpop.f32.mrb[0].mxu0
    %v2804 = vadd.f32 0.0, %v2803
    %v2805 = vpop.f32.mrb[0].mxu0
    %2806 = vmatprep.mubr.bf16.mxu0 0
    %2807 = vmatmul.mubr.bf16.gmra.mrb[0].mxu0 %v2619
    %v2808 = vpop.f32.mrb[0].mxu0
    %v2809 = vadd.f32 0.0, %v2808
    %v2810 = vpop.f32.mrb[0].mxu0
    %v2811 = vpop.f32.mrb[0].mxu0
    %v2812 = vadd.f32 0.0, %v2811
    %v2813 = vpop.f32.mrb[0].mxu0
    %2814 = vmatprep.mubr.bf16.mxu0 0
    %2815 = vmatmul.mubr.bf16.gmra.mrb[0].mxu0 %v2621
    %v2816 = vpop.f32.mrb[0].mxu0
    %v2817 = vadd.f32 0.0, %v2816
    %v2818 = vpop.f32.mrb[0].mxu0
    %v2819 = vpop.f32.mrb[0].mxu0
    %v2820 = vadd.f32 0.0, %v2819
    %v2821 = vpop.f32.mrb[0].mxu0
    %2822 = vmatprep.mubr.bf16.mxu0 0
    %2823 = vmatmul.mubr.bf16.gmra.mrb[0].mxu0 %v2623
    %v2824 = vpop.f32.mrb[0].mxu0
    %v2825 = vadd.f32 0.0, %v2824
    %v2826 = vpop.f32.mrb[0].mxu0
    %v2827 = vpop.f32.mrb[0].mxu0
    %v2828 = vadd.f32 0.0, %v2827
    %v2829 = vpop.f32.mrb[0].mxu0
    %2830 = vmatprep.mubr.bf16.mxu0 0
    %2831 = vmatmul.mubr.bf16.gmra.mrb[0].mxu0 %v2625
    %v2832 = vpop.f32.mrb[0].mxu0
    %v2833 = vadd.f32 0.0, %v2832
    %v2834 = vpop.f32.mrb[0].mxu0
    %v2835 = vpop.f32.mrb[0].mxu0
    %v2836 = vadd.f32 0.0, %v2835
    %v2837 = vpop.f32.mrb[0].mxu0
    %2838 = vmatprep.mubr.bf16.mxu0 0
    %2839 = vmatmul.mubr.bf16.gmra.mrb[0].mxu0 %v2627
    %v2840 = vpop.f32.mrb[0].mxu0
    %v2841 = vadd.f32 0.0, %v2840
    %v2842 = vpop.f32.mrb[0].mxu0
    %v2843 = vpop.f32.mrb[0].mxu0
    %v2844 = vadd.f32 0.0, %v2843
    %v2845 = vpop.f32.mrb[0].mxu0
    %2846 = vmatprep.mubr.bf16.mxu0 0
    %2847 = vmatmul.mubr.bf16.gmra.mrb[0].mxu0 %v2629
    %v2848 = vpop.f32.mrb[0].mxu0
    %v2849 = vadd.f32 0.0, %v2848
    %v2850 = vpop.f32.mrb[0].mxu0
    %v2851 = vpop.f32.mrb[0].mxu0
    %v2852 = vadd.f32 0.0, %v2851
    %v2853 = vpop.f32.mrb[0].mxu0
    %2854 = vmatprep.mubr.bf16.mxu0 0
    %2855 = vmatmul.mubr.bf16.gmra.mrb[0].mxu0 %v2631
    %v2856 = vpop.f32.mrb[0].mxu0
    %v2857 = vadd.f32 0.0, %v2856
    %v2858 = vpop.f32.mrb[0].mxu0
    %v2859 = vpop.f32.mrb[0].mxu0
    %v2860 = vadd.f32 0.0, %v2859
    %v2861 = vpop.f32.mrb[0].mxu0
    %2862 = vmatprep.mubr.bf16.mxu0 0
    %2863 = vmatmul.mubr.bf16.gmra.mrb[0].mxu0 %v2633
    %v2864 = vpop.f32.mrb[0].mxu0
    %v2865 = vadd.f32 0.0, %v2864
    %v2866 = vpop.f32.mrb[0].mxu0
    %v2867 = vpop.f32.mrb[0].mxu0
    %v2868 = vadd.f32 0.0, %v2867
    %v2869 = vpop.f32.mrb[0].mxu0
    %2870 = vmatprep.mubr.bf16.mxu0 0
    %2871 = vmatmul.mubr.bf16.gmra.mrb[0].mxu0 %v2635
    %v2872 = vpop.f32.mrb[0].mxu0
    %v2873 = vadd.f32 0.0, %v2872
    %v2874 = vpop.f32.mrb[0].mxu0
    %v2875 = vpop.f32.mrb[0].mxu0
    %v2876 = vadd.f32 0.0, %v2875
    %v2877 = vpop.f32.mrb[0].mxu0
    %2878 = vdwg.mxu0
    %v2879 = vadd.f32 %v2416, %v2737
    %v2880 = vadd.f32 %v2417, %v2740
    %v2881 = vadd.f32 %v2418, %v2745
    %v2882 = vadd.f32 %v2419, %v2748
    %v2883 = vadd.f32 %v2420, %v2753
    %v2884 = vadd.f32 %v2421, %v2756
    %v2885 = vadd.f32 %v2422, %v2761
    %v2886 = vadd.f32 %v2423, %v2764
    %v2887 = vadd.f32 %v2424, %v2769
    %v2888 = vadd.f32 %v2425, %v2772
    %v2889 = vadd.f32 %v2426, %v2777
    %v2890 = vadd.f32 %v2427, %v2780
    %v2891 = vadd.f32 %v2428, %v2785
    %v2892 = vadd.f32 %v2429, %v2788
    %v2893 = vadd.f32 %v2430, %v2793
    %v2894 = vadd.f32 %v2431, %v2796
    %v2895 = vadd.f32 %v2432, %v2801
    %v2896 = vadd.f32 %v2433, %v2804
    %v2897 = vadd.f32 %v2434, %v2809
    %v2898 = vadd.f32 %v2435, %v2812
    %v2899 = vadd.f32 %v2436, %v2817
    %v2900 = vadd.f32 %v2437, %v2820
    %v2901 = vadd.f32 %v2438, %v2825
    %v2902 = vadd.f32 %v2439, %v2828
    %v2903 = vadd.f32 %v2440, %v2833
    %v2904 = vadd.f32 %v2441, %v2836
    %v2905 = vadd.f32 %v2442, %v2841
    %v2906 = vadd.f32 %v2443, %v2844
    %v2907 = vadd.f32 %v2444, %v2849
    %v2908 = vadd.f32 %v2445, %v2852
    %v2909 = vadd.f32 %v2446, %v2857
    %v2910 = vadd.f32 %v2447, %v2860
    %v2911 = vadd.f32 %v2448, %v2865
    %v2912 = vadd.f32 %v2449, %v2868
    %v2913 = vadd.f32 %v2450, %v2873
    %v2914 = vadd.f32 %v2451, %v2876
    %v2915 = vld [vmem:[#allocation2 + $0xa0] sm:$0x7]
    %s2916 = scalar_lea.vmem [#allocation5], 448
    %v2917 = vld [vmem:[%s2916] sm:$0xf]
    %v2918 = vld [vmem:[%s2916 + $0x4] sm:$0xf]
    %v2919 = vld [vmem:[%s2916 + $0x8] sm:$0xf]
    %v2920 = vld [vmem:[%s2916 + $0xc] sm:$0xf]
    %v2921 = vld [vmem:[%s2916 + $0x10] sm:$0xf]
    %v2922 = vld [vmem:[%s2916 + $0x14] sm:$0xf]
    %v2923 = vld [vmem:[%s2916 + $0x18] sm:$0xf]
    %v2924 = vld [vmem:[%s2916 + $0x1c] sm:$0xf]
    %v2925 = vld [vmem:[%s2916 + $0x20] sm:$0xf]
    %v2926 = vld [vmem:[%s2916 + $0x24] sm:$0xf]
    %v2927 = vld [vmem:[%s2916 + $0x28] sm:$0xf]
    %v2928 = vld [vmem:[%s2916 + $0x2c] sm:$0xf]
    %v2929 = vld [vmem:[%s2916 + $0x30] sm:$0xf]
    %v2930 = vld [vmem:[%s2916 + $0x34] sm:$0xf]
    %v2931 = vld [vmem:[%s2916 + $0x38] sm:$0xf]
    %v2932 = vld [vmem:[%s2916 + $0x3c] sm:$0xf]
    %v2934 = vunpack.c.l.b16 %v2915
    %v2935 = vpack.c.b16 %v2934, %v2934
    %vm2936 = vsmask.f32 5376
    %v2938 = vshrl.u32 %v2580, 16
    %v2940 = vrot.slane %v2938, 2
    %v2941 = vshll.u32 %v2580, 16
    %v2943 = vrot.slane %v2941, 3
    %v2944 = vor.u32 %v2940, %v2943
    %v2946 = vshrl.u32 %v2581, 16
    %v2948 = vrot.slane %v2946, 2
    %v2949 = vshll.u32 %v2581, 16
    %v2951 = vrot.slane %v2949, 3
    %v2952 = vor.u32 %v2948, %v2951
    %v2953 = vsel %vm2936, %v2944, %v2952
    %v2955 = vshrl.u32 %v2582, 16
    %v2957 = vrot.slane %v2955, 2
    %v2958 = vshll.u32 %v2582, 16
    %v2960 = vrot.slane %v2958, 3
    %v2961 = vor.u32 %v2957, %v2960
    %v2962 = vsel %vm2936, %v2952, %v2961
    %v2964 = vshrl.u32 %v2583, 16
    %v2966 = vrot.slane %v2964, 2
    %v2967 = vshll.u32 %v2583, 16
    %v2969 = vrot.slane %v2967, 3
    %v2970 = vor.u32 %v2966, %v2969
    %v2971 = vsel %vm2936, %v2961, %v2970
    %v2973 = vshrl.u32 %v2584, 16
    %v2975 = vrot.slane %v2973, 2
    %v2976 = vshll.u32 %v2584, 16
    %v2978 = vrot.slane %v2976, 3
    %v2979 = vor.u32 %v2975, %v2978
    %v2980 = vsel %vm2936, %v2970, %v2979
    %v2982 = vshrl.u32 %v2585, 16
    %v2984 = vrot.slane %v2982, 2
    %v2985 = vshll.u32 %v2585, 16
    %v2987 = vrot.slane %v2985, 3
    %v2988 = vor.u32 %v2984, %v2987
    %v2989 = vsel %vm2936, %v2979, %v2988
    %v2991 = vshrl.u32 %v2586, 16
    %v2993 = vrot.slane %v2991, 2
    %v2994 = vshll.u32 %v2586, 16
    %v2996 = vrot.slane %v2994, 3
    %v2997 = vor.u32 %v2993, %v2996
    %v2998 = vsel %vm2936, %v2988, %v2997
    %v3000 = vshrl.u32 %v2587, 16
    %v3002 = vrot.slane %v3000, 2
    %v3003 = vshll.u32 %v2587, 16
    %v3005 = vrot.slane %v3003, 3
    %v3006 = vor.u32 %v3002, %v3005
    %v3007 = vsel %vm2936, %v2997, %v3006
    %v3009 = vshrl.u32 %v2588, 16
    %v3011 = vrot.slane %v3009, 2
    %v3012 = vshll.u32 %v2588, 16
    %v3014 = vrot.slane %v3012, 3
    %v3015 = vor.u32 %v3011, %v3014
    %v3016 = vsel %vm2936, %v3006, %v3015
    %v3018 = vshrl.u32 %v2589, 16
    %v3020 = vrot.slane %v3018, 2
    %v3021 = vshll.u32 %v2589, 16
    %v3023 = vrot.slane %v3021, 3
    %v3024 = vor.u32 %v3020, %v3023
    %v3025 = vsel %vm2936, %v3015, %v3024
    %v3027 = vshrl.u32 %v2590, 16
    %v3029 = vrot.slane %v3027, 2
    %v3030 = vshll.u32 %v2590, 16
    %v3032 = vrot.slane %v3030, 3
    %v3033 = vor.u32 %v3029, %v3032
    %v3034 = vsel %vm2936, %v3024, %v3033
    %v3036 = vshrl.u32 %v2591, 16
    %v3038 = vrot.slane %v3036, 2
    %v3039 = vshll.u32 %v2591, 16
    %v3041 = vrot.slane %v3039, 3
    %v3042 = vor.u32 %v3038, %v3041
    %v3043 = vsel %vm2936, %v3033, %v3042
    %v3045 = vshrl.u32 %v2592, 16
    %v3047 = vrot.slane %v3045, 2
    %v3048 = vshll.u32 %v2592, 16
    %v3050 = vrot.slane %v3048, 3
    %v3051 = vor.u32 %v3047, %v3050
    %v3052 = vsel %vm2936, %v3042, %v3051
    %v3054 = vshrl.u32 %v2593, 16
    %v3056 = vrot.slane %v3054, 2
    %v3057 = vshll.u32 %v2593, 16
    %v3059 = vrot.slane %v3057, 3
    %v3060 = vor.u32 %v3056, %v3059
    %v3061 = vsel %vm2936, %v3051, %v3060
    %v3063 = vshrl.u32 %v2594, 16
    %v3065 = vrot.slane %v3063, 2
    %v3066 = vshll.u32 %v2594, 16
    %v3068 = vrot.slane %v3066, 3
    %v3069 = vor.u32 %v3065, %v3068
    %v3070 = vsel %vm2936, %v3060, %v3069
    %v3072 = vshrl.u32 %v2595, 16
    %v3074 = vrot.slane %v3072, 2
    %v3075 = vshll.u32 %v2595, 16
    %v3077 = vrot.slane %v3075, 3
    %v3078 = vor.u32 %v3074, %v3077
    %v3079 = vsel %vm2936, %v3069, %v3078
    %v3081 = vshrl.u32 %v2596, 16
    %v3083 = vrot.slane %v3081, 2
    %v3084 = vshll.u32 %v2596, 16
    %v3086 = vrot.slane %v3084, 3
    %v3087 = vor.u32 %v3083, %v3086
    %v3088 = vsel %vm2936, %v3078, %v3087
    %v3090 = vshrl.u32 %v2597, 16
    %v3092 = vrot.slane %v3090, 2
    %v3093 = vshll.u32 %v2597, 16
    %v3095 = vrot.slane %v3093, 3
    %v3096 = vor.u32 %v3092, %v3095
    %v3097 = vsel %vm2936, %v3087, %v3096
    %v3099 = vshrl.u32 %v2935, 16
    %v3101 = vrot.slane %v3099, 2
    %v3102 = vshll.u32 %v2935, 16
    %v3104 = vrot.slane %v3102, 3
    %v3105 = vor.u32 %v3101, %v3104
    %v3106 = vsel %vm2936, %v3096, %v3105
    %v3141 = vunpack.c.l.b16 %v2917
    %v3142 = vunpack.c.l.b16 %v2918
    %v3143 = vunpack.c.l.b16 %v2919
    %v3144 = vunpack.c.l.b16 %v2920
    %v3145 = vunpack.c.l.b16 %v2921
    %v3146 = vunpack.c.l.b16 %v2922
    %v3147 = vunpack.c.l.b16 %v2923
    %v3148 = vunpack.c.l.b16 %v2924
    %v3149 = vunpack.c.l.b16 %v2925
    %v3150 = vunpack.c.l.b16 %v2926
    %v3151 = vunpack.c.l.b16 %v2927
    %v3152 = vunpack.c.l.b16 %v2928
    %v3153 = vunpack.c.l.b16 %v2929
    %v3154 = vunpack.c.l.b16 %v2930
    %v3155 = vunpack.c.l.b16 %v2931
    %v3156 = vunpack.c.l.b16 %v2932
    %v3157 = vpack.c.b16 %v3142, %v3141
    %v3158 = vpack.c.b16 %v3144, %v3143
    %v3159 = vpack.c.b16 %v3146, %v3145
    %v3160 = vpack.c.b16 %v3148, %v3147
    %v3161 = vpack.c.b16 %v3150, %v3149
    %v3162 = vpack.c.b16 %v3152, %v3151
    %v3163 = vpack.c.b16 %v3154, %v3153
    %v3164 = vpack.c.b16 %v3156, %v3155
    %3173 = vmatprep.subr.bf16.mxu0 0
    %3174 = vmatpush1.bf16.msra.mxu0 %v3157
    %3175 = vmatprep.subr.bf16.mxu0 0
    %3176 = vmatpush1.bf16.msra.mxu0 %v3158
    %3177 = vmatprep.subr.bf16.mxu0 0
    %3178 = vmatpush1.bf16.msra.mxu0 %v3159
    %3179 = vmatprep.subr.bf16.mxu0 0
    %3180 = vmatpush1.bf16.msra.mxu0 %v3160
    %3181 = vmatprep.subr.bf16.mxu0 0
    %3182 = vmatpush1.bf16.msra.mxu0 %v3161
    %3183 = vmatprep.subr.bf16.mxu0 0
    %3184 = vmatpush1.bf16.msra.mxu0 %v3162
    %3185 = vmatprep.subr.bf16.mxu0 0
    %3186 = vmatpush1.bf16.msra.mxu0 %v3163
    %3187 = vmatprep.subr.bf16.mxu0 0
    %3188 = vmatpush1.bf16.msra.mxu0 %v3164
    %3189 = vmatprep.subr.bf16.mxu0 0
    %3190 = vmatpush1.bf16.msra.mxu0 0
    %3191 = vmatprep.subr.bf16.mxu0 0
    %3192 = vmatpush1.bf16.msra.mxu0 0
    %3193 = vmatprep.subr.bf16.mxu0 0
    %3194 = vmatpush1.bf16.msra.mxu0 0
    %3195 = vmatprep.subr.bf16.mxu0 0
    %3196 = vmatpush1.bf16.msra.mxu0 0
    %3197 = vmatprep.subr.bf16.mxu0 0
    %3198 = vmatpush1.bf16.msra.mxu0 0
    %3199 = vmatprep.subr.bf16.mxu0 0
    %3200 = vmatpush1.bf16.msra.mxu0 0
    %3201 = vmatprep.subr.bf16.mxu0 0
    %3202 = vmatpush1.bf16.msra.mxu0 0
    %3203 = vmatprep.subr.bf16.mxu0 0
    %3204 = vmatpush1.bf16.msra.mxu0 0
    %3205 = vmatprep.mubr.bf16.mxu0 0
    %3206 = vmatmul.mubr.bf16.gmra.mrb[0].mxu0 %v2953
    %v3207 = vpop.f32.mrb[0].mxu0
    %v3208 = vadd.f32 0.0, %v3207
    %v3209 = vpop.f32.mrb[0].mxu0
    %v3210 = vpop.f32.mrb[0].mxu0
    %v3211 = vadd.f32 0.0, %v3210
    %v3212 = vpop.f32.mrb[0].mxu0
    %3213 = vmatprep.mubr.bf16.mxu0 0
    %3214 = vmatmul.mubr.bf16.gmra.mrb[0].mxu0 %v2962
    %v3215 = vpop.f32.mrb[0].mxu0
    %v3216 = vadd.f32 0.0, %v3215
    %v3217 = vpop.f32.mrb[0].mxu0
    %v3218 = vpop.f32.mrb[0].mxu0
    %v3219 = vadd.f32 0.0, %v3218
    %v3220 = vpop.f32.mrb[0].mxu0
    %3221 = vmatprep.mubr.bf16.mxu0 0
    %3222 = vmatmul.mubr.bf16.gmra.mrb[0].mxu0 %v2971
    %v3223 = vpop.f32.mrb[0].mxu0
    %v3224 = vadd.f32 0.0, %v3223
    %v3225 = vpop.f32.mrb[0].mxu0
    %v3226 = vpop.f32.mrb[0].mxu0
    %v3227 = vadd.f32 0.0, %v3226
    %v3228 = vpop.f32.mrb[0].mxu0
    %3229 = vmatprep.mubr.bf16.mxu0 0
    %3230 = vmatmul.mubr.bf16.gmra.mrb[0].mxu0 %v2980
    %v3231 = vpop.f32.mrb[0].mxu0
    %v3232 = vadd.f32 0.0, %v3231
    %v3233 = vpop.f32.mrb[0].mxu0
    %v3234 = vpop.f32.mrb[0].mxu0
    %v3235 = vadd.f32 0.0, %v3234
    %v3236 = vpop.f32.mrb[0].mxu0
    %3237 = vmatprep.mubr.bf16.mxu0 0
    %3238 = vmatmul.mubr.bf16.gmra.mrb[0].mxu0 %v2989
    %v3239 = vpop.f32.mrb[0].mxu0
    %v3240 = vadd.f32 0.0, %v3239
    %v3241 = vpop.f32.mrb[0].mxu0
    %v3242 = vpop.f32.mrb[0].mxu0
    %v3243 = vadd.f32 0.0, %v3242
    %v3244 = vpop.f32.mrb[0].mxu0
    %3245 = vmatprep.mubr.bf16.mxu0 0
    %3246 = vmatmul.mubr.bf16.gmra.mrb[0].mxu0 %v2998
    %v3247 = vpop.f32.mrb[0].mxu0
    %v3248 = vadd.f32 0.0, %v3247
    %v3249 = vpop.f32.mrb[0].mxu0
    %v3250 = vpop.f32.mrb[0].mxu0
    %v3251 = vadd.f32 0.0, %v3250
    %v3252 = vpop.f32.mrb[0].mxu0
    %3253 = vmatprep.mubr.bf16.mxu0 0
    %3254 = vmatmul.mubr.bf16.gmra.mrb[0].mxu0 %v3007
    %v3255 = vpop.f32.mrb[0].mxu0
    %v3256 = vadd.f32 0.0, %v3255
    %v3257 = vpop.f32.mrb[0].mxu0
    %v3258 = vpop.f32.mrb[0].mxu0
    %v3259 = vadd.f32 0.0, %v3258
    %v3260 = vpop.f32.mrb[0].mxu0
    %3261 = vmatprep.mubr.bf16.mxu0 0
    %3262 = vmatmul.mubr.bf16.gmra.mrb[0].mxu0 %v3016
    %v3263 = vpop.f32.mrb[0].mxu0
    %v3264 = vadd.f32 0.0, %v3263
    %v3265 = vpop.f32.mrb[0].mxu0
    %v3266 = vpop.f32.mrb[0].mxu0
    %v3267 = vadd.f32 0.0, %v3266
    %v3268 = vpop.f32.mrb[0].mxu0
    %3269 = vmatprep.mubr.bf16.mxu0 0
    %3270 = vmatmul.mubr.bf16.gmra.mrb[0].mxu0 %v3025
    %v3271 = vpop.f32.mrb[0].mxu0
    %v3272 = vadd.f32 0.0, %v3271
    %v3273 = vpop.f32.mrb[0].mxu0
    %v3274 = vpop.f32.mrb[0].mxu0
    %v3275 = vadd.f32 0.0, %v3274
    %v3276 = vpop.f32.mrb[0].mxu0
    %3277 = vmatprep.mubr.bf16.mxu0 0
    %3278 = vmatmul.mubr.bf16.gmra.mrb[0].mxu0 %v3034
    %v3279 = vpop.f32.mrb[0].mxu0
    %v3280 = vadd.f32 0.0, %v3279
    %v3281 = vpop.f32.mrb[0].mxu0
    %v3282 = vpop.f32.mrb[0].mxu0
    %v3283 = vadd.f32 0.0, %v3282
    %v3284 = vpop.f32.mrb[0].mxu0
    %3285 = vmatprep.mubr.bf16.mxu0 0
    %3286 = vmatmul.mubr.bf16.gmra.mrb[0].mxu0 %v3043
    %v3287 = vpop.f32.mrb[0].mxu0
    %v3288 = vadd.f32 0.0, %v3287
    %v3289 = vpop.f32.mrb[0].mxu0
    %v3290 = vpop.f32.mrb[0].mxu0
    %v3291 = vadd.f32 0.0, %v3290
    %v3292 = vpop.f32.mrb[0].mxu0
    %3293 = vmatprep.mubr.bf16.mxu0 0
    %3294 = vmatmul.mubr.bf16.gmra.mrb[0].mxu0 %v3052
    %v3295 = vpop.f32.mrb[0].mxu0
    %v3296 = vadd.f32 0.0, %v3295
    %v3297 = vpop.f32.mrb[0].mxu0
    %v3298 = vpop.f32.mrb[0].mxu0
    %v3299 = vadd.f32 0.0, %v3298
    %v3300 = vpop.f32.mrb[0].mxu0
    %3301 = vmatprep.mubr.bf16.mxu0 0
    %3302 = vmatmul.mubr.bf16.gmra.mrb[0].mxu0 %v3061
    %v3303 = vpop.f32.mrb[0].mxu0
    %v3304 = vadd.f32 0.0, %v3303
    %v3305 = vpop.f32.mrb[0].mxu0
    %v3306 = vpop.f32.mrb[0].mxu0
    %v3307 = vadd.f32 0.0, %v3306
    %v3308 = vpop.f32.mrb[0].mxu0
    %3309 = vmatprep.mubr.bf16.mxu0 0
    %3310 = vmatmul.mubr.bf16.gmra.mrb[0].mxu0 %v3070
    %v3311 = vpop.f32.mrb[0].mxu0
    %v3312 = vadd.f32 0.0, %v3311
    %v3313 = vpop.f32.mrb[0].mxu0
    %v3314 = vpop.f32.mrb[0].mxu0
    %v3315 = vadd.f32 0.0, %v3314
    %v3316 = vpop.f32.mrb[0].mxu0
    %3317 = vmatprep.mubr.bf16.mxu0 0
    %3318 = vmatmul.mubr.bf16.gmra.mrb[0].mxu0 %v3079
    %v3319 = vpop.f32.mrb[0].mxu0
    %v3320 = vadd.f32 0.0, %v3319
    %v3321 = vpop.f32.mrb[0].mxu0
    %v3322 = vpop.f32.mrb[0].mxu0
    %v3323 = vadd.f32 0.0, %v3322
    %v3324 = vpop.f32.mrb[0].mxu0
    %3325 = vmatprep.mubr.bf16.mxu0 0
    %3326 = vmatmul.mubr.bf16.gmra.mrb[0].mxu0 %v3088
    %v3327 = vpop.f32.mrb[0].mxu0
    %v3328 = vadd.f32 0.0, %v3327
    %v3329 = vpop.f32.mrb[0].mxu0
    %v3330 = vpop.f32.mrb[0].mxu0
    %v3331 = vadd.f32 0.0, %v3330
    %v3332 = vpop.f32.mrb[0].mxu0
    %3333 = vmatprep.mubr.bf16.mxu0 0
    %3334 = vmatmul.mubr.bf16.gmra.mrb[0].mxu0 %v3097
    %v3335 = vpop.f32.mrb[0].mxu0
    %v3336 = vadd.f32 0.0, %v3335
    %v3337 = vpop.f32.mrb[0].mxu0
    %v3338 = vpop.f32.mrb[0].mxu0
    %v3339 = vadd.f32 0.0, %v3338
    %v3340 = vpop.f32.mrb[0].mxu0
    %3341 = vmatprep.mubr.bf16.mxu0 0
    %3342 = vmatmul.mubr.bf16.gmra.mrb[0].mxu0 %v3106
    %v3343 = vpop.f32.mrb[0].mxu0
    %v3344 = vadd.f32 0.0, %v3343
    %v3345 = vpop.f32.mrb[0].mxu0
    %v3346 = vpop.f32.mrb[0].mxu0
    %v3347 = vadd.f32 0.0, %v3346
    %v3348 = vpop.f32.mrb[0].mxu0
    %3349 = vdwg.mxu0
    %v3350 = vadd.f32 %v2879, %v3208
    %v3351 = vadd.f32 %v2880, %v3211
    %v3352 = vadd.f32 %v2881, %v3216
    %v3353 = vadd.f32 %v2882, %v3219
    %v3354 = vadd.f32 %v2883, %v3224
    %v3355 = vadd.f32 %v2884, %v3227
    %v3356 = vadd.f32 %v2885, %v3232
    %v3357 = vadd.f32 %v2886, %v3235
    %v3358 = vadd.f32 %v2887, %v3240
    %v3359 = vadd.f32 %v2888, %v3243
    %v3360 = vadd.f32 %v2889, %v3248
    %v3361 = vadd.f32 %v2890, %v3251
    %v3362 = vadd.f32 %v2891, %v3256
    %v3363 = vadd.f32 %v2892, %v3259
    %v3364 = vadd.f32 %v2893, %v3264
    %v3365 = vadd.f32 %v2894, %v3267
    %v3366 = vadd.f32 %v2895, %v3272
    %v3367 = vadd.f32 %v2896, %v3275
    %v3368 = vadd.f32 %v2897, %v3280
    %v3369 = vadd.f32 %v2898, %v3283
    %v3370 = vadd.f32 %v2899, %v3288
    %v3371 = vadd.f32 %v2900, %v3291
    %v3372 = vadd.f32 %v2901, %v3296
    %v3373 = vadd.f32 %v2902, %v3299
    %v3374 = vadd.f32 %v2903, %v3304
    %v3375 = vadd.f32 %v2904, %v3307
    %v3376 = vadd.f32 %v2905, %v3312
    %v3377 = vadd.f32 %v2906, %v3315
    %v3378 = vadd.f32 %v2907, %v3320
    %v3379 = vadd.f32 %v2908, %v3323
    %v3380 = vadd.f32 %v2909, %v3328
    %v3381 = vadd.f32 %v2910, %v3331
    %v3382 = vadd.f32 %v2911, %v3336
    %v3383 = vadd.f32 %v2912, %v3339
    %v3384 = vadd.f32 %v2913, %v3344
    %v3385 = vadd.f32 %v2914, %v3347
    %v3386 = vld [vmem:[#allocation2 + $0x10] sm:$0x8]
    %s3387 = scalar_lea.vmem [#allocation5], 512
    %v3388 = vld [vmem:[%s3387] sm:$0xf]
    %v3389 = vld [vmem:[%s3387 + $0x4] sm:$0xf]
    %v3390 = vld [vmem:[%s3387 + $0x8] sm:$0xf]
    %v3391 = vld [vmem:[%s3387 + $0xc] sm:$0xf]
    %v3392 = vld [vmem:[%s3387 + $0x10] sm:$0xf]
    %v3393 = vld [vmem:[%s3387 + $0x14] sm:$0xf]
    %v3394 = vld [vmem:[%s3387 + $0x18] sm:$0xf]
    %v3395 = vld [vmem:[%s3387 + $0x1c] sm:$0xf]
    %v3396 = vld [vmem:[%s3387 + $0x20] sm:$0xf]
    %v3397 = vld [vmem:[%s3387 + $0x24] sm:$0xf]
    %v3398 = vld [vmem:[%s3387 + $0x28] sm:$0xf]
    %v3399 = vld [vmem:[%s3387 + $0x2c] sm:$0xf]
    %v3400 = vld [vmem:[%s3387 + $0x30] sm:$0xf]
    %v3401 = vld [vmem:[%s3387 + $0x34] sm:$0xf]
    %v3402 = vld [vmem:[%s3387 + $0x38] sm:$0xf]
    %v3403 = vld [vmem:[%s3387 + $0x3c] sm:$0xf]
    %v3405 = vunpack.c.l.b16 %v3386
    %v3406 = vpack.c.b16 %v2544, %v3405
    %vm3407 = vcmask 1044480
    %v3408 = vrot.slane %v3406, 3
    %v3409 = vrot.slane %v2581, 3
    %v3410 = vsel %vm3407, %v3408, %v3409
    %v3411 = vrot.slane %v2582, 3
    %v3412 = vsel %vm3407, %v3409, %v3411
    %v3413 = vrot.slane %v2583, 3
    %v3414 = vsel %vm3407, %v3411, %v3413
    %v3415 = vrot.slane %v2584, 3
    %v3416 = vsel %vm3407, %v3413, %v3415
    %v3417 = vrot.slane %v2585, 3
    %v3418 = vsel %vm3407, %v3415, %v3417
    %v3419 = vrot.slane %v2586, 3
    %v3420 = vsel %vm3407, %v3417, %v3419
    %v3421 = vrot.slane %v2587, 3
    %v3422 = vsel %vm3407, %v3419, %v3421
    %v3423 = vrot.slane %v2588, 3
    %v3424 = vsel %vm3407, %v3421, %v3423
    %v3425 = vrot.slane %v2589, 3
    %v3426 = vsel %vm3407, %v3423, %v3425
    %v3427 = vrot.slane %v2590, 3
    %v3428 = vsel %vm3407, %v3425, %v3427
    %v3429 = vrot.slane %v2591, 3
    %v3430 = vsel %vm3407, %v3427, %v3429
    %v3431 = vrot.slane %v2592, 3
    %v3432 = vsel %vm3407, %v3429, %v3431
    %v3433 = vrot.slane %v2593, 3
    %v3434 = vsel %vm3407, %v3431, %v3433
    %v3435 = vrot.slane %v2594, 3
    %v3436 = vsel %vm3407, %v3433, %v3435
    %v3437 = vrot.slane %v2595, 3
    %v3438 = vsel %vm3407, %v3435, %v3437
    %v3439 = vrot.slane %v2596, 3
    %v3440 = vsel %vm3407, %v3437, %v3439
    %v3441 = vrot.slane %v2597, 3
    %v3442 = vsel %vm3407, %v3439, %v3441
    %v3443 = vrot.slane %v2935, 3
    %v3444 = vsel %vm3407, %v3441, %v3443
    %v3479 = vunpack.c.l.b16 %v3388
    %v3480 = vunpack.c.l.b16 %v3389
    %v3481 = vunpack.c.l.b16 %v3390
    %v3482 = vunpack.c.l.b16 %v3391
    %v3483 = vunpack.c.l.b16 %v3392
    %v3484 = vunpack.c.l.b16 %v3393
    %v3485 = vunpack.c.l.b16 %v3394
    %v3486 = vunpack.c.l.b16 %v3395
    %v3487 = vunpack.c.l.b16 %v3396
    %v3488 = vunpack.c.l.b16 %v3397
    %v3489 = vunpack.c.l.b16 %v3398
    %v3490 = vunpack.c.l.b16 %v3399
    %v3491 = vunpack.c.l.b16 %v3400
    %v3492 = vunpack.c.l.b16 %v3401
    %v3493 = vunpack.c.l.b16 %v3402
    %v3494 = vunpack.c.l.b16 %v3403
    %v3495 = vpack.c.b16 %v3480, %v3479
    %v3496 = vpack.c.b16 %v3482, %v3481
    %v3497 = vpack.c.b16 %v3484, %v3483
    %v3498 = vpack.c.b16 %v3486, %v3485
    %v3499 = vpack.c.b16 %v3488, %v3487
    %v3500 = vpack.c.b16 %v3490, %v3489
    %v3501 = vpack.c.b16 %v3492, %v3491
    %v3502 = vpack.c.b16 %v3494, %v3493
    %3511 = vmatprep.subr.bf16.mxu0 0
    %3512 = vmatpush1.bf16.msra.mxu0 %v3495
    %3513 = vmatprep.subr.bf16.mxu0 0
    %3514 = vmatpush1.bf16.msra.mxu0 %v3496
    %3515 = vmatprep.subr.bf16.mxu0 0
    %3516 = vmatpush1.bf16.msra.mxu0 %v3497
    %3517 = vmatprep.subr.bf16.mxu0 0
    %3518 = vmatpush1.bf16.msra.mxu0 %v3498
    %3519 = vmatprep.subr.bf16.mxu0 0
    %3520 = vmatpush1.bf16.msra.mxu0 %v3499
    %3521 = vmatprep.subr.bf16.mxu0 0
    %3522 = vmatpush1.bf16.msra.mxu0 %v3500
    %3523 = vmatprep.subr.bf16.mxu0 0
    %3524 = vmatpush1.bf16.msra.mxu0 %v3501
    %3525 = vmatprep.subr.bf16.mxu0 0
    %3526 = vmatpush1.bf16.msra.mxu0 %v3502
    %3527 = vmatprep.subr.bf16.mxu0 0
    %3528 = vmatpush1.bf16.msra.mxu0 0
    %3529 = vmatprep.subr.bf16.mxu0 0
    %3530 = vmatpush1.bf16.msra.mxu0 0
    %3531 = vmatprep.subr.bf16.mxu0 0
    %3532 = vmatpush1.bf16.msra.mxu0 0
    %3533 = vmatprep.subr.bf16.mxu0 0
    %3534 = vmatpush1.bf16.msra.mxu0 0
    %3535 = vmatprep.subr.bf16.mxu0 0
    %3536 = vmatpush1.bf16.msra.mxu0 0
    %3537 = vmatprep.subr.bf16.mxu0 0
    %3538 = vmatpush1.bf16.msra.mxu0 0
    %3539 = vmatprep.subr.bf16.mxu0 0
    %3540 = vmatpush1.bf16.msra.mxu0 0
    %3541 = vmatprep.subr.bf16.mxu0 0
    %3542 = vmatpush1.bf16.msra.mxu0 0
    %3543 = vmatprep.mubr.bf16.mxu0 0
    %3544 = vmatmul.mubr.bf16.gmra.mrb[0].mxu0 %v3410
    %v3545 = vpop.f32.mrb[0].mxu0
    %v3546 = vadd.f32 0.0, %v3545
    %v3547 = vpop.f32.mrb[0].mxu0
    %v3548 = vpop.f32.mrb[0].mxu0
    %v3549 = vadd.f32 0.0, %v3548
    %v3550 = vpop.f32.mrb[0].mxu0
    %3551 = vmatprep.mubr.bf16.mxu0 0
    %3552 = vmatmul.mubr.bf16.gmra.mrb[0].mxu0 %v3412
    %v3553 = vpop.f32.mrb[0].mxu0
    %v3554 = vadd.f32 0.0, %v3553
    %v3555 = vpop.f32.mrb[0].mxu0
    %v3556 = vpop.f32.mrb[0].mxu0
    %v3557 = vadd.f32 0.0, %v3556
    %v3558 = vpop.f32.mrb[0].mxu0
    %3559 = vmatprep.mubr.bf16.mxu0 0
    %3560 = vmatmul.mubr.bf16.gmra.mrb[0].mxu0 %v3414
    %v3561 = vpop.f32.mrb[0].mxu0
    %v3562 = vadd.f32 0.0, %v3561
    %v3563 = vpop.f32.mrb[0].mxu0
    %v3564 = vpop.f32.mrb[0].mxu0
    %v3565 = vadd.f32 0.0, %v3564
    %v3566 = vpop.f32.mrb[0].mxu0
    %3567 = vmatprep.mubr.bf16.mxu0 0
    %3568 = vmatmul.mubr.bf16.gmra.mrb[0].mxu0 %v3416
    %v3569 = vpop.f32.mrb[0].mxu0
    %v3570 = vadd.f32 0.0, %v3569
    %v3571 = vpop.f32.mrb[0].mxu0
    %v3572 = vpop.f32.mrb[0].mxu0
    %v3573 = vadd.f32 0.0, %v3572
    %v3574 = vpop.f32.mrb[0].mxu0
    %3575 = vmatprep.mubr.bf16.mxu0 0
    %3576 = vmatmul.mubr.bf16.gmra.mrb[0].mxu0 %v3418
    %v3577 = vpop.f32.mrb[0].mxu0
    %v3578 = vadd.f32 0.0, %v3577
    %v3579 = vpop.f32.mrb[0].mxu0
    %v3580 = vpop.f32.mrb[0].mxu0
    %v3581 = vadd.f32 0.0, %v3580
    %v3582 = vpop.f32.mrb[0].mxu0
    %3583 = vmatprep.mubr.bf16.mxu0 0
    %3584 = vmatmul.mubr.bf16.gmra.mrb[0].mxu0 %v3420
    %v3585 = vpop.f32.mrb[0].mxu0
    %v3586 = vadd.f32 0.0, %v3585
    %v3587 = vpop.f32.mrb[0].mxu0
    %v3588 = vpop.f32.mrb[0].mxu0
    %v3589 = vadd.f32 0.0, %v3588
    %v3590 = vpop.f32.mrb[0].mxu0
    %3591 = vmatprep.mubr.bf16.mxu0 0
    %3592 = vmatmul.mubr.bf16.gmra.mrb[0].mxu0 %v3422
    %v3593 = vpop.f32.mrb[0].mxu0
    %v3594 = vadd.f32 0.0, %v3593
    %v3595 = vpop.f32.mrb[0].mxu0
    %v3596 = vpop.f32.mrb[0].mxu0
    %v3597 = vadd.f32 0.0, %v3596
    %v3598 = vpop.f32.mrb[0].mxu0
    %3599 = vmatprep.mubr.bf16.mxu0 0
    %3600 = vmatmul.mubr.bf16.gmra.mrb[0].mxu0 %v3424
    %v3601 = vpop.f32.mrb[0].mxu0
    %v3602 = vadd.f32 0.0, %v3601
    %v3603 = vpop.f32.mrb[0].mxu0
    %v3604 = vpop.f32.mrb[0].mxu0
    %v3605 = vadd.f32 0.0, %v3604
    %v3606 = vpop.f32.mrb[0].mxu0
    %3607 = vmatprep.mubr.bf16.mxu0 0
    %3608 = vmatmul.mubr.bf16.gmra.mrb[0].mxu0 %v3426
    %v3609 = vpop.f32.mrb[0].mxu0
    %v3610 = vadd.f32 0.0, %v3609
    %v3611 = vpop.f32.mrb[0].mxu0
    %v3612 = vpop.f32.mrb[0].mxu0
    %v3613 = vadd.f32 0.0, %v3612
    %v3614 = vpop.f32.mrb[0].mxu0
    %3615 = vmatprep.mubr.bf16.mxu0 0
    %3616 = vmatmul.mubr.bf16.gmra.mrb[0].mxu0 %v3428
    %v3617 = vpop.f32.mrb[0].mxu0
    %v3618 = vadd.f32 0.0, %v3617
    %v3619 = vpop.f32.mrb[0].mxu0
    %v3620 = vpop.f32.mrb[0].mxu0
    %v3621 = vadd.f32 0.0, %v3620
    %v3622 = vpop.f32.mrb[0].mxu0
    %3623 = vmatprep.mubr.bf16.mxu0 0
    %3624 = vmatmul.mubr.bf16.gmra.mrb[0].mxu0 %v3430
    %v3625 = vpop.f32.mrb[0].mxu0
    %v3626 = vadd.f32 0.0, %v3625
    %v3627 = vpop.f32.mrb[0].mxu0
    %v3628 = vpop.f32.mrb[0].mxu0
    %v3629 = vadd.f32 0.0, %v3628
    %v3630 = vpop.f32.mrb[0].mxu0
    %3631 = vmatprep.mubr.bf16.mxu0 0
    %3632 = vmatmul.mubr.bf16.gmra.mrb[0].mxu0 %v3432
    %v3633 = vpop.f32.mrb[0].mxu0
    %v3634 = vadd.f32 0.0, %v3633
    %v3635 = vpop.f32.mrb[0].mxu0
    %v3636 = vpop.f32.mrb[0].mxu0
    %v3637 = vadd.f32 0.0, %v3636
    %v3638 = vpop.f32.mrb[0].mxu0
    %3639 = vmatprep.mubr.bf16.mxu0 0
    %3640 = vmatmul.mubr.bf16.gmra.mrb[0].mxu0 %v3434
    %v3641 = vpop.f32.mrb[0].mxu0
    %v3642 = vadd.f32 0.0, %v3641
    %v3643 = vpop.f32.mrb[0].mxu0
    %v3644 = vpop.f32.mrb[0].mxu0
    %v3645 = vadd.f32 0.0, %v3644
    %v3646 = vpop.f32.mrb[0].mxu0
    %3647 = vmatprep.mubr.bf16.mxu0 0
    %3648 = vmatmul.mubr.bf16.gmra.mrb[0].mxu0 %v3436
    %v3649 = vpop.f32.mrb[0].mxu0
    %v3650 = vadd.f32 0.0, %v3649
    %v3651 = vpop.f32.mrb[0].mxu0
    %v3652 = vpop.f32.mrb[0].mxu0
    %v3653 = vadd.f32 0.0, %v3652
    %v3654 = vpop.f32.mrb[0].mxu0
    %3655 = vmatprep.mubr.bf16.mxu0 0
    %3656 = vmatmul.mubr.bf16.gmra.mrb[0].mxu0 %v3438
    %v3657 = vpop.f32.mrb[0].mxu0
    %v3658 = vadd.f32 0.0, %v3657
    %v3659 = vpop.f32.mrb[0].mxu0
    %v3660 = vpop.f32.mrb[0].mxu0
    %v3661 = vadd.f32 0.0, %v3660
    %v3662 = vpop.f32.mrb[0].mxu0
    %3663 = vmatprep.mubr.bf16.mxu0 0
    %3664 = vmatmul.mubr.bf16.gmra.mrb[0].mxu0 %v3440
    %v3665 = vpop.f32.mrb[0].mxu0
    %v3666 = vadd.f32 0.0, %v3665
    %v3667 = vpop.f32.mrb[0].mxu0
    %v3668 = vpop.f32.mrb[0].mxu0
    %v3669 = vadd.f32 0.0, %v3668
    %v3670 = vpop.f32.mrb[0].mxu0
    %3671 = vmatprep.mubr.bf16.mxu0 0
    %3672 = vmatmul.mubr.bf16.gmra.mrb[0].mxu0 %v3442
    %v3673 = vpop.f32.mrb[0].mxu0
    %v3674 = vadd.f32 0.0, %v3673
    %v3675 = vpop.f32.mrb[0].mxu0
    %v3676 = vpop.f32.mrb[0].mxu0
    %v3677 = vadd.f32 0.0, %v3676
    %v3678 = vpop.f32.mrb[0].mxu0
    %3679 = vmatprep.mubr.bf16.mxu0 0
    %3680 = vmatmul.mubr.bf16.gmra.mrb[0].mxu0 %v3444
    %v3681 = vpop.f32.mrb[0].mxu0
    %v3682 = vadd.f32 0.0, %v3681
    %v3683 = vpop.f32.mrb[0].mxu0
    %v3684 = vpop.f32.mrb[0].mxu0
    %v3685 = vadd.f32 0.0, %v3684
    %v3686 = vpop.f32.mrb[0].mxu0
    %3687 = vdwg.mxu0
    %v3688 = vadd.f32 %v3350, %v3546
    %v3689 = vadd.f32 %v3351, %v3549
    %v3690 = vadd.f32 %v3352, %v3554
    %v3691 = vadd.f32 %v3353, %v3557
    %v3692 = vadd.f32 %v3354, %v3562
    %v3693 = vadd.f32 %v3355, %v3565
    %v3694 = vadd.f32 %v3356, %v3570
    %v3695 = vadd.f32 %v3357, %v3573
    %v3696 = vadd.f32 %v3358, %v3578
    %v3697 = vadd.f32 %v3359, %v3581
    %v3698 = vadd.f32 %v3360, %v3586
    %v3699 = vadd.f32 %v3361, %v3589
    %v3700 = vadd.f32 %v3362, %v3594
    %v3701 = vadd.f32 %v3363, %v3597
    %v3702 = vadd.f32 %v3364, %v3602
    %v3703 = vadd.f32 %v3365, %v3605
    %v3704 = vadd.f32 %v3366, %v3610
    %v3705 = vadd.f32 %v3367, %v3613
    %v3706 = vadd.f32 %v3368, %v3618
    %v3707 = vadd.f32 %v3369, %v3621
    %v3708 = vadd.f32 %v3370, %v3626
    %v3709 = vadd.f32 %v3371, %v3629
    %v3710 = vadd.f32 %v3372, %v3634
    %v3711 = vadd.f32 %v3373, %v3637
    %v3712 = vadd.f32 %v3374, %v3642
    %v3713 = vadd.f32 %v3375, %v3645
    %v3714 = vadd.f32 %v3376, %v3650
    %v3715 = vadd.f32 %v3377, %v3653
    %v3716 = vadd.f32 %v3378, %v3658
    %v3717 = vadd.f32 %v3379, %v3661
    %v3718 = vadd.f32 %v3380, %v3666
    %v3719 = vadd.f32 %v3381, %v3669
    %v3720 = vadd.f32 %v3382, %v3674
    %v3721 = vadd.f32 %v3383, %v3677
    %v3722 = vadd.f32 %v3384, %v3682
    %v3723 = vadd.f32 %v3385, %v3685
    %v3724 = vld [vmem:[%s2] sm:$0x1]
    %v3726 = vlaneseq
    %v3727 = vshrl.u32 %v3726, 7
    %v3728 = vsub.s32 0, %v3727
    %v3729 = vrot.slane %v3724, %v3728
    %v3731 = vadd.f32 %v3688, %v3729
    %v3732 = vadd.f32 %v3689, %v3729
    %v3733 = vadd.f32 %v3690, %v3729
    %v3734 = vadd.f32 %v3691, %v3729
    %v3735 = vadd.f32 %v3692, %v3729
    %v3736 = vadd.f32 %v3693, %v3729
    %v3737 = vadd.f32 %v3694, %v3729
    %v3738 = vadd.f32 %v3695, %v3729
    %v3739 = vadd.f32 %v3696, %v3729
    %v3740 = vadd.f32 %v3697, %v3729
    %v3741 = vadd.f32 %v3698, %v3729
    %v3742 = vadd.f32 %v3699, %v3729
    %v3743 = vadd.f32 %v3700, %v3729
    %v3744 = vadd.f32 %v3701, %v3729
    %v3745 = vadd.f32 %v3702, %v3729
    %v3746 = vadd.f32 %v3703, %v3729
    %v3747 = vadd.f32 %v3704, %v3729
    %v3748 = vadd.f32 %v3705, %v3729
    %v3749 = vadd.f32 %v3706, %v3729
    %v3750 = vadd.f32 %v3707, %v3729
    %v3751 = vadd.f32 %v3708, %v3729
    %v3752 = vadd.f32 %v3709, %v3729
    %v3753 = vadd.f32 %v3710, %v3729
    %v3754 = vadd.f32 %v3711, %v3729
    %v3755 = vadd.f32 %v3712, %v3729
    %v3756 = vadd.f32 %v3713, %v3729
    %v3757 = vadd.f32 %v3714, %v3729
    %v3758 = vadd.f32 %v3715, %v3729
    %v3759 = vadd.f32 %v3716, %v3729
    %v3760 = vadd.f32 %v3717, %v3729
    %v3761 = vadd.f32 %v3718, %v3729
    %v3762 = vadd.f32 %v3719, %v3729
    %v3763 = vadd.f32 %v3720, %v3729
    %v3764 = vadd.f32 %v3721, %v3729
    %v3765 = vadd.f32 %v3722, %v3729
    %v3766 = vadd.f32 %v3723, %v3729
    %v3767 = vmax.f32 %v3731, 0.0
    %v3768 = vmax.f32 %v3732, 0.0
    %v3769 = vmax.f32 %v3733, 0.0
    %v3770 = vmax.f32 %v3734, 0.0
    %v3771 = vmax.f32 %v3735, 0.0
    %v3772 = vmax.f32 %v3736, 0.0
    %v3773 = vmax.f32 %v3737, 0.0
    %v3774 = vmax.f32 %v3738, 0.0
    %v3775 = vmax.f32 %v3739, 0.0
    %v3776 = vmax.f32 %v3740, 0.0
    %v3777 = vmax.f32 %v3741, 0.0
    %v3778 = vmax.f32 %v3742, 0.0
    %v3779 = vmax.f32 %v3743, 0.0
    %v3780 = vmax.f32 %v3744, 0.0
    %v3781 = vmax.f32 %v3745, 0.0
    %v3782 = vmax.f32 %v3746, 0.0
    %v3783 = vmax.f32 %v3747, 0.0
    %v3784 = vmax.f32 %v3748, 0.0
    %v3785 = vmax.f32 %v3749, 0.0
    %v3786 = vmax.f32 %v3750, 0.0
    %v3787 = vmax.f32 %v3751, 0.0
    %v3788 = vmax.f32 %v3752, 0.0
    %v3789 = vmax.f32 %v3753, 0.0
    %v3790 = vmax.f32 %v3754, 0.0
    %v3791 = vmax.f32 %v3755, 0.0
    %v3792 = vmax.f32 %v3756, 0.0
    %v3793 = vmax.f32 %v3757, 0.0
    %v3794 = vmax.f32 %v3758, 0.0
    %v3795 = vmax.f32 %v3759, 0.0
    %v3796 = vmax.f32 %v3760, 0.0
    %v3797 = vmax.f32 %v3761, 0.0
    %v3798 = vmax.f32 %v3762, 0.0
    %v3799 = vmax.f32 %v3763, 0.0
    %v3800 = vmax.f32 %v3764, 0.0
    %v3801 = vmax.f32 %v3765, 0.0
    %v3802 = vmax.f32 %v3766, 0.0
    %v3839 = vcombine.high %v3767, %v3767
    %v3841 = vunpack.c.l.s4 1983009808
    %v3842 = vunpack.c.0.s8 %v3841
    %v3843 = vlaneseq
    %v3844 = vshrl.u32 %v3843, 7
    %v3845 = vsub.s32 %v3842, %v3844
    %v3846 = vrot.slane %v3767, %v3845
    %v3848 = vunpack.c.l.s4 1983009808
    %v3849 = vunpack.c.0.s8 %v3848
    %v3850 = vlaneseq
    %v3851 = vshrl.u32 %v3850, 7
    %v3852 = vsub.s32 %v3849, %v3851
    %v3853 = vrot.slane %v3839, %v3852
    %v3854 = vcombine.high %v3846, %v3846
    %v3855 = vcombine.high %v3853, %v3853
    %v3856 = vcombine.high %v3768, %v3768
    %v3858 = vunpack.c.l.s4 1983009808
    %v3859 = vunpack.c.0.s8 %v3858
    %v3860 = vlaneseq
    %v3861 = vshrl.u32 %v3860, 7
    %v3862 = vsub.s32 %v3859, %v3861
    %v3863 = vrot.slane %v3768, %v3862
    %v3865 = vunpack.c.l.s4 1983009808
    %v3866 = vunpack.c.0.s8 %v3865
    %v3867 = vlaneseq
    %v3868 = vshrl.u32 %v3867, 7
    %v3869 = vsub.s32 %v3866, %v3868
    %v3870 = vrot.slane %v3856, %v3869
    %v3871 = vcombine.high %v3863, %v3863
    %v3872 = vcombine.high %v3870, %v3870
    %v3873 = vcombine.high %v3769, %v3769
    %v3875 = vunpack.c.l.s4 1983009808
    %v3876 = vunpack.c.0.s8 %v3875
    %v3877 = vlaneseq
    %v3878 = vshrl.u32 %v3877, 7
    %v3879 = vsub.s32 %v3876, %v3878
    %v3880 = vrot.slane %v3769, %v3879
    %v3882 = vunpack.c.l.s4 1983009808
    %v3883 = vunpack.c.0.s8 %v3882
    %v3884 = vlaneseq
    %v3885 = vshrl.u32 %v3884, 7
    %v3886 = vsub.s32 %v3883, %v3885
    %v3887 = vrot.slane %v3873, %v3886
    %v3888 = vcombine.high %v3880, %v3880
    %v3889 = vcombine.high %v3887, %v3887
    %v3890 = vcombine.high %v3770, %v3770
    %v3892 = vunpack.c.l.s4 1983009808
    %v3893 = vunpack.c.0.s8 %v3892
    %v3894 = vlaneseq
    %v3895 = vshrl.u32 %v3894, 7
    %v3896 = vsub.s32 %v3893, %v3895
    %v3897 = vrot.slane %v3770, %v3896
    %v3899 = vunpack.c.l.s4 1983009808
    %v3900 = vunpack.c.0.s8 %v3899
    %v3901 = vlaneseq
    %v3902 = vshrl.u32 %v3901, 7
    %v3903 = vsub.s32 %v3900, %v3902
    %v3904 = vrot.slane %v3890, %v3903
    %v3905 = vcombine.high %v3897, %v3897
    %v3906 = vcombine.high %v3904, %v3904
    %v3907 = vcombine.high %v3771, %v3771
    %v3909 = vunpack.c.l.s4 1983009808
    %v3910 = vunpack.c.0.s8 %v3909
    %v3911 = vlaneseq
    %v3912 = vshrl.u32 %v3911, 7
    %v3913 = vsub.s32 %v3910, %v3912
    %v3914 = vrot.slane %v3771, %v3913
    %v3916 = vunpack.c.l.s4 1983009808
    %v3917 = vunpack.c.0.s8 %v3916
    %v3918 = vlaneseq
    %v3919 = vshrl.u32 %v3918, 7
    %v3920 = vsub.s32 %v3917, %v3919
    %v3921 = vrot.slane %v3907, %v3920
    %v3922 = vcombine.high %v3921, %v3921
    %v3923 = vcombine.high %v3772, %v3772
    %v3925 = vunpack.c.l.s4 1983009808
    %v3926 = vunpack.c.0.s8 %v3925
    %v3927 = vlaneseq
    %v3928 = vshrl.u32 %v3927, 7
    %v3929 = vsub.s32 %v3926, %v3928
    %v3930 = vrot.slane %v3772, %v3929
    %v3932 = vunpack.c.l.s4 1983009808
    %v3933 = vunpack.c.0.s8 %v3932
    %v3934 = vlaneseq
    %v3935 = vshrl.u32 %v3934, 7
    %v3936 = vsub.s32 %v3933, %v3935
    %v3937 = vrot.slane %v3923, %v3936
    %v3938 = vcombine.high %v3930, %v3930
    %v3939 = vcombine.high %v3937, %v3937
    %v3940 = vcombine.high %v3773, %v3773
    %v3942 = vunpack.c.l.s4 1983009808
    %v3943 = vunpack.c.0.s8 %v3942
    %v3944 = vlaneseq
    %v3945 = vshrl.u32 %v3944, 7
    %v3946 = vsub.s32 %v3943, %v3945
    %v3947 = vrot.slane %v3773, %v3946
    %v3949 = vunpack.c.l.s4 1983009808
    %v3950 = vunpack.c.0.s8 %v3949
    %v3951 = vlaneseq
    %v3952 = vshrl.u32 %v3951, 7
    %v3953 = vsub.s32 %v3950, %v3952
    %v3954 = vrot.slane %v3940, %v3953
    %v3955 = vcombine.high %v3947, %v3947
    %v3956 = vcombine.high %v3954, %v3954
    %v3957 = vcombine.high %v3774, %v3774
    %v3959 = vunpack.c.l.s4 1983009808
    %v3960 = vunpack.c.0.s8 %v3959
    %v3961 = vlaneseq
    %v3962 = vshrl.u32 %v3961, 7
    %v3963 = vsub.s32 %v3960, %v3962
    %v3964 = vrot.slane %v3774, %v3963
    %v3966 = vunpack.c.l.s4 1983009808
    %v3967 = vunpack.c.0.s8 %v3966
    %v3968 = vlaneseq
    %v3969 = vshrl.u32 %v3968, 7
    %v3970 = vsub.s32 %v3967, %v3969
    %v3971 = vrot.slane %v3957, %v3970
    %v3972 = vcombine.high %v3964, %v3964
    %v3973 = vcombine.high %v3971, %v3971
    %v3974 = vcombine.high %v3775, %v3775
    %v3976 = vunpack.c.l.s4 1983009808
    %v3977 = vunpack.c.0.s8 %v3976
    %v3978 = vlaneseq
    %v3979 = vshrl.u32 %v3978, 7
    %v3980 = vsub.s32 %v3977, %v3979
    %v3981 = vrot.slane %v3775, %v3980
    %v3983 = vunpack.c.l.s4 1983009808
    %v3984 = vunpack.c.0.s8 %v3983
    %v3985 = vlaneseq
    %v3986 = vshrl.u32 %v3985, 7
    %v3987 = vsub.s32 %v3984, %v3986
    %v3988 = vrot.slane %v3974, %v3987
    %v3989 = vcombine.high %v3981, %v3981
    %v3990 = vcombine.high %v3776, %v3776
    %v3992 = vunpack.c.l.s4 1983009808
    %v3993 = vunpack.c.0.s8 %v3992
    %v3994 = vlaneseq
    %v3995 = vshrl.u32 %v3994, 7
    %v3996 = vsub.s32 %v3993, %v3995
    %v3997 = vrot.slane %v3776, %v3996
    %v3999 = vunpack.c.l.s4 1983009808
    %v4000 = vunpack.c.0.s8 %v3999
    %v4001 = vlaneseq
    %v4002 = vshrl.u32 %v4001, 7
    %v4003 = vsub.s32 %v4000, %v4002
    %v4004 = vrot.slane %v3990, %v4003
    %v4005 = vcombine.high %v3997, %v3997
    %v4006 = vcombine.high %v4004, %v4004
    %v4007 = vcombine.high %v3777, %v3777
    %v4009 = vunpack.c.l.s4 1983009808
    %v4010 = vunpack.c.0.s8 %v4009
    %v4011 = vlaneseq
    %v4012 = vshrl.u32 %v4011, 7
    %v4013 = vsub.s32 %v4010, %v4012
    %v4014 = vrot.slane %v3777, %v4013
    %v4016 = vunpack.c.l.s4 1983009808
    %v4017 = vunpack.c.0.s8 %v4016
    %v4018 = vlaneseq
    %v4019 = vshrl.u32 %v4018, 7
    %v4020 = vsub.s32 %v4017, %v4019
    %v4021 = vrot.slane %v4007, %v4020
    %v4022 = vcombine.high %v4014, %v4014
    %v4023 = vcombine.high %v4021, %v4021
    %v4024 = vcombine.high %v3778, %v3778
    %v4026 = vunpack.c.l.s4 1983009808
    %v4027 = vunpack.c.0.s8 %v4026
    %v4028 = vlaneseq
    %v4029 = vshrl.u32 %v4028, 7
    %v4030 = vsub.s32 %v4027, %v4029
    %v4031 = vrot.slane %v3778, %v4030
    %v4033 = vunpack.c.l.s4 1983009808
    %v4034 = vunpack.c.0.s8 %v4033
    %v4035 = vlaneseq
    %v4036 = vshrl.u32 %v4035, 7
    %v4037 = vsub.s32 %v4034, %v4036
    %v4038 = vrot.slane %v4024, %v4037
    %v4039 = vcombine.high %v4031, %v4031
    %v4040 = vcombine.high %v4038, %v4038
    %v4041 = vcombine.high %v3779, %v3779
    %v4043 = vunpack.c.l.s4 1983009808
    %v4044 = vunpack.c.0.s8 %v4043
    %v4045 = vlaneseq
    %v4046 = vshrl.u32 %v4045, 7
    %v4047 = vsub.s32 %v4044, %v4046
    %v4048 = vrot.slane %v3779, %v4047
    %v4050 = vunpack.c.l.s4 1983009808
    %v4051 = vunpack.c.0.s8 %v4050
    %v4052 = vlaneseq
    %v4053 = vshrl.u32 %v4052, 7
    %v4054 = vsub.s32 %v4051, %v4053
    %v4055 = vrot.slane %v4041, %v4054
    %v4056 = vcombine.high %v4048, %v4048
    %v4057 = vcombine.high %v4055, %v4055
    %v4058 = vcombine.high %v3780, %v3780
    %v4060 = vunpack.c.l.s4 1983009808
    %v4061 = vunpack.c.0.s8 %v4060
    %v4062 = vlaneseq
    %v4063 = vshrl.u32 %v4062, 7
    %v4064 = vsub.s32 %v4061, %v4063
    %v4065 = vrot.slane %v3780, %v4064
    %v4067 = vunpack.c.l.s4 1983009808
    %v4068 = vunpack.c.0.s8 %v4067
    %v4069 = vlaneseq
    %v4070 = vshrl.u32 %v4069, 7
    %v4071 = vsub.s32 %v4068, %v4070
    %v4072 = vrot.slane %v4058, %v4071
    %v4073 = vcombine.high %v4072, %v4072
    %v4074 = vcombine.high %v3781, %v3781
    %v4076 = vunpack.c.l.s4 1983009808
    %v4077 = vunpack.c.0.s8 %v4076
    %v4078 = vlaneseq
    %v4079 = vshrl.u32 %v4078, 7
    %v4080 = vsub.s32 %v4077, %v4079
    %v4081 = vrot.slane %v3781, %v4080
    %v4083 = vunpack.c.l.s4 1983009808
    %v4084 = vunpack.c.0.s8 %v4083
    %v4085 = vlaneseq
    %v4086 = vshrl.u32 %v4085, 7
    %v4087 = vsub.s32 %v4084, %v4086
    %v4088 = vrot.slane %v4074, %v4087
    %v4089 = vcombine.high %v4081, %v4081
    %v4090 = vcombine.high %v4088, %v4088
    %v4091 = vcombine.high %v3782, %v3782
    %v4093 = vunpack.c.l.s4 1983009808
    %v4094 = vunpack.c.0.s8 %v4093
    %v4095 = vlaneseq
    %v4096 = vshrl.u32 %v4095, 7
    %v4097 = vsub.s32 %v4094, %v4096
    %v4098 = vrot.slane %v3782, %v4097
    %v4100 = vunpack.c.l.s4 1983009808
    %v4101 = vunpack.c.0.s8 %v4100
    %v4102 = vlaneseq
    %v4103 = vshrl.u32 %v4102, 7
    %v4104 = vsub.s32 %v4101, %v4103
    %v4105 = vrot.slane %v4091, %v4104
    %v4106 = vcombine.high %v4098, %v4098
    %v4107 = vcombine.high %v4105, %v4105
    %v4108 = vcombine.high %v3783, %v3783
    %v4110 = vunpack.c.l.s4 1983009808
    %v4111 = vunpack.c.0.s8 %v4110
    %v4112 = vlaneseq
    %v4113 = vshrl.u32 %v4112, 7
    %v4114 = vsub.s32 %v4111, %v4113
    %v4115 = vrot.slane %v3783, %v4114
    %v4117 = vunpack.c.l.s4 1983009808
    %v4118 = vunpack.c.0.s8 %v4117
    %v4119 = vlaneseq
    %v4120 = vshrl.u32 %v4119, 7
    %v4121 = vsub.s32 %v4118, %v4120
    %v4122 = vrot.slane %v4108, %v4121
    %v4123 = vcombine.high %v4115, %v4115
    %v4124 = vcombine.high %v4122, %v4122
    %v4125 = vcombine.high %v3784, %v3784
    %v4127 = vunpack.c.l.s4 1983009808
    %v4128 = vunpack.c.0.s8 %v4127
    %v4129 = vlaneseq
    %v4130 = vshrl.u32 %v4129, 7
    %v4131 = vsub.s32 %v4128, %v4130
    %v4132 = vrot.slane %v3784, %v4131
    %v4134 = vunpack.c.l.s4 1983009808
    %v4135 = vunpack.c.0.s8 %v4134
    %v4136 = vlaneseq
    %v4137 = vshrl.u32 %v4136, 7
    %v4138 = vsub.s32 %v4135, %v4137
    %v4139 = vrot.slane %v4125, %v4138
    %v4140 = vcombine.high %v4132, %v4132
    %v4141 = vcombine.high %v3785, %v3785
    %v4143 = vunpack.c.l.s4 1983009808
    %v4144 = vunpack.c.0.s8 %v4143
    %v4145 = vlaneseq
    %v4146 = vshrl.u32 %v4145, 7
    %v4147 = vsub.s32 %v4144, %v4146
    %v4148 = vrot.slane %v3785, %v4147
    %v4150 = vunpack.c.l.s4 1983009808
    %v4151 = vunpack.c.0.s8 %v4150
    %v4152 = vlaneseq
    %v4153 = vshrl.u32 %v4152, 7
    %v4154 = vsub.s32 %v4151, %v4153
    %v4155 = vrot.slane %v4141, %v4154
    %v4156 = vcombine.high %v4148, %v4148
    %v4157 = vcombine.high %v4155, %v4155
    %v4158 = vcombine.high %v3786, %v3786
    %v4160 = vunpack.c.l.s4 1983009808
    %v4161 = vunpack.c.0.s8 %v4160
    %v4162 = vlaneseq
    %v4163 = vshrl.u32 %v4162, 7
    %v4164 = vsub.s32 %v4161, %v4163
    %v4165 = vrot.slane %v3786, %v4164
    %v4167 = vunpack.c.l.s4 1983009808
    %v4168 = vunpack.c.0.s8 %v4167
    %v4169 = vlaneseq
    %v4170 = vshrl.u32 %v4169, 7
    %v4171 = vsub.s32 %v4168, %v4170
    %v4172 = vrot.slane %v4158, %v4171
    %v4173 = vcombine.high %v4165, %v4165
    %v4174 = vcombine.high %v4172, %v4172
    %v4175 = vcombine.high %v3787, %v3787
    %v4177 = vunpack.c.l.s4 1983009808
    %v4178 = vunpack.c.0.s8 %v4177
    %v4179 = vlaneseq
    %v4180 = vshrl.u32 %v4179, 7
    %v4181 = vsub.s32 %v4178, %v4180
    %v4182 = vrot.slane %v3787, %v4181
    %v4184 = vunpack.c.l.s4 1983009808
    %v4185 = vunpack.c.0.s8 %v4184
    %v4186 = vlaneseq
    %v4187 = vshrl.u32 %v4186, 7
    %v4188 = vsub.s32 %v4185, %v4187
    %v4189 = vrot.slane %v4175, %v4188
    %v4190 = vcombine.high %v4182, %v4182
    %v4191 = vcombine.high %v4189, %v4189
    %v4192 = vcombine.high %v3788, %v3788
    %v4194 = vunpack.c.l.s4 1983009808
    %v4195 = vunpack.c.0.s8 %v4194
    %v4196 = vlaneseq
    %v4197 = vshrl.u32 %v4196, 7
    %v4198 = vsub.s32 %v4195, %v4197
    %v4199 = vrot.slane %v3788, %v4198
    %v4201 = vunpack.c.l.s4 1983009808
    %v4202 = vunpack.c.0.s8 %v4201
    %v4203 = vlaneseq
    %v4204 = vshrl.u32 %v4203, 7
    %v4205 = vsub.s32 %v4202, %v4204
    %v4206 = vrot.slane %v4192, %v4205
    %v4207 = vcombine.high %v4199, %v4199
    %v4208 = vcombine.high %v4206, %v4206
    %v4209 = vcombine.high %v3789, %v3789
    %v4211 = vunpack.c.l.s4 1983009808
    %v4212 = vunpack.c.0.s8 %v4211
    %v4213 = vlaneseq
    %v4214 = vshrl.u32 %v4213, 7
    %v4215 = vsub.s32 %v4212, %v4214
    %v4216 = vrot.slane %v3789, %v4215
    %v4218 = vunpack.c.l.s4 1983009808
    %v4219 = vunpack.c.0.s8 %v4218
    %v4220 = vlaneseq
    %v4221 = vshrl.u32 %v4220, 7
    %v4222 = vsub.s32 %v4219, %v4221
    %v4223 = vrot.slane %v4209, %v4222
    %v4224 = vcombine.high %v4223, %v4223
    %v4225 = vcombine.high %v3790, %v3790
    %v4227 = vunpack.c.l.s4 1983009808
    %v4228 = vunpack.c.0.s8 %v4227
    %v4229 = vlaneseq
    %v4230 = vshrl.u32 %v4229, 7
    %v4231 = vsub.s32 %v4228, %v4230
    %v4232 = vrot.slane %v3790, %v4231
    %v4234 = vunpack.c.l.s4 1983009808
    %v4235 = vunpack.c.0.s8 %v4234
    %v4236 = vlaneseq
    %v4237 = vshrl.u32 %v4236, 7
    %v4238 = vsub.s32 %v4235, %v4237
    %v4239 = vrot.slane %v4225, %v4238
    %v4240 = vcombine.high %v4232, %v4232
    %v4241 = vcombine.high %v4239, %v4239
    %v4242 = vcombine.high %v3791, %v3791
    %v4244 = vunpack.c.l.s4 1983009808
    %v4245 = vunpack.c.0.s8 %v4244
    %v4246 = vlaneseq
    %v4247 = vshrl.u32 %v4246, 7
    %v4248 = vsub.s32 %v4245, %v4247
    %v4249 = vrot.slane %v3791, %v4248
    %v4251 = vunpack.c.l.s4 1983009808
    %v4252 = vunpack.c.0.s8 %v4251
    %v4253 = vlaneseq
    %v4254 = vshrl.u32 %v4253, 7
    %v4255 = vsub.s32 %v4252, %v4254
    %v4256 = vrot.slane %v4242, %v4255
    %v4257 = vcombine.high %v4249, %v4249
    %v4258 = vcombine.high %v4256, %v4256
    %v4259 = vcombine.high %v3792, %v3792
    %v4261 = vunpack.c.l.s4 1983009808
    %v4262 = vunpack.c.0.s8 %v4261
    %v4263 = vlaneseq
    %v4264 = vshrl.u32 %v4263, 7
    %v4265 = vsub.s32 %v4262, %v4264
    %v4266 = vrot.slane %v3792, %v4265
    %v4268 = vunpack.c.l.s4 1983009808
    %v4269 = vunpack.c.0.s8 %v4268
    %v4270 = vlaneseq
    %v4271 = vshrl.u32 %v4270, 7
    %v4272 = vsub.s32 %v4269, %v4271
    %v4273 = vrot.slane %v4259, %v4272
    %v4274 = vcombine.high %v4266, %v4266
    %v4275 = vcombine.high %v4273, %v4273
    %v4276 = vcombine.high %v3793, %v3793
    %v4278 = vunpack.c.l.s4 1983009808
    %v4279 = vunpack.c.0.s8 %v4278
    %v4280 = vlaneseq
    %v4281 = vshrl.u32 %v4280, 7
    %v4282 = vsub.s32 %v4279, %v4281
    %v4283 = vrot.slane %v3793, %v4282
    %v4285 = vunpack.c.l.s4 1983009808
    %v4286 = vunpack.c.0.s8 %v4285
    %v4287 = vlaneseq
    %v4288 = vshrl.u32 %v4287, 7
    %v4289 = vsub.s32 %v4286, %v4288
    %v4290 = vrot.slane %v4276, %v4289
    %v4291 = vcombine.high %v4283, %v4283
    %v4292 = vcombine.high %v3794, %v3794
    %v4294 = vunpack.c.l.s4 1983009808
    %v4295 = vunpack.c.0.s8 %v4294
    %v4296 = vlaneseq
    %v4297 = vshrl.u32 %v4296, 7
    %v4298 = vsub.s32 %v4295, %v4297
    %v4299 = vrot.slane %v3794, %v4298
    %v4301 = vunpack.c.l.s4 1983009808
    %v4302 = vunpack.c.0.s8 %v4301
    %v4303 = vlaneseq
    %v4304 = vshrl.u32 %v4303, 7
    %v4305 = vsub.s32 %v4302, %v4304
    %v4306 = vrot.slane %v4292, %v4305
    %v4307 = vcombine.high %v4299, %v4299
    %v4308 = vcombine.high %v4306, %v4306
    %v4309 = vcombine.high %v3795, %v3795
    %v4311 = vunpack.c.l.s4 1983009808
    %v4312 = vunpack.c.0.s8 %v4311
    %v4313 = vlaneseq
    %v4314 = vshrl.u32 %v4313, 7
    %v4315 = vsub.s32 %v4312, %v4314
    %v4316 = vrot.slane %v3795, %v4315
    %v4318 = vunpack.c.l.s4 1983009808
    %v4319 = vunpack.c.0.s8 %v4318
    %v4320 = vlaneseq
    %v4321 = vshrl.u32 %v4320, 7
    %v4322 = vsub.s32 %v4319, %v4321
    %v4323 = vrot.slane %v4309, %v4322
    %v4324 = vcombine.high %v4316, %v4316
    %v4325 = vcombine.high %v4323, %v4323
    %v4326 = vcombine.high %v3796, %v3796
    %v4328 = vunpack.c.l.s4 1983009808
    %v4329 = vunpack.c.0.s8 %v4328
    %v4330 = vlaneseq
    %v4331 = vshrl.u32 %v4330, 7
    %v4332 = vsub.s32 %v4329, %v4331
    %v4333 = vrot.slane %v3796, %v4332
    %v4335 = vunpack.c.l.s4 1983009808
    %v4336 = vunpack.c.0.s8 %v4335
    %v4337 = vlaneseq
    %v4338 = vshrl.u32 %v4337, 7
    %v4339 = vsub.s32 %v4336, %v4338
    %v4340 = vrot.slane %v4326, %v4339
    %v4341 = vcombine.high %v4333, %v4333
    %v4342 = vcombine.high %v4340, %v4340
    %v4343 = vcombine.high %v3797, %v3797
    %v4345 = vunpack.c.l.s4 1983009808
    %v4346 = vunpack.c.0.s8 %v4345
    %v4347 = vlaneseq
    %v4348 = vshrl.u32 %v4347, 7
    %v4349 = vsub.s32 %v4346, %v4348
    %v4350 = vrot.slane %v3797, %v4349
    %v4352 = vunpack.c.l.s4 1983009808
    %v4353 = vunpack.c.0.s8 %v4352
    %v4354 = vlaneseq
    %v4355 = vshrl.u32 %v4354, 7
    %v4356 = vsub.s32 %v4353, %v4355
    %v4357 = vrot.slane %v4343, %v4356
    %v4358 = vcombine.high %v4350, %v4350
    %v4359 = vcombine.high %v4357, %v4357
    %v4360 = vcombine.high %v3798, %v3798
    %v4362 = vunpack.c.l.s4 1983009808
    %v4363 = vunpack.c.0.s8 %v4362
    %v4364 = vlaneseq
    %v4365 = vshrl.u32 %v4364, 7
    %v4366 = vsub.s32 %v4363, %v4365
    %v4367 = vrot.slane %v3798, %v4366
    %v4369 = vunpack.c.l.s4 1983009808
    %v4370 = vunpack.c.0.s8 %v4369
    %v4371 = vlaneseq
    %v4372 = vshrl.u32 %v4371, 7
    %v4373 = vsub.s32 %v4370, %v4372
    %v4374 = vrot.slane %v4360, %v4373
    %v4375 = vcombine.high %v4374, %v4374
    %v4376 = vcombine.high %v3799, %v3799
    %v4378 = vunpack.c.l.s4 1983009808
    %v4379 = vunpack.c.0.s8 %v4378
    %v4380 = vlaneseq
    %v4381 = vshrl.u32 %v4380, 7
    %v4382 = vsub.s32 %v4379, %v4381
    %v4383 = vrot.slane %v3799, %v4382
    %v4385 = vunpack.c.l.s4 1983009808
    %v4386 = vunpack.c.0.s8 %v4385
    %v4387 = vlaneseq
    %v4388 = vshrl.u32 %v4387, 7
    %v4389 = vsub.s32 %v4386, %v4388
    %v4390 = vrot.slane %v4376, %v4389
    %v4391 = vcombine.high %v4383, %v4383
    %v4392 = vcombine.high %v4390, %v4390
    %v4393 = vcombine.high %v3800, %v3800
    %v4395 = vunpack.c.l.s4 1983009808
    %v4396 = vunpack.c.0.s8 %v4395
    %v4397 = vlaneseq
    %v4398 = vshrl.u32 %v4397, 7
    %v4399 = vsub.s32 %v4396, %v4398
    %v4400 = vrot.slane %v3800, %v4399
    %v4402 = vunpack.c.l.s4 1983009808
    %v4403 = vunpack.c.0.s8 %v4402
    %v4404 = vlaneseq
    %v4405 = vshrl.u32 %v4404, 7
    %v4406 = vsub.s32 %v4403, %v4405
    %v4407 = vrot.slane %v4393, %v4406
    %v4408 = vcombine.high %v4400, %v4400
    %v4409 = vcombine.high %v4407, %v4407
    %v4410 = vcombine.high %v3801, %v3801
    %v4412 = vunpack.c.l.s4 1983009808
    %v4413 = vunpack.c.0.s8 %v4412
    %v4414 = vlaneseq
    %v4415 = vshrl.u32 %v4414, 7
    %v4416 = vsub.s32 %v4413, %v4415
    %v4417 = vrot.slane %v3801, %v4416
    %v4419 = vunpack.c.l.s4 1983009808
    %v4420 = vunpack.c.0.s8 %v4419
    %v4421 = vlaneseq
    %v4422 = vshrl.u32 %v4421, 7
    %v4423 = vsub.s32 %v4420, %v4422
    %v4424 = vrot.slane %v4410, %v4423
    %v4425 = vcombine.high %v4417, %v4417
    %v4426 = vcombine.high %v4424, %v4424
    %v4427 = vcombine.high %v3802, %v3802
    %v4429 = vunpack.c.l.s4 1983009808
    %v4430 = vunpack.c.0.s8 %v4429
    %v4431 = vlaneseq
    %v4432 = vshrl.u32 %v4431, 7
    %v4433 = vsub.s32 %v4430, %v4432
    %v4434 = vrot.slane %v3802, %v4433
    %v4436 = vunpack.c.l.s4 1983009808
    %v4437 = vunpack.c.0.s8 %v4436
    %v4438 = vlaneseq
    %v4439 = vshrl.u32 %v4438, 7
    %v4440 = vsub.s32 %v4437, %v4439
    %v4441 = vrot.slane %v4427, %v4440
    %v4442 = vcombine.high %v4434, %v4434
    %vm4571 = vcmask 1041408
    %v4572 = vsel %vm4571, %v3846, -inf
    %v4573 = vsel %vm4571, %v3888, -inf
    %v4574 = vmax.f32 %v4572, %v4573
    %v4575 = vsel %vm4571, %v3854, -inf
    %v4576 = vsel %vm4571, %v3887, -inf
    %v4577 = vmax.f32 %v4575, %v4576
    %v4578 = vsel %vm4571, %v3853, -inf
    %v4579 = vsel %vm4571, %v3889, -inf
    %v4580 = vmax.f32 %v4578, %v4579
    %v4581 = vsel %vm4571, %v3855, -inf
    %v4582 = vsel %vm4571, %v3897, -inf
    %v4583 = vmax.f32 %v4581, %v4582
    %v4584 = vsel %vm4571, %v3863, -inf
    %v4585 = vsel %vm4571, %v3905, -inf
    %v4586 = vmax.f32 %v4584, %v4585
    %v4587 = vsel %vm4571, %v3871, -inf
    %v4588 = vsel %vm4571, %v3904, -inf
    %v4589 = vmax.f32 %v4587, %v4588
    %v4590 = vsel %vm4571, %v3870, -inf
    %v4591 = vsel %vm4571, %v3906, -inf
    %v4592 = vmax.f32 %v4590, %v4591
    %v4593 = vsel %vm4571, %v3872, -inf
    %v4594 = vsel %vm4571, %v3914, -inf
    %v4595 = vmax.f32 %v4593, %v4594
    %v4596 = vsel %vm4571, %v3921, -inf
    %v4597 = vsel %vm4571, %v3956, -inf
    %v4598 = vmax.f32 %v4596, %v4597
    %v4599 = vsel %vm4571, %v3922, -inf
    %v4600 = vsel %vm4571, %v3964, -inf
    %v4601 = vmax.f32 %v4599, %v4600
    %v4602 = vsel %vm4571, %v3930, -inf
    %v4603 = vsel %vm4571, %v3972, -inf
    %v4604 = vmax.f32 %v4602, %v4603
    %v4605 = vsel %vm4571, %v3938, -inf
    %v4606 = vsel %vm4571, %v3971, -inf
    %v4607 = vmax.f32 %v4605, %v4606
    %v4608 = vsel %vm4571, %v3937, -inf
    %v4609 = vsel %vm4571, %v3973, -inf
    %v4610 = vmax.f32 %v4608, %v4609
    %v4611 = vsel %vm4571, %v3939, -inf
    %v4612 = vsel %vm4571, %v3981, -inf
    %v4613 = vmax.f32 %v4611, %v4612
    %v4614 = vsel %vm4571, %v3947, -inf
    %v4615 = vsel %vm4571, %v3989, -inf
    %v4616 = vmax.f32 %v4614, %v4615
    %v4617 = vsel %vm4571, %v3955, -inf
    %v4618 = vsel %vm4571, %v3988, -inf
    %v4619 = vmax.f32 %v4617, %v4618
    %v4620 = vsel %vm4571, %v3997, -inf
    %v4621 = vsel %vm4571, %v4039, -inf
    %v4622 = vmax.f32 %v4620, %v4621
    %v4623 = vsel %vm4571, %v4005, -inf
    %v4624 = vsel %vm4571, %v4038, -inf
    %v4625 = vmax.f32 %v4623, %v4624
    %v4626 = vsel %vm4571, %v4004, -inf
    %v4627 = vsel %vm4571, %v4040, -inf
    %v4628 = vmax.f32 %v4626, %v4627
    %v4629 = vsel %vm4571, %v4006, -inf
    %v4630 = vsel %vm4571, %v4048, -inf
    %v4631 = vmax.f32 %v4629, %v4630
    %v4632 = vsel %vm4571, %v4014, -inf
    %v4633 = vsel %vm4571, %v4056, -inf
    %v4634 = vmax.f32 %v4632, %v4633
    %v4635 = vsel %vm4571, %v4022, -inf
    %v4636 = vsel %vm4571, %v4055, -inf
    %v4637 = vmax.f32 %v4635, %v4636
    %v4638 = vsel %vm4571, %v4021, -inf
    %v4639 = vsel %vm4571, %v4057, -inf
    %v4640 = vmax.f32 %v4638, %v4639
    %v4641 = vsel %vm4571, %v4023, -inf
    %v4642 = vsel %vm4571, %v4065, -inf
    %v4643 = vmax.f32 %v4641, %v4642
    %v4644 = vsel %vm4571, %v4072, -inf
    %v4645 = vsel %vm4571, %v4107, -inf
    %v4646 = vmax.f32 %v4644, %v4645
    %v4647 = vsel %vm4571, %v4073, -inf
    %v4648 = vsel %vm4571, %v4115, -inf
    %v4649 = vmax.f32 %v4647, %v4648
    %v4650 = vsel %vm4571, %v4081, -inf
    %v4651 = vsel %vm4571, %v4123, -inf
    %v4652 = vmax.f32 %v4650, %v4651
    %v4653 = vsel %vm4571, %v4089, -inf
    %v4654 = vsel %vm4571, %v4122, -inf
    %v4655 = vmax.f32 %v4653, %v4654
    %v4656 = vsel %vm4571, %v4088, -inf
    %v4657 = vsel %vm4571, %v4124, -inf
    %v4658 = vmax.f32 %v4656, %v4657
    %v4659 = vsel %vm4571, %v4090, -inf
    %v4660 = vsel %vm4571, %v4132, -inf
    %v4661 = vmax.f32 %v4659, %v4660
    %v4662 = vsel %vm4571, %v4098, -inf
    %v4663 = vsel %vm4571, %v4140, -inf
    %v4664 = vmax.f32 %v4662, %v4663
    %v4665 = vsel %vm4571, %v4106, -inf
    %v4666 = vsel %vm4571, %v4139, -inf
    %v4667 = vmax.f32 %v4665, %v4666
    %v4668 = vsel %vm4571, %v4148, -inf
    %v4669 = vsel %vm4571, %v4190, -inf
    %v4670 = vmax.f32 %v4668, %v4669
    %v4671 = vsel %vm4571, %v4156, -inf
    %v4672 = vsel %vm4571, %v4189, -inf
    %v4673 = vmax.f32 %v4671, %v4672
    %v4674 = vsel %vm4571, %v4155, -inf
    %v4675 = vsel %vm4571, %v4191, -inf
    %v4676 = vmax.f32 %v4674, %v4675
    %v4677 = vsel %vm4571, %v4157, -inf
    %v4678 = vsel %vm4571, %v4199, -inf
    %v4679 = vmax.f32 %v4677, %v4678
    %v4680 = vsel %vm4571, %v4165, -inf
    %v4681 = vsel %vm4571, %v4207, -inf
    %v4682 = vmax.f32 %v4680, %v4681
    %v4683 = vsel %vm4571, %v4173, -inf
    %v4684 = vsel %vm4571, %v4206, -inf
    %v4685 = vmax.f32 %v4683, %v4684
    %v4686 = vsel %vm4571, %v4172, -inf
    %v4687 = vsel %vm4571, %v4208, -inf
    %v4688 = vmax.f32 %v4686, %v4687
    %v4689 = vsel %vm4571, %v4174, -inf
    %v4690 = vsel %vm4571, %v4216, -inf
    %v4691 = vmax.f32 %v4689, %v4690
    %v4692 = vsel %vm4571, %v4223, -inf
    %v4693 = vsel %vm4571, %v4258, -inf
    %v4694 = vmax.f32 %v4692, %v4693
    %v4695 = vsel %vm4571, %v4224, -inf
    %v4696 = vsel %vm4571, %v4266, -inf
    %v4697 = vmax.f32 %v4695, %v4696
    %v4698 = vsel %vm4571, %v4232, -inf
    %v4699 = vsel %vm4571, %v4274, -inf
    %v4700 = vmax.f32 %v4698, %v4699
    %v4701 = vsel %vm4571, %v4240, -inf
    %v4702 = vsel %vm4571, %v4273, -inf
    %v4703 = vmax.f32 %v4701, %v4702
    %v4704 = vsel %vm4571, %v4239, -inf
    %v4705 = vsel %vm4571, %v4275, -inf
    %v4706 = vmax.f32 %v4704, %v4705
    %v4707 = vsel %vm4571, %v4241, -inf
    %v4708 = vsel %vm4571, %v4283, -inf
    %v4709 = vmax.f32 %v4707, %v4708
    %v4710 = vsel %vm4571, %v4249, -inf
    %v4711 = vsel %vm4571, %v4291, -inf
    %v4712 = vmax.f32 %v4710, %v4711
    %v4713 = vsel %vm4571, %v4257, -inf
    %v4714 = vsel %vm4571, %v4290, -inf
    %v4715 = vmax.f32 %v4713, %v4714
    %v4716 = vsel %vm4571, %v4299, -inf
    %v4717 = vsel %vm4571, %v4341, -inf
    %v4718 = vmax.f32 %v4716, %v4717
    %v4719 = vsel %vm4571, %v4307, -inf
    %v4720 = vsel %vm4571, %v4340, -inf
    %v4721 = vmax.f32 %v4719, %v4720
    %v4722 = vsel %vm4571, %v4306, -inf
    %v4723 = vsel %vm4571, %v4342, -inf
    %v4724 = vmax.f32 %v4722, %v4723
    %v4725 = vsel %vm4571, %v4308, -inf
    %v4726 = vsel %vm4571, %v4350, -inf
    %v4727 = vmax.f32 %v4725, %v4726
    %v4728 = vsel %vm4571, %v4316, -inf
    %v4729 = vsel %vm4571, %v4358, -inf
    %v4730 = vmax.f32 %v4728, %v4729
    %v4731 = vsel %vm4571, %v4324, -inf
    %v4732 = vsel %vm4571, %v4357, -inf
    %v4733 = vmax.f32 %v4731, %v4732
    %v4734 = vsel %vm4571, %v4323, -inf
    %v4735 = vsel %vm4571, %v4359, -inf
    %v4736 = vmax.f32 %v4734, %v4735
    %v4737 = vsel %vm4571, %v4325, -inf
    %v4738 = vsel %vm4571, %v4367, -inf
    %v4739 = vmax.f32 %v4737, %v4738
    %v4740 = vsel %vm4571, %v4374, -inf
    %v4741 = vsel %vm4571, %v4409, -inf
    %v4742 = vmax.f32 %v4740, %v4741
    %v4743 = vsel %vm4571, %v4375, -inf
    %v4744 = vsel %vm4571, %v4417, -inf
    %v4745 = vmax.f32 %v4743, %v4744
    %v4746 = vsel %vm4571, %v4383, -inf
    %v4747 = vsel %vm4571, %v4425, -inf
    %v4748 = vmax.f32 %v4746, %v4747
    %v4749 = vsel %vm4571, %v4391, -inf
    %v4750 = vsel %vm4571, %v4424, -inf
    %v4751 = vmax.f32 %v4749, %v4750
    %v4752 = vsel %vm4571, %v4390, -inf
    %v4753 = vsel %vm4571, %v4426, -inf
    %v4754 = vmax.f32 %v4752, %v4753
    %v4755 = vsel %vm4571, %v4392, -inf
    %v4756 = vsel %vm4571, %v4434, -inf
    %v4757 = vmax.f32 %v4755, %v4756
    %v4758 = vsel %vm4571, %v4400, -inf
    %v4759 = vsel %vm4571, %v4442, -inf
    %v4760 = vmax.f32 %v4758, %v4759
    %v4761 = vsel %vm4571, %v4408, -inf
    %v4762 = vsel %vm4571, %v4441, -inf
    %v4763 = vmax.f32 %v4761, %v4762
    %v4764 = vsel %vm4571, %v4574, -inf
    %v4765 = vrot.slane %v4764, 4
    %v4766 = vmax.f32 %v4764, %v4765
    %v4767 = vrot.slane %v4766, 2
    %v4768 = vmax.f32 %v4766, %v4767
    %v4769 = vrot.slane %v4768, 1
    %v4770 = vmax.f32 %v4768, %v4769
    %v4771 = vsel %vm4571, %v4577, -inf
    %v4772 = vrot.slane %v4771, 4
    %v4773 = vmax.f32 %v4771, %v4772
    %v4774 = vrot.slane %v4773, 2
    %v4775 = vmax.f32 %v4773, %v4774
    %v4776 = vrot.slane %v4775, 1
    %v4777 = vmax.f32 %v4775, %v4776
    %v4778 = vsel %vm4571, %v4580, -inf
    %v4779 = vrot.slane %v4778, 4
    %v4780 = vmax.f32 %v4778, %v4779
    %v4781 = vrot.slane %v4780, 2
    %v4782 = vmax.f32 %v4780, %v4781
    %v4783 = vrot.slane %v4782, 1
    %v4784 = vmax.f32 %v4782, %v4783
    %v4785 = vsel %vm4571, %v4583, -inf
    %v4786 = vrot.slane %v4785, 4
    %v4787 = vmax.f32 %v4785, %v4786
    %v4788 = vrot.slane %v4787, 2
    %v4789 = vmax.f32 %v4787, %v4788
    %v4790 = vrot.slane %v4789, 1
    %v4791 = vmax.f32 %v4789, %v4790
    %v4792 = vsel %vm4571, %v4586, -inf
    %v4793 = vrot.slane %v4792, 4
    %v4794 = vmax.f32 %v4792, %v4793
    %v4795 = vrot.slane %v4794, 2
    %v4796 = vmax.f32 %v4794, %v4795
    %v4797 = vrot.slane %v4796, 1
    %v4798 = vmax.f32 %v4796, %v4797
    %v4799 = vsel %vm4571, %v4589, -inf
    %v4800 = vrot.slane %v4799, 4
    %v4801 = vmax.f32 %v4799, %v4800
    %v4802 = vrot.slane %v4801, 2
    %v4803 = vmax.f32 %v4801, %v4802
    %v4804 = vrot.slane %v4803, 1
    %v4805 = vmax.f32 %v4803, %v4804
    %v4806 = vsel %vm4571, %v4592, -inf
    %v4807 = vrot.slane %v4806, 4
    %v4808 = vmax.f32 %v4806, %v4807
    %v4809 = vrot.slane %v4808, 2
    %v4810 = vmax.f32 %v4808, %v4809
    %v4811 = vrot.slane %v4810, 1
    %v4812 = vmax.f32 %v4810, %v4811
    %v4813 = vsel %vm4571, %v4595, -inf
    %v4814 = vrot.slane %v4813, 4
    %v4815 = vmax.f32 %v4813, %v4814
    %v4816 = vrot.slane %v4815, 2
    %v4817 = vmax.f32 %v4815, %v4816
    %v4818 = vrot.slane %v4817, 1
    %v4819 = vmax.f32 %v4817, %v4818
    %v4820 = vsel %vm4571, %v4598, -inf
    %v4821 = vrot.slane %v4820, 4
    %v4822 = vmax.f32 %v4820, %v4821
    %v4823 = vrot.slane %v4822, 2
    %v4824 = vmax.f32 %v4822, %v4823
    %v4825 = vrot.slane %v4824, 1
    %v4826 = vmax.f32 %v4824, %v4825
    %v4827 = vsel %vm4571, %v4601, -inf
    %v4828 = vrot.slane %v4827, 4
    %v4829 = vmax.f32 %v4827, %v4828
    %v4830 = vrot.slane %v4829, 2
    %v4831 = vmax.f32 %v4829, %v4830
    %v4832 = vrot.slane %v4831, 1
    %v4833 = vmax.f32 %v4831, %v4832
    %v4834 = vsel %vm4571, %v4604, -inf
    %v4835 = vrot.slane %v4834, 4
    %v4836 = vmax.f32 %v4834, %v4835
    %v4837 = vrot.slane %v4836, 2
    %v4838 = vmax.f32 %v4836, %v4837
    %v4839 = vrot.slane %v4838, 1
    %v4840 = vmax.f32 %v4838, %v4839
    %v4841 = vsel %vm4571, %v4607, -inf
    %v4842 = vrot.slane %v4841, 4
    %v4843 = vmax.f32 %v4841, %v4842
    %v4844 = vrot.slane %v4843, 2
    %v4845 = vmax.f32 %v4843, %v4844
    %v4846 = vrot.slane %v4845, 1
    %v4847 = vmax.f32 %v4845, %v4846
    %v4848 = vsel %vm4571, %v4610, -inf
    %v4849 = vrot.slane %v4848, 4
    %v4850 = vmax.f32 %v4848, %v4849
    %v4851 = vrot.slane %v4850, 2
    %v4852 = vmax.f32 %v4850, %v4851
    %v4853 = vrot.slane %v4852, 1
    %v4854 = vmax.f32 %v4852, %v4853
    %v4855 = vsel %vm4571, %v4613, -inf
    %v4856 = vrot.slane %v4855, 4
    %v4857 = vmax.f32 %v4855, %v4856
    %v4858 = vrot.slane %v4857, 2
    %v4859 = vmax.f32 %v4857, %v4858
    %v4860 = vrot.slane %v4859, 1
    %v4861 = vmax.f32 %v4859, %v4860
    %v4862 = vsel %vm4571, %v4616, -inf
    %v4863 = vrot.slane %v4862, 4
    %v4864 = vmax.f32 %v4862, %v4863
    %v4865 = vrot.slane %v4864, 2
    %v4866 = vmax.f32 %v4864, %v4865
    %v4867 = vrot.slane %v4866, 1
    %v4868 = vmax.f32 %v4866, %v4867
    %v4869 = vsel %vm4571, %v4619, -inf
    %v4870 = vrot.slane %v4869, 4
    %v4871 = vmax.f32 %v4869, %v4870
    %v4872 = vrot.slane %v4871, 2
    %v4873 = vmax.f32 %v4871, %v4872
    %v4874 = vrot.slane %v4873, 1
    %v4875 = vmax.f32 %v4873, %v4874
    %v4876 = vsel %vm4571, %v4622, -inf
    %v4877 = vrot.slane %v4876, 4
    %v4878 = vmax.f32 %v4876, %v4877
    %v4879 = vrot.slane %v4878, 2
    %v4880 = vmax.f32 %v4878, %v4879
    %v4881 = vrot.slane %v4880, 1
    %v4882 = vmax.f32 %v4880, %v4881
    %v4883 = vsel %vm4571, %v4625, -inf
    %v4884 = vrot.slane %v4883, 4
    %v4885 = vmax.f32 %v4883, %v4884
    %v4886 = vrot.slane %v4885, 2
    %v4887 = vmax.f32 %v4885, %v4886
    %v4888 = vrot.slane %v4887, 1
    %v4889 = vmax.f32 %v4887, %v4888
    %v4890 = vsel %vm4571, %v4628, -inf
    %v4891 = vrot.slane %v4890, 4
    %v4892 = vmax.f32 %v4890, %v4891
    %v4893 = vrot.slane %v4892, 2
    %v4894 = vmax.f32 %v4892, %v4893
    %v4895 = vrot.slane %v4894, 1
    %v4896 = vmax.f32 %v4894, %v4895
    %v4897 = vsel %vm4571, %v4631, -inf
    %v4898 = vrot.slane %v4897, 4
    %v4899 = vmax.f32 %v4897, %v4898
    %v4900 = vrot.slane %v4899, 2
    %v4901 = vmax.f32 %v4899, %v4900
    %v4902 = vrot.slane %v4901, 1
    %v4903 = vmax.f32 %v4901, %v4902
    %v4904 = vsel %vm4571, %v4634, -inf
    %v4905 = vrot.slane %v4904, 4
    %v4906 = vmax.f32 %v4904, %v4905
    %v4907 = vrot.slane %v4906, 2
    %v4908 = vmax.f32 %v4906, %v4907
    %v4909 = vrot.slane %v4908, 1
    %v4910 = vmax.f32 %v4908, %v4909
    %v4911 = vsel %vm4571, %v4637, -inf
    %v4912 = vrot.slane %v4911, 4
    %v4913 = vmax.f32 %v4911, %v4912
    %v4914 = vrot.slane %v4913, 2
    %v4915 = vmax.f32 %v4913, %v4914
    %v4916 = vrot.slane %v4915, 1
    %v4917 = vmax.f32 %v4915, %v4916
    %v4918 = vsel %vm4571, %v4640, -inf
    %v4919 = vrot.slane %v4918, 4
    %v4920 = vmax.f32 %v4918, %v4919
    %v4921 = vrot.slane %v4920, 2
    %v4922 = vmax.f32 %v4920, %v4921
    %v4923 = vrot.slane %v4922, 1
    %v4924 = vmax.f32 %v4922, %v4923
    %v4925 = vsel %vm4571, %v4643, -inf
    %v4926 = vrot.slane %v4925, 4
    %v4927 = vmax.f32 %v4925, %v4926
    %v4928 = vrot.slane %v4927, 2
    %v4929 = vmax.f32 %v4927, %v4928
    %v4930 = vrot.slane %v4929, 1
    %v4931 = vmax.f32 %v4929, %v4930
    %v4932 = vsel %vm4571, %v4646, -inf
    %v4933 = vrot.slane %v4932, 4
    %v4934 = vmax.f32 %v4932, %v4933
    %v4935 = vrot.slane %v4934, 2
    %v4936 = vmax.f32 %v4934, %v4935
    %v4937 = vrot.slane %v4936, 1
    %v4938 = vmax.f32 %v4936, %v4937
    %v4939 = vsel %vm4571, %v4649, -inf
    %v4940 = vrot.slane %v4939, 4
    %v4941 = vmax.f32 %v4939, %v4940
    %v4942 = vrot.slane %v4941, 2
    %v4943 = vmax.f32 %v4941, %v4942
    %v4944 = vrot.slane %v4943, 1
    %v4945 = vmax.f32 %v4943, %v4944
    %v4946 = vsel %vm4571, %v4652, -inf
    %v4947 = vrot.slane %v4946, 4
    %v4948 = vmax.f32 %v4946, %v4947
    %v4949 = vrot.slane %v4948, 2
    %v4950 = vmax.f32 %v4948, %v4949
    %v4951 = vrot.slane %v4950, 1
    %v4952 = vmax.f32 %v4950, %v4951
    %v4953 = vsel %vm4571, %v4655, -inf
    %v4954 = vrot.slane %v4953, 4
    %v4955 = vmax.f32 %v4953, %v4954
    %v4956 = vrot.slane %v4955, 2
    %v4957 = vmax.f32 %v4955, %v4956
    %v4958 = vrot.slane %v4957, 1
    %v4959 = vmax.f32 %v4957, %v4958
    %v4960 = vsel %vm4571, %v4658, -inf
    %v4961 = vrot.slane %v4960, 4
    %v4962 = vmax.f32 %v4960, %v4961
    %v4963 = vrot.slane %v4962, 2
    %v4964 = vmax.f32 %v4962, %v4963
    %v4965 = vrot.slane %v4964, 1
    %v4966 = vmax.f32 %v4964, %v4965
    %v4967 = vsel %vm4571, %v4661, -inf
    %v4968 = vrot.slane %v4967, 4
    %v4969 = vmax.f32 %v4967, %v4968
    %v4970 = vrot.slane %v4969, 2
    %v4971 = vmax.f32 %v4969, %v4970
    %v4972 = vrot.slane %v4971, 1
    %v4973 = vmax.f32 %v4971, %v4972
    %v4974 = vsel %vm4571, %v4664, -inf
    %v4975 = vrot.slane %v4974, 4
    %v4976 = vmax.f32 %v4974, %v4975
    %v4977 = vrot.slane %v4976, 2
    %v4978 = vmax.f32 %v4976, %v4977
    %v4979 = vrot.slane %v4978, 1
    %v4980 = vmax.f32 %v4978, %v4979
    %v4981 = vsel %vm4571, %v4667, -inf
    %v4982 = vrot.slane %v4981, 4
    %v4983 = vmax.f32 %v4981, %v4982
    %v4984 = vrot.slane %v4983, 2
    %v4985 = vmax.f32 %v4983, %v4984
    %v4986 = vrot.slane %v4985, 1
    %v4987 = vmax.f32 %v4985, %v4986
    %v4988 = vsel %vm4571, %v4670, -inf
    %v4989 = vrot.slane %v4988, 4
    %v4990 = vmax.f32 %v4988, %v4989
    %v4991 = vrot.slane %v4990, 2
    %v4992 = vmax.f32 %v4990, %v4991
    %v4993 = vrot.slane %v4992, 1
    %v4994 = vmax.f32 %v4992, %v4993
    %v4995 = vsel %vm4571, %v4673, -inf
    %v4996 = vrot.slane %v4995, 4
    %v4997 = vmax.f32 %v4995, %v4996
    %v4998 = vrot.slane %v4997, 2
    %v4999 = vmax.f32 %v4997, %v4998
    %v5000 = vrot.slane %v4999, 1
    %v5001 = vmax.f32 %v4999, %v5000
    %v5002 = vsel %vm4571, %v4676, -inf
    %v5003 = vrot.slane %v5002, 4
    %v5004 = vmax.f32 %v5002, %v5003
    %v5005 = vrot.slane %v5004, 2
    %v5006 = vmax.f32 %v5004, %v5005
    %v5007 = vrot.slane %v5006, 1
    %v5008 = vmax.f32 %v5006, %v5007
    %v5009 = vsel %vm4571, %v4679, -inf
    %v5010 = vrot.slane %v5009, 4
    %v5011 = vmax.f32 %v5009, %v5010
    %v5012 = vrot.slane %v5011, 2
    %v5013 = vmax.f32 %v5011, %v5012
    %v5014 = vrot.slane %v5013, 1
    %v5015 = vmax.f32 %v5013, %v5014
    %v5016 = vsel %vm4571, %v4682, -inf
    %v5017 = vrot.slane %v5016, 4
    %v5018 = vmax.f32 %v5016, %v5017
    %v5019 = vrot.slane %v5018, 2
    %v5020 = vmax.f32 %v5018, %v5019
    %v5021 = vrot.slane %v5020, 1
    %v5022 = vmax.f32 %v5020, %v5021
    %v5023 = vsel %vm4571, %v4685, -inf
    %v5024 = vrot.slane %v5023, 4
    %v5025 = vmax.f32 %v5023, %v5024
    %v5026 = vrot.slane %v5025, 2
    %v5027 = vmax.f32 %v5025, %v5026
    %v5028 = vrot.slane %v5027, 1
    %v5029 = vmax.f32 %v5027, %v5028
    %v5030 = vsel %vm4571, %v4688, -inf
    %v5031 = vrot.slane %v5030, 4
    %v5032 = vmax.f32 %v5030, %v5031
    %v5033 = vrot.slane %v5032, 2
    %v5034 = vmax.f32 %v5032, %v5033
    %v5035 = vrot.slane %v5034, 1
    %v5036 = vmax.f32 %v5034, %v5035
    %v5037 = vsel %vm4571, %v4691, -inf
    %v5038 = vrot.slane %v5037, 4
    %v5039 = vmax.f32 %v5037, %v5038
    %v5040 = vrot.slane %v5039, 2
    %v5041 = vmax.f32 %v5039, %v5040
    %v5042 = vrot.slane %v5041, 1
    %v5043 = vmax.f32 %v5041, %v5042
    %v5044 = vsel %vm4571, %v4694, -inf
    %v5045 = vrot.slane %v5044, 4
    %v5046 = vmax.f32 %v5044, %v5045
    %v5047 = vrot.slane %v5046, 2
    %v5048 = vmax.f32 %v5046, %v5047
    %v5049 = vrot.slane %v5048, 1
    %v5050 = vmax.f32 %v5048, %v5049
    %v5051 = vsel %vm4571, %v4697, -inf
    %v5052 = vrot.slane %v5051, 4
    %v5053 = vmax.f32 %v5051, %v5052
    %v5054 = vrot.slane %v5053, 2
    %v5055 = vmax.f32 %v5053, %v5054
    %v5056 = vrot.slane %v5055, 1
    %v5057 = vmax.f32 %v5055, %v5056
    %v5058 = vsel %vm4571, %v4700, -inf
    %v5059 = vrot.slane %v5058, 4
    %v5060 = vmax.f32 %v5058, %v5059
    %v5061 = vrot.slane %v5060, 2
    %v5062 = vmax.f32 %v5060, %v5061
    %v5063 = vrot.slane %v5062, 1
    %v5064 = vmax.f32 %v5062, %v5063
    %v5065 = vsel %vm4571, %v4703, -inf
    %v5066 = vrot.slane %v5065, 4
    %v5067 = vmax.f32 %v5065, %v5066
    %v5068 = vrot.slane %v5067, 2
    %v5069 = vmax.f32 %v5067, %v5068
    %v5070 = vrot.slane %v5069, 1
    %v5071 = vmax.f32 %v5069, %v5070
    %v5072 = vsel %vm4571, %v4706, -inf
    %v5073 = vrot.slane %v5072, 4
    %v5074 = vmax.f32 %v5072, %v5073
    %v5075 = vrot.slane %v5074, 2
    %v5076 = vmax.f32 %v5074, %v5075
    %v5077 = vrot.slane %v5076, 1
    %v5078 = vmax.f32 %v5076, %v5077
    %v5079 = vsel %vm4571, %v4709, -inf
    %v5080 = vrot.slane %v5079, 4
    %v5081 = vmax.f32 %v5079, %v5080
    %v5082 = vrot.slane %v5081, 2
    %v5083 = vmax.f32 %v5081, %v5082
    %v5084 = vrot.slane %v5083, 1
    %v5085 = vmax.f32 %v5083, %v5084
    %v5086 = vsel %vm4571, %v4712, -inf
    %v5087 = vrot.slane %v5086, 4
    %v5088 = vmax.f32 %v5086, %v5087
    %v5089 = vrot.slane %v5088, 2
    %v5090 = vmax.f32 %v5088, %v5089
    %v5091 = vrot.slane %v5090, 1
    %v5092 = vmax.f32 %v5090, %v5091
    %v5093 = vsel %vm4571, %v4715, -inf
    %v5094 = vrot.slane %v5093, 4
    %v5095 = vmax.f32 %v5093, %v5094
    %v5096 = vrot.slane %v5095, 2
    %v5097 = vmax.f32 %v5095, %v5096
    %v5098 = vrot.slane %v5097, 1
    %v5099 = vmax.f32 %v5097, %v5098
    %v5100 = vsel %vm4571, %v4718, -inf
    %v5101 = vrot.slane %v5100, 4
    %v5102 = vmax.f32 %v5100, %v5101
    %v5103 = vrot.slane %v5102, 2
    %v5104 = vmax.f32 %v5102, %v5103
    %v5105 = vrot.slane %v5104, 1
    %v5106 = vmax.f32 %v5104, %v5105
    %v5107 = vsel %vm4571, %v4721, -inf
    %v5108 = vrot.slane %v5107, 4
    %v5109 = vmax.f32 %v5107, %v5108
    %v5110 = vrot.slane %v5109, 2
    %v5111 = vmax.f32 %v5109, %v5110
    %v5112 = vrot.slane %v5111, 1
    %v5113 = vmax.f32 %v5111, %v5112
    %v5114 = vsel %vm4571, %v4724, -inf
    %v5115 = vrot.slane %v5114, 4
    %v5116 = vmax.f32 %v5114, %v5115
    %v5117 = vrot.slane %v5116, 2
    %v5118 = vmax.f32 %v5116, %v5117
    %v5119 = vrot.slane %v5118, 1
    %v5120 = vmax.f32 %v5118, %v5119
    %v5121 = vsel %vm4571, %v4727, -inf
    %v5122 = vrot.slane %v5121, 4
    %v5123 = vmax.f32 %v5121, %v5122
    %v5124 = vrot.slane %v5123, 2
    %v5125 = vmax.f32 %v5123, %v5124
    %v5126 = vrot.slane %v5125, 1
    %v5127 = vmax.f32 %v5125, %v5126
    %v5128 = vsel %vm4571, %v4730, -inf
    %v5129 = vrot.slane %v5128, 4
    %v5130 = vmax.f32 %v5128, %v5129
    %v5131 = vrot.slane %v5130, 2
    %v5132 = vmax.f32 %v5130, %v5131
    %v5133 = vrot.slane %v5132, 1
    %v5134 = vmax.f32 %v5132, %v5133
    %v5135 = vsel %vm4571, %v4733, -inf
    %v5136 = vrot.slane %v5135, 4
    %v5137 = vmax.f32 %v5135, %v5136
    %v5138 = vrot.slane %v5137, 2
    %v5139 = vmax.f32 %v5137, %v5138
    %v5140 = vrot.slane %v5139, 1
    %v5141 = vmax.f32 %v5139, %v5140
    %v5142 = vsel %vm4571, %v4736, -inf
    %v5143 = vrot.slane %v5142, 4
    %v5144 = vmax.f32 %v5142, %v5143
    %v5145 = vrot.slane %v5144, 2
    %v5146 = vmax.f32 %v5144, %v5145
    %v5147 = vrot.slane %v5146, 1
    %v5148 = vmax.f32 %v5146, %v5147
    %v5149 = vsel %vm4571, %v4739, -inf
    %v5150 = vrot.slane %v5149, 4
    %v5151 = vmax.f32 %v5149, %v5150
    %v5152 = vrot.slane %v5151, 2
    %v5153 = vmax.f32 %v5151, %v5152
    %v5154 = vrot.slane %v5153, 1
    %v5155 = vmax.f32 %v5153, %v5154
    %v5156 = vsel %vm4571, %v4742, -inf
    %v5157 = vrot.slane %v5156, 4
    %v5158 = vmax.f32 %v5156, %v5157
    %v5159 = vrot.slane %v5158, 2
    %v5160 = vmax.f32 %v5158, %v5159
    %v5161 = vrot.slane %v5160, 1
    %v5162 = vmax.f32 %v5160, %v5161
    %v5163 = vsel %vm4571, %v4745, -inf
    %v5164 = vrot.slane %v5163, 4
    %v5165 = vmax.f32 %v5163, %v5164
    %v5166 = vrot.slane %v5165, 2
    %v5167 = vmax.f32 %v5165, %v5166
    %v5168 = vrot.slane %v5167, 1
    %v5169 = vmax.f32 %v5167, %v5168
    %v5170 = vsel %vm4571, %v4748, -inf
    %v5171 = vrot.slane %v5170, 4
    %v5172 = vmax.f32 %v5170, %v5171
    %v5173 = vrot.slane %v5172, 2
    %v5174 = vmax.f32 %v5172, %v5173
    %v5175 = vrot.slane %v5174, 1
    %v5176 = vmax.f32 %v5174, %v5175
    %v5177 = vsel %vm4571, %v4751, -inf
    %v5178 = vrot.slane %v5177, 4
    %v5179 = vmax.f32 %v5177, %v5178
    %v5180 = vrot.slane %v5179, 2
    %v5181 = vmax.f32 %v5179, %v5180
    %v5182 = vrot.slane %v5181, 1
    %v5183 = vmax.f32 %v5181, %v5182
    %v5184 = vsel %vm4571, %v4754, -inf
    %v5185 = vrot.slane %v5184, 4
    %v5186 = vmax.f32 %v5184, %v5185
    %v5187 = vrot.slane %v5186, 2
    %v5188 = vmax.f32 %v5186, %v5187
    %v5189 = vrot.slane %v5188, 1
    %v5190 = vmax.f32 %v5188, %v5189
    %v5191 = vsel %vm4571, %v4757, -inf
    %v5192 = vrot.slane %v5191, 4
    %v5193 = vmax.f32 %v5191, %v5192
    %v5194 = vrot.slane %v5193, 2
    %v5195 = vmax.f32 %v5193, %v5194
    %v5196 = vrot.slane %v5195, 1
    %v5197 = vmax.f32 %v5195, %v5196
    %v5198 = vsel %vm4571, %v4760, -inf
    %v5199 = vrot.slane %v5198, 4
    %v5200 = vmax.f32 %v5198, %v5199
    %v5201 = vrot.slane %v5200, 2
    %v5202 = vmax.f32 %v5200, %v5201
    %v5203 = vrot.slane %v5202, 1
    %v5204 = vmax.f32 %v5202, %v5203
    %v5205 = vsel %vm4571, %v4763, -inf
    %v5206 = vrot.slane %v5205, 4
    %v5207 = vmax.f32 %v5205, %v5206
    %v5208 = vrot.slane %v5207, 2
    %v5209 = vmax.f32 %v5207, %v5208
    %v5210 = vrot.slane %v5209, 1
    %v5211 = vmax.f32 %v5209, %v5210
    %v5212 = vpack.c.bf16 %v4770, %v4770
    %v5213 = vpack.c.bf16 %v4777, %v4777
    %v5214 = vpack.c.bf16 %v4784, %v4784
    %v5215 = vpack.c.bf16 %v4791, %v4791
    %v5216 = vpack.c.bf16 %v4798, %v4798
    %v5217 = vpack.c.bf16 %v4805, %v4805
    %v5218 = vpack.c.bf16 %v4812, %v4812
    %v5219 = vpack.c.bf16 %v4819, %v4819
    %v5220 = vpack.c.bf16 %v4826, %v4826
    %v5221 = vpack.c.bf16 %v4833, %v4833
    %v5222 = vpack.c.bf16 %v4840, %v4840
    %v5223 = vpack.c.bf16 %v4847, %v4847
    %v5224 = vpack.c.bf16 %v4854, %v4854
    %v5225 = vpack.c.bf16 %v4861, %v4861
    %v5226 = vpack.c.bf16 %v4868, %v4868
    %v5227 = vpack.c.bf16 %v4875, %v4875
    %v5228 = vpack.c.bf16 %v4882, %v4882
    %v5229 = vpack.c.bf16 %v4889, %v4889
    %v5230 = vpack.c.bf16 %v4896, %v4896
    %v5231 = vpack.c.bf16 %v4903, %v4903
    %v5232 = vpack.c.bf16 %v4910, %v4910
    %v5233 = vpack.c.bf16 %v4917, %v4917
    %v5234 = vpack.c.bf16 %v4924, %v4924
    %v5235 = vpack.c.bf16 %v4931, %v4931
    %v5236 = vpack.c.bf16 %v4938, %v4938
    %v5237 = vpack.c.bf16 %v4945, %v4945
    %v5238 = vpack.c.bf16 %v4952, %v4952
    %v5239 = vpack.c.bf16 %v4959, %v4959
    %v5240 = vpack.c.bf16 %v4966, %v4966
    %v5241 = vpack.c.bf16 %v4973, %v4973
    %v5242 = vpack.c.bf16 %v4980, %v4980
    %v5243 = vpack.c.bf16 %v4987, %v4987
    %v5244 = vpack.c.bf16 %v4994, %v4994
    %v5245 = vpack.c.bf16 %v5001, %v5001
    %v5246 = vpack.c.bf16 %v5008, %v5008
    %v5247 = vpack.c.bf16 %v5015, %v5015
    %v5248 = vpack.c.bf16 %v5022, %v5022
    %v5249 = vpack.c.bf16 %v5029, %v5029
    %v5250 = vpack.c.bf16 %v5036, %v5036
    %v5251 = vpack.c.bf16 %v5043, %v5043
    %v5252 = vpack.c.bf16 %v5050, %v5050
    %v5253 = vpack.c.bf16 %v5057, %v5057
    %v5254 = vpack.c.bf16 %v5064, %v5064
    %v5255 = vpack.c.bf16 %v5071, %v5071
    %v5256 = vpack.c.bf16 %v5078, %v5078
    %v5257 = vpack.c.bf16 %v5085, %v5085
    %v5258 = vpack.c.bf16 %v5092, %v5092
    %v5259 = vpack.c.bf16 %v5099, %v5099
    %v5260 = vpack.c.bf16 %v5106, %v5106
    %v5261 = vpack.c.bf16 %v5113, %v5113
    %v5262 = vpack.c.bf16 %v5120, %v5120
    %v5263 = vpack.c.bf16 %v5127, %v5127
    %v5264 = vpack.c.bf16 %v5134, %v5134
    %v5265 = vpack.c.bf16 %v5141, %v5141
    %v5266 = vpack.c.bf16 %v5148, %v5148
    %v5267 = vpack.c.bf16 %v5155, %v5155
    %v5268 = vpack.c.bf16 %v5162, %v5162
    %v5269 = vpack.c.bf16 %v5169, %v5169
    %v5270 = vpack.c.bf16 %v5176, %v5176
    %v5271 = vpack.c.bf16 %v5183, %v5183
    %v5272 = vpack.c.bf16 %v5190, %v5190
    %v5273 = vpack.c.bf16 %v5197, %v5197
    %v5274 = vpack.c.bf16 %v5204, %v5204
    %v5275 = vpack.c.bf16 %v5211, %v5211
    %v5340 = vunpack.c.l.b16 %v5212
    %v5341 = vunpack.c.l.b16 %v5213
    %v5342 = vunpack.c.l.b16 %v5214
    %v5343 = vunpack.c.l.b16 %v5215
    %v5344 = vunpack.c.l.b16 %v5216
    %v5345 = vunpack.c.l.b16 %v5217
    %v5346 = vunpack.c.l.b16 %v5218
    %v5347 = vunpack.c.l.b16 %v5219
    %v5348 = vunpack.c.l.b16 %v5220
    %v5349 = vunpack.c.l.b16 %v5221
    %v5350 = vunpack.c.l.b16 %v5222
    %v5351 = vunpack.c.l.b16 %v5223
    %v5352 = vunpack.c.l.b16 %v5224
    %v5353 = vunpack.c.l.b16 %v5225
    %v5354 = vunpack.c.l.b16 %v5226
    %v5355 = vunpack.c.l.b16 %v5227
    %v5356 = vunpack.c.l.b16 %v5228
    %v5357 = vunpack.c.l.b16 %v5229
    %v5358 = vunpack.c.l.b16 %v5230
    %v5359 = vunpack.c.l.b16 %v5231
    %v5360 = vunpack.c.l.b16 %v5232
    %v5361 = vunpack.c.l.b16 %v5233
    %v5362 = vunpack.c.l.b16 %v5234
    %v5363 = vunpack.c.l.b16 %v5235
    %v5364 = vunpack.c.l.b16 %v5236
    %v5365 = vunpack.c.l.b16 %v5237
    %v5366 = vunpack.c.l.b16 %v5238
    %v5367 = vunpack.c.l.b16 %v5239
    %v5368 = vunpack.c.l.b16 %v5240
    %v5369 = vunpack.c.l.b16 %v5241
    %v5370 = vunpack.c.l.b16 %v5242
    %v5371 = vunpack.c.l.b16 %v5243
    %v5372 = vunpack.c.l.b16 %v5244
    %v5373 = vunpack.c.l.b16 %v5245
    %v5374 = vunpack.c.l.b16 %v5246
    %v5375 = vunpack.c.l.b16 %v5247
    %v5376 = vunpack.c.l.b16 %v5248
    %v5377 = vunpack.c.l.b16 %v5249
    %v5378 = vunpack.c.l.b16 %v5250
    %v5379 = vunpack.c.l.b16 %v5251
    %v5380 = vunpack.c.l.b16 %v5252
    %v5381 = vunpack.c.l.b16 %v5253
    %v5382 = vunpack.c.l.b16 %v5254
    %v5383 = vunpack.c.l.b16 %v5255
    %v5384 = vunpack.c.l.b16 %v5256
    %v5385 = vunpack.c.l.b16 %v5257
    %v5386 = vunpack.c.l.b16 %v5258
    %v5387 = vunpack.c.l.b16 %v5259
    %v5388 = vunpack.c.l.b16 %v5260
    %v5389 = vunpack.c.l.b16 %v5261
    %v5390 = vunpack.c.l.b16 %v5262
    %v5391 = vunpack.c.l.b16 %v5263
    %v5392 = vunpack.c.l.b16 %v5264
    %v5393 = vunpack.c.l.b16 %v5265
    %v5394 = vunpack.c.l.b16 %v5266
    %v5395 = vunpack.c.l.b16 %v5267
    %v5396 = vunpack.c.l.b16 %v5268
    %v5397 = vunpack.c.l.b16 %v5269
    %v5398 = vunpack.c.l.b16 %v5270
    %v5399 = vunpack.c.l.b16 %v5271
    %v5400 = vunpack.c.l.b16 %v5272
    %v5401 = vunpack.c.l.b16 %v5273
    %v5402 = vunpack.c.l.b16 %v5274
    %v5403 = vunpack.c.l.b16 %v5275
    %v5404 = vpack.c.b16 %v5340, %v5340
    %v5405 = vpack.c.b16 %v5341, %v5341
    %v5406 = vpack.c.b16 %v5342, %v5342
    %v5407 = vpack.c.b16 %v5343, %v5343
    %v5408 = vpack.c.b16 %v5344, %v5344
    %v5409 = vpack.c.b16 %v5345, %v5345
    %v5410 = vpack.c.b16 %v5346, %v5346
    %v5411 = vpack.c.b16 %v5347, %v5347
    %v5412 = vpack.c.b16 %v5348, %v5348
    %v5413 = vpack.c.b16 %v5349, %v5349
    %v5414 = vpack.c.b16 %v5350, %v5350
    %v5415 = vpack.c.b16 %v5351, %v5351
    %v5416 = vpack.c.b16 %v5352, %v5352
    %v5417 = vpack.c.b16 %v5353, %v5353
    %v5418 = vpack.c.b16 %v5354, %v5354
    %v5419 = vpack.c.b16 %v5355, %v5355
    %v5420 = vpack.c.b16 %v5356, %v5356
    %v5421 = vpack.c.b16 %v5357, %v5357
    %v5422 = vpack.c.b16 %v5358, %v5358
    %v5423 = vpack.c.b16 %v5359, %v5359
    %v5424 = vpack.c.b16 %v5360, %v5360
    %v5425 = vpack.c.b16 %v5361, %v5361
    %v5426 = vpack.c.b16 %v5362, %v5362
    %v5427 = vpack.c.b16 %v5363, %v5363
    %v5428 = vpack.c.b16 %v5364, %v5364
    %v5429 = vpack.c.b16 %v5365, %v5365
    %v5430 = vpack.c.b16 %v5366, %v5366
    %v5431 = vpack.c.b16 %v5367, %v5367
    %v5432 = vpack.c.b16 %v5368, %v5368
    %v5433 = vpack.c.b16 %v5369, %v5369
    %v5434 = vpack.c.b16 %v5370, %v5370
    %v5435 = vpack.c.b16 %v5371, %v5371
    %v5436 = vpack.c.b16 %v5372, %v5372
    %v5437 = vpack.c.b16 %v5373, %v5373
    %v5438 = vpack.c.b16 %v5374, %v5374
    %v5439 = vpack.c.b16 %v5375, %v5375
    %v5440 = vpack.c.b16 %v5376, %v5376
    %v5441 = vpack.c.b16 %v5377, %v5377
    %v5442 = vpack.c.b16 %v5378, %v5378
    %v5443 = vpack.c.b16 %v5379, %v5379
    %v5444 = vpack.c.b16 %v5380, %v5380
    %v5445 = vpack.c.b16 %v5381, %v5381
    %v5446 = vpack.c.b16 %v5382, %v5382
    %v5447 = vpack.c.b16 %v5383, %v5383
    %v5448 = vpack.c.b16 %v5384, %v5384
    %v5449 = vpack.c.b16 %v5385, %v5385
    %v5450 = vpack.c.b16 %v5386, %v5386
    %v5451 = vpack.c.b16 %v5387, %v5387
    %v5452 = vpack.c.b16 %v5388, %v5388
    %v5453 = vpack.c.b16 %v5389, %v5389
    %v5454 = vpack.c.b16 %v5390, %v5390
    %v5455 = vpack.c.b16 %v5391, %v5391
    %v5456 = vpack.c.b16 %v5392, %v5392
    %v5457 = vpack.c.b16 %v5393, %v5393
    %v5458 = vpack.c.b16 %v5394, %v5394
    %v5459 = vpack.c.b16 %v5395, %v5395
    %v5460 = vpack.c.b16 %v5396, %v5396
    %v5461 = vpack.c.b16 %v5397, %v5397
    %v5462 = vpack.c.b16 %v5398, %v5398
    %v5463 = vpack.c.b16 %v5399, %v5399
    %v5464 = vpack.c.b16 %v5400, %v5400
    %v5465 = vpack.c.b16 %v5401, %v5401
    %v5466 = vpack.c.b16 %v5402, %v5402
    %v5467 = vpack.c.b16 %v5403, %v5403
    %v5468 = vunpack.c.l.b16 %v5404
    %v5469 = vunpack.c.l.b16 %v5405
    %v5470 = vunpack.c.l.b16 %v5406
    %v5471 = vunpack.c.l.b16 %v5407
    %v5472 = vunpack.c.l.b16 %v5408
    %v5473 = vunpack.c.l.b16 %v5409
    %v5474 = vunpack.c.l.b16 %v5410
    %v5475 = vunpack.c.l.b16 %v5411
    %v5476 = vunpack.c.l.b16 %v5412
    %v5477 = vunpack.c.l.b16 %v5413
    %v5478 = vunpack.c.l.b16 %v5414
    %v5479 = vunpack.c.l.b16 %v5415
    %v5480 = vunpack.c.l.b16 %v5416
    %v5481 = vunpack.c.l.b16 %v5417
    %v5482 = vunpack.c.l.b16 %v5418
    %v5483 = vunpack.c.l.b16 %v5419
    %v5484 = vunpack.c.l.b16 %v5420
    %v5485 = vunpack.c.l.b16 %v5421
    %v5486 = vunpack.c.l.b16 %v5422
    %v5487 = vunpack.c.l.b16 %v5423
    %v5488 = vunpack.c.l.b16 %v5424
    %v5489 = vunpack.c.l.b16 %v5425
    %v5490 = vunpack.c.l.b16 %v5426
    %v5491 = vunpack.c.l.b16 %v5427
    %v5492 = vunpack.c.l.b16 %v5428
    %v5493 = vunpack.c.l.b16 %v5429
    %v5494 = vunpack.c.l.b16 %v5430
    %v5495 = vunpack.c.l.b16 %v5431
    %v5496 = vunpack.c.l.b16 %v5432
    %v5497 = vunpack.c.l.b16 %v5433
    %v5498 = vunpack.c.l.b16 %v5434
    %v5499 = vunpack.c.l.b16 %v5435
    %v5500 = vunpack.c.l.b16 %v5436
    %v5501 = vunpack.c.l.b16 %v5437
    %v5502 = vunpack.c.l.b16 %v5438
    %v5503 = vunpack.c.l.b16 %v5439
    %v5504 = vunpack.c.l.b16 %v5440
    %v5505 = vunpack.c.l.b16 %v5441
    %v5506 = vunpack.c.l.b16 %v5442
    %v5507 = vunpack.c.l.b16 %v5443
    %v5508 = vunpack.c.l.b16 %v5444
    %v5509 = vunpack.c.l.b16 %v5445
    %v5510 = vunpack.c.l.b16 %v5446
    %v5511 = vunpack.c.l.b16 %v5447
    %v5512 = vunpack.c.l.b16 %v5448
    %v5513 = vunpack.c.l.b16 %v5449
    %v5514 = vunpack.c.l.b16 %v5450
    %v5515 = vunpack.c.l.b16 %v5451
    %v5516 = vunpack.c.l.b16 %v5452
    %v5517 = vunpack.c.l.b16 %v5453
    %v5518 = vunpack.c.l.b16 %v5454
    %v5519 = vunpack.c.l.b16 %v5455
    %v5520 = vunpack.c.l.b16 %v5456
    %v5521 = vunpack.c.l.b16 %v5457
    %v5522 = vunpack.c.l.b16 %v5458
    %v5523 = vunpack.c.l.b16 %v5459
    %v5524 = vunpack.c.l.b16 %v5460
    %v5525 = vunpack.c.l.b16 %v5461
    %v5526 = vunpack.c.l.b16 %v5462
    %v5527 = vunpack.c.l.b16 %v5463
    %v5528 = vunpack.c.l.b16 %v5464
    %v5529 = vunpack.c.l.b16 %v5465
    %v5530 = vunpack.c.l.b16 %v5466
    %v5531 = vunpack.c.l.b16 %v5467
    %vm5532 = vcmask 1041409
    %v5533 = vsel %vm5532, %v5469, %v5468
    %vm5534 = vcmask 1042434
    %v5535 = vsel %vm5534, %v5470, %v5533
    %vm5536 = vcmask 1043459
    %v5537 = vsel %vm5536, %v5471, %v5535
    %vm5538 = vcmask 1044484
    %v5539 = vsel %vm5538, %v5472, %v5537
    %vm5540 = vcmask 1045509
    %v5541 = vsel %vm5540, %v5473, %v5539
    %vm5542 = vcmask 1046534
    %v5543 = vsel %vm5542, %v5474, %v5541
    %vm5544 = vcmask 1047559
    %v5545 = vsel %vm5544, %v5475, %v5543
    %v5546 = vsel %vm5532, %v5477, %v5476
    %v5547 = vsel %vm5534, %v5478, %v5546
    %v5548 = vsel %vm5536, %v5479, %v5547
    %v5549 = vsel %vm5538, %v5480, %v5548
    %v5550 = vsel %vm5540, %v5481, %v5549
    %v5551 = vsel %vm5542, %v5482, %v5550
    %v5552 = vsel %vm5544, %v5483, %v5551
    %v5553 = vsel %vm5532, %v5485, %v5484
    %v5554 = vsel %vm5534, %v5486, %v5553
    %v5555 = vsel %vm5536, %v5487, %v5554
    %v5556 = vsel %vm5538, %v5488, %v5555
    %v5557 = vsel %vm5540, %v5489, %v5556
    %v5558 = vsel %vm5542, %v5490, %v5557
    %v5559 = vsel %vm5544, %v5491, %v5558
    %v5560 = vsel %vm5532, %v5493, %v5492
    %v5561 = vsel %vm5534, %v5494, %v5560
    %v5562 = vsel %vm5536, %v5495, %v5561
    %v5563 = vsel %vm5538, %v5496, %v5562
    %v5564 = vsel %vm5540, %v5497, %v5563
    %v5565 = vsel %vm5542, %v5498, %v5564
    %v5566 = vsel %vm5544, %v5499, %v5565
    %v5567 = vsel %vm5532, %v5501, %v5500
    %v5568 = vsel %vm5534, %v5502, %v5567
    %v5569 = vsel %vm5536, %v5503, %v5568
    %v5570 = vsel %vm5538, %v5504, %v5569
    %v5571 = vsel %vm5540, %v5505, %v5570
    %v5572 = vsel %vm5542, %v5506, %v5571
    %v5573 = vsel %vm5544, %v5507, %v5572
    %v5574 = vsel %vm5532, %v5509, %v5508
    %v5575 = vsel %vm5534, %v5510, %v5574
    %v5576 = vsel %vm5536, %v5511, %v5575
    %v5577 = vsel %vm5538, %v5512, %v5576
    %v5578 = vsel %vm5540, %v5513, %v5577
    %v5579 = vsel %vm5542, %v5514, %v5578
    %v5580 = vsel %vm5544, %v5515, %v5579
    %v5581 = vsel %vm5532, %v5517, %v5516
    %v5582 = vsel %vm5534, %v5518, %v5581
    %v5583 = vsel %vm5536, %v5519, %v5582
    %v5584 = vsel %vm5538, %v5520, %v5583
    %v5585 = vsel %vm5540, %v5521, %v5584
    %v5586 = vsel %vm5542, %v5522, %v5585
    %v5587 = vsel %vm5544, %v5523, %v5586
    %v5588 = vsel %vm5532, %v5525, %v5524
    %v5589 = vsel %vm5534, %v5526, %v5588
    %v5590 = vsel %vm5536, %v5527, %v5589
    %v5591 = vsel %vm5538, %v5528, %v5590
    %v5592 = vsel %vm5540, %v5529, %v5591
    %v5593 = vsel %vm5542, %v5530, %v5592
    %v5594 = vsel %vm5544, %v5531, %v5593
    %v5595 = vpack.c.b16 %v5545, %v5545
    %v5596 = vpack.c.b16 %v5552, %v5552
    %v5597 = vpack.c.b16 %v5559, %v5559
    %v5598 = vpack.c.b16 %v5566, %v5566
    %v5599 = vpack.c.b16 %v5573, %v5573
    %v5600 = vpack.c.b16 %v5580, %v5580
    %v5601 = vpack.c.b16 %v5587, %v5587
    %v5602 = vpack.c.b16 %v5594, %v5594
    %5611 = vst [vmem:[#allocation7] sm:$0xf] %v5595
    %5612 = vst [vmem:[#allocation7 + $0x4] sm:$0xf] %v5596
    %5613 = vst [vmem:[#allocation7 + $0x8] sm:$0xf] %v5597
    %5614 = vst [vmem:[#allocation7 + $0xc] sm:$0xf] %v5598
    %5615 = vst [vmem:[#allocation7 + $0x10] sm:$0xf] %v5599
    %5616 = vst [vmem:[#allocation7 + $0x14] sm:$0xf] %v5600
    %5617 = vst [vmem:[#allocation7 + $0x18] sm:$0xf] %v5601
    %5618 = vst [vmem:[#allocation7 + $0x1c] sm:$0xf] %v5602
    // Predicated region
    $region22: #{tpu_custom_call.1} parent=1 // pred_check
      _
    $region23: #{tpu_custom_call.1} parent=1 // pred_check_branch
      %5620 = sbr.rel (0) target = $region25
    $region24: #{tpu_custom_call.1} parent=1 // pred_region
      %s5622 = ssub.s32 512, 512
      %5623 = vsyncadd [#allocation4], %s5622
      %s5624 = sshll.u32 [#allocation7], 4
      %s5625 = int_to_ptr.vmem [resolvable:$true] %s5624
      %5630 = dma.vmem_to_hbm [thread:$0]  %s5625, 512, %s3, [#allocation4], 64, 64, 4
    $region25: #{tpu_custom_call.1} parent=1 // pred_fallthru
      _
    // Predicated region
    $region26: #{tpu_custom_call.1} parent=1 // pred_check
      _
    $region27: #{tpu_custom_call.1} parent=1 // pred_check_branch
      %5632 = sbr.rel (0) target = $region29
    $region28: #{tpu_custom_call.1} parent=1 // pred_region
      %5633 = dma.done [#allocation4], 512
    $region29: #{tpu_custom_call.1} parent=1 // pred_fallthru
      _
    %5634 = vsyncpa [#allocation3], 1
    %5635 = vsyncpa [#allocation6], 1
    %5636 = vsyncpa [#allocation4], 1

</llo_original>
